<compile_context>
chip_gen: v7x
topology: tpu7x:2x2x1
jax: 0.10.0
libtpu: 0.0.40
codegen_flags: <defaults>
</compile_context>

<pallas_src>
import functools

import jax
import jax.numpy as jnp
from jax.experimental import pallas as pl
from jax.experimental.pallas import tpu as pltpu

NUM_GROUPS = 32
GN_EPS = 1e-5


# ----------------------------- in-kernel helpers -----------------------------

def _silu(v):
    return v * jax.nn.sigmoid(v)


def _gn_scale_shift(h3, gamma, beta, m, mt, inv_n):
    """Per-batch-element GroupNorm folded into one scale/shift.

    h3: (Bblk, L, C) f32;  gamma/beta: (1, C);  m: (C, G) group one-hot with
    zero rows on padded channels;  mt: (G, C).  Returns (Bblk, 1, C) scale and
    shift so that GN(h)*gamma+beta == h*scale + shift.
    Sums are kept in f32 (single-pass E[x^2]-E[x]^2; fine at these scales).
    """
    s = jnp.dot(jnp.sum(h3, axis=1), m, preferred_element_type=jnp.float32)        # (Bblk, G)
    ss = jnp.dot(jnp.sum(h3 * h3, axis=1), m, preferred_element_type=jnp.float32)  # (Bblk, G)
    mean = s * inv_n
    var = ss * inv_n - mean * mean
    inv = jax.lax.rsqrt(var + GN_EPS)
    mean_c = jnp.dot(mean, mt, preferred_element_type=jnp.float32)  # (Bblk, C)
    inv_c = jnp.dot(inv, mt, preferred_element_type=jnp.float32)    # (Bblk, C)
    scale = inv_c * gamma
    shift = beta - mean_c * scale
    return scale[:, None, :], shift[:, None, :]


def _conv1d_k3(h2, w_ref, mask_first, mask_last):
    """Conv1d(kernel=3, padding=1) as ONE fused K=3*Cin MXU matmul.

    h2: (M, Cin) f32 with M = Bblk*L (rows batch-major);
    w_ref: (3*Cin, Cout) bf16 ref, taps stacked [l-1 | l | l+1];
    mask_first / mask_last: (M, 1) f32 masks zeroing rows where l==0 / l==L-1
    (handles both conv padding and cross-batch halo rows).
    """
    mrows, cin = h2.shape
    zero = jnp.zeros((1, cin), h2.dtype)
    h_prev = jnp.concatenate([zero, h2[:mrows - 1, :]], axis=0) * mask_first  # in[l-1]
    h_next = jnp.concatenate([h2[1:, :], zero], axis=0) * mask_last           # in[l+1]
    hcat = jnp.concatenate([h_prev, h2, h_next], axis=-1).astype(jnp.bfloat16)
    return jnp.dot(hcat, w_ref[...], preferred_element_type=jnp.float32)


# --------------------------------- kernel ------------------------------------

def resblock_kernel(x_ref, emb_ref,
                    gn1_g_ref, gn1_b_ref, w1_ref, b1_ref,
                    gn2_g_ref, gn2_b_ref, w2_ref, b2_ref,
                    m1_ref, mt1_ref, m2_ref, mt2_ref,
                    maskf_ref, maskl_ref,
                    *rest,
                    bblk, length, inv_n1, inv_n2, has_skip_conv):
    if has_skip_conv:
        wskip_ref, bskip_ref, o_ref = rest
    else:
        (o_ref,) = rest

    cp = x_ref.shape[-1]
    cop = o_ref.shape[-1]
    mrows = bblk * length
    maskf = maskf_ref[...]
    maskl = maskl_ref[...]

    x3 = x_ref[...].astype(jnp.float32)                     # (Bblk, L, Cp)

    # ---- in_layers: GroupNorm32 -> SiLU -> Conv1d(3, pad=1) -----------------
    scale, shift = _gn_scale_shift(x3, gn1_g_ref[...], gn1_b_ref[...],
                                   m1_ref[...], mt1_ref[...], inv_n1)
    h = _silu(x3 * scale + shift)                           # (Bblk, L, Cp) f32
    h2 = _conv1d_k3(h.reshape(mrows, cp), w1_ref, maskf, maskl) + b1_ref[...]
    h = h2.reshape(bblk, length, cop)                       # (Bblk, L, Cop)

    # ---- + time embedding (SiLU -> Linear hoisted to the wrapper) -----------
    h = h + emb_ref[...]                                    # (Bblk, 1, Cop) bias

    # ---- out_layers: GroupNorm32 -> SiLU -> Dropout(0)=id -> Conv1d(3,pad=1)-
    scale, shift = _gn_scale_shift(h, gn2_g_ref[...], gn2_b_ref[...],
                                   m2_ref[...], mt2_ref[...], inv_n2)
    h = _silu(h * scale + shift)
    h2 = _conv1d_k3(h.reshape(mrows, cop), w2_ref, maskf, maskl) + b2_ref[...]
    h = h2.reshape(bblk, length, cop)

    # ---- skip connection -----------------------------------------------------
    if has_skip_conv:
        s2 = jnp.dot(x3.reshape(mrows, cp).astype(jnp.bfloat16), wskip_ref[...],
                     preferred_element_type=jnp.float32) + bskip_ref[...]
        skip = s2.reshape(bblk, length, cop)
    else:
        skip = x3                                           # Identity (Cp == Cop)

    o_ref[...] = (skip + h).astype(o_ref.dtype)


# --------------------------------- wrapper ------------------------------------

def _round_up(x, m):
    return (x + m - 1) // m * m


def _pick_bblk(batch, length, max_rows=512):
    """Largest divisor of `batch` keeping the fused M dimension <= max_rows."""
    bblk = 1
    for d in range(1, batch + 1):
        if batch % d == 0 and d * length <= max(length, max_rows):
            bblk = d
    return bblk


def resblock_pallas(x_nlc, t_emb, params, *, num_groups=NUM_GROUPS):
    B, L, C = x_nlc.shape
    Cout = params["b1"].shape[-1]
    assert C % num_groups == 0 and Cout % num_groups == 0
    has_skip_conv = (C != Cout)

    Cp = _round_up(C, 128)
    Cop = _round_up(Cout, 128)
    bblk = _pick_bblk(B, L)
    G = num_groups
    f32 = jnp.float32

    def padc(a, target, axis):
        pad = [(0, 0)] * a.ndim
        pad[axis] = (0, target - a.shape[axis])
        return jnp.pad(a, pad)

    # activations, zero-padded to lane-dense channel count
    xp = padc(x_nlc.astype(f32), Cp, 2)                               # (B, L, Cp)

    # time-embedding branch (SiLU -> Linear) hoisted out of the kernel
    emb = jax.nn.silu(t_emb.astype(f32)) @ params["emb_w"] + params["emb_b"]
    embp = padc(emb, Cop, 1).reshape(B, 1, Cop)                       # (B, 1, Cop)

    # conv weights: (3, Cin, Cout) -> pad -> (3*Cin_p, Cout_p), bf16 for the MXU
    def prep_w(w, cinp, coutp):
        w = padc(padc(w.astype(f32), cinp, 1), coutp, 2)
        return w.reshape(3 * cinp, coutp).astype(jnp.bfloat16)

    w1 = prep_w(params["w1"], Cp, Cop)
    w2 = prep_w(params["w2"], Cop, Cop)
    b1 = padc(params["b1"].astype(f32), Cop, 1)
    b2 = padc(params["b2"].astype(f32), Cop, 1)
    g1 = padc(params["gn1_g"].astype(f32), Cp, 1)
    be1 = padc(params["gn1_b"].astype(f32), Cp, 1)
    g2 = padc(params["gn2_g"].astype(f32), Cop, 1)
    be2 = padc(params["gn2_b"].astype(f32), Cop, 1)

    # GroupNorm one-hot group matrices (zero rows/cols on padded channels)
    def group_mats(c_real, c_pad):
        cpg = c_real // G
        ch = jnp.arange(c_pad)
        grp = jnp.arange(G)
        m = ((ch[:, None] // cpg) == grp[None, :]) & (ch[:, None] < c_real)
        m = m.astype(f32)
        return m, m.T

    m1, mt1 = group_mats(C, Cp)
    m2, mt2 = group_mats(Cout, Cop)

    # conv halo masks over the flattened (Bblk*L) row axis (per-batch edges)
    rows = jnp.arange(bblk * L)
    mask_first = (rows % L != 0).astype(f32).reshape(-1, 1)
    mask_last = (rows % L != L - 1).astype(f32).reshape(-1, 1)

    args = [xp, embp, g1, be1, w1, b1, g2, be2, w2, b2,
            m1, mt1, m2, mt2, mask_first, mask_last]
    if has_skip_conv:
        wskip = padc(padc(params["wskip"].astype(f32), Cp, 0), Cop, 1)
        args += [wskip.astype(jnp.bfloat16), padc(params["bskip"].astype(f32), Cop, 1)]

    def full_spec(a):
        nd = a.ndim
        return pl.BlockSpec(a.shape, lambda g, _nd=nd: (0,) * _nd)

    in_specs = [
        pl.BlockSpec((bblk, L, Cp), lambda g: (g, 0, 0)),     # x block
        pl.BlockSpec((bblk, 1, Cop), lambda g: (g, 0, 0)),    # hoisted emb bias
    ] + [full_spec(a) for a in args[2:]]

    out_specs = pl.BlockSpec((bblk, L, Cop), lambda g: (g, 0, 0))

    kernel = functools.partial(
        resblock_kernel,
        bblk=bblk, length=L,
        inv_n1=1.0 / float(L * (C // G)), inv_n2=1.0 / float(L * (Cout // G)),
        has_skip_conv=has_skip_conv)

    out = pl.pallas_call(
        kernel,
        out_shape=jax.ShapeDtypeStruct((B, L, Cop), x_nlc.dtype),
        grid=(B // bblk,),
        in_specs=in_specs,
        out_specs=out_specs,
        compiler_params=pltpu.CompilerParams(
            dimension_semantics=("parallel",)),
    )(*args)
    return out[:, :, :Cout]


# --------------------------- pure-JAX reference -------------------------------

def ref_forward(x, t_emb, params, num_groups=NUM_GROUPS):
    def gn(h, g, b):
        B, L, C = h.shape
        hg = h.reshape(B, L, num_groups, C // num_groups)
        mean = hg.mean(axis=(1, 3), keepdims=True)
        var = ((hg - mean) ** 2).mean(axis=(1, 3), keepdims=True)
        hn = (hg - mean) / jnp.sqrt(var + GN_EPS)
        return hn.reshape(B, L, C) * g + b

    def silu(v):
        return v * jax.nn.sigmoid(v)

    def conv3(h, w, bias):
        B, L, C = h.shape
        zero = jnp.zeros((B, 1, C), h.dtype)
        h_prev = jnp.concatenate([zero, h[:, :-1]], axis=1)
        h_next = jnp.concatenate([h[:, 1:], zero], axis=1)
        return (jnp.einsum("blc,cd->bld", h_prev, w[0]) +
                jnp.einsum("blc,cd->bld", h, w[1]) +
                jnp.einsum("blc,cd->bld", h_next, w[2]) + bias)

    h = conv3(silu(gn(x, params["gn1_g"], params["gn1_b"])),
              params["w1"], params["b1"])
    emb = silu(t_emb) @ params["emb_w"] + params["emb_b"]
    h = h + emb[:, None, :]
    h = conv3(silu(gn(h, params["gn2_g"], params["gn2_b"])),
              params["w2"], params["b2"])
    if "wskip" in params:
        skip = jnp.einsum("blc,cd->bld", x, params["wskip"]) + params["bskip"]
    else:
        skip = x
    return skip + h


# ----------------------------------- main --------------------------------------

def make_params(key, C, Cout, D):
    ks = jax.random.split(key, 12)
    rn = lambda k, s, sc=0.02: (sc * jax.random.normal(k, s)).astype(jnp.float32)
    params = {
        "gn1_g": 1.0 + rn(ks[0], (1, C)),
        "gn1_b": rn(ks[1], (1, C)),
        "w1": rn(ks[2], (3, C, Cout)),        # == PyTorch conv1 weight[:, :, k].T stacked
        "b1": rn(ks[3], (1, Cout)),
        "emb_w": rn(ks[4], (D, Cout)),        # == PyTorch linear weight.T
        "emb_b": rn(ks[5], (1, Cout)),
        "gn2_g": 1.0 + rn(ks[6], (1, Cout)),
        "gn2_b": rn(ks[7], (1, Cout)),
        "w2": rn(ks[8], (3, Cout, Cout)),
        "b2": rn(ks[9], (1, Cout)),
    }
    if C != Cout:
        # PyTorch uses nn.Conv1d(C, Cout, 1) for the skip when shapes differ
        params["wskip"] = rn(ks[10], (C, Cout), 0.05)
        params["bskip"] = rn(ks[11], (1, Cout))
    return params


if __name__ == "__main__":
    key = jax.random.PRNGKey(0)
    kx, kt, kp, kx2, kt2, kp2 = jax.random.split(key, 6)

    # channels must be divisible by 32 (GroupNorm32); layout is NLC (PyTorch's
    # NCL input would just be x_ncl.transpose(0, 2, 1)).
    B, L, C, D = 2, 128, 64, 32

    # ---- config 1: out_channels == channels -> Identity skip ----------------
    x = jax.random.normal(kx, (B, L, C), jnp.float32)
    t_emb = jax.random.normal(kt, (B, D), jnp.float32)
    params = make_params(kp, C, C, D)
    out = jax.block_until_ready(resblock_pallas(x, t_emb, params))
    ref = jax.block_until_ready(ref_forward(x, t_emb, params))
    assert out.shape == (B, L, C)
    err = float(jnp.max(jnp.abs(out - ref)))
    # tolerance accounts for bf16 MXU inputs (f32 accumulation) vs the f32 ref
    assert err < 1e-2, f"identity-skip config: max abs err = {err}"

    # ---- config 2: out_channels != channels -> 1x1-conv skip ----------------
    Cout = 128
    x2 = jax.random.normal(kx2, (B, L, C), jnp.float32)
    t2 = jax.random.normal(kt2, (B, D), jnp.float32)
    params2 = make_params(kp2, C, Cout, D)
    out2 = jax.block_until_ready(resblock_pallas(x2, t2, params2))
    ref2 = jax.block_until_ready(ref_forward(x2, t2, params2))
    assert out2.shape == (B, L, Cout)
    err2 = float(jnp.max(jnp.abs(out2 - ref2)))
    assert err2 < 1e-2, f"conv-skip config: max abs err = {err2}"

    print("KERNEL_OK")
</pallas_src>

<mosaic_0001>
module attributes {stable_mosaic.version = 11 : i64} {
  func.func @resblock_kernel(%arg0: i32, %arg1: memref<2x128x128xf32, #tpu.memory_space<vmem>>, %arg2: memref<2x1x128xf32, #tpu.memory_space<vmem>>, %arg3: memref<1x128xf32, #tpu.memory_space<vmem>>, %arg4: memref<1x128xf32, #tpu.memory_space<vmem>>, %arg5: memref<384x128xbf16, #tpu.memory_space<vmem>>, %arg6: memref<1x128xf32, #tpu.memory_space<vmem>>, %arg7: memref<1x128xf32, #tpu.memory_space<vmem>>, %arg8: memref<1x128xf32, #tpu.memory_space<vmem>>, %arg9: memref<384x128xbf16, #tpu.memory_space<vmem>>, %arg10: memref<1x128xf32, #tpu.memory_space<vmem>>, %arg11: memref<128x32xf32, #tpu.memory_space<vmem>>, %arg12: memref<32x128xf32, #tpu.memory_space<vmem>>, %arg13: memref<128x32xf32, #tpu.memory_space<vmem>>, %arg14: memref<32x128xf32, #tpu.memory_space<vmem>>, %arg15: memref<256x1xf32, #tpu.memory_space<vmem>>, %arg16: memref<256x1xf32, #tpu.memory_space<vmem>>, %arg17: memref<2x128x128xf32, #tpu.memory_space<vmem>>) attributes {dimension_semantics = [#tpu.dimension_semantics<parallel>], iteration_bounds = array<i64: 1>, scalar_prefetch = 0 : i64, scratch_operands = 0 : i64, tpu.core_type = #tpu.core_type<tc>, window_params = [{transform_indices = @transform_0, window_bounds = array<i64: 2, 128, 128>}, {transform_indices = @transform_1, window_bounds = array<i64: 2, 1, 128>}, {pipeline_mode = #tpu.pipeline_mode<synchronous>, transform_indices = @transform_2, window_bounds = array<i64: 1, 128>}, {pipeline_mode = #tpu.pipeline_mode<synchronous>, transform_indices = @transform_3, window_bounds = array<i64: 1, 128>}, {pipeline_mode = #tpu.pipeline_mode<synchronous>, transform_indices = @transform_4, window_bounds = array<i64: 384, 128>}, {pipeline_mode = #tpu.pipeline_mode<synchronous>, transform_indices = @transform_5, window_bounds = array<i64: 1, 128>}, {pipeline_mode = #tpu.pipeline_mode<synchronous>, transform_indices = @transform_6, window_bounds = array<i64: 1, 128>}, {pipeline_mode = #tpu.pipeline_mode<synchronous>, transform_indices = @transform_7, window_bounds = array<i64: 1, 128>}, {pipeline_mode = #tpu.pipeline_mode<synchronous>, transform_indices = @transform_8, window_bounds = array<i64: 384, 128>}, {pipeline_mode = #tpu.pipeline_mode<synchronous>, transform_indices = @transform_9, window_bounds = array<i64: 1, 128>}, {pipeline_mode = #tpu.pipeline_mode<synchronous>, transform_indices = @transform_10, window_bounds = array<i64: 128, 32>}, {pipeline_mode = #tpu.pipeline_mode<synchronous>, transform_indices = @transform_11, window_bounds = array<i64: 32, 128>}, {pipeline_mode = #tpu.pipeline_mode<synchronous>, transform_indices = @transform_12, window_bounds = array<i64: 128, 32>}, {pipeline_mode = #tpu.pipeline_mode<synchronous>, transform_indices = @transform_13, window_bounds = array<i64: 32, 128>}, {pipeline_mode = #tpu.pipeline_mode<synchronous>, transform_indices = @transform_14, window_bounds = array<i64: 256, 1>}, {pipeline_mode = #tpu.pipeline_mode<synchronous>, transform_indices = @transform_15, window_bounds = array<i64: 256, 1>}, {transform_indices = @transform_16, window_bounds = array<i64: 2, 128, 128>}]} {
    %c0 = arith.constant 0 : index
    %c0_0 = arith.constant 0 : index
    %0 = vector.load %arg15[%c0, %c0_0] : memref<256x1xf32, #tpu.memory_space<vmem>>, vector<256x1xf32>
    %c0_1 = arith.constant 0 : index
    %c0_2 = arith.constant 0 : index
    %1 = vector.load %arg16[%c0_1, %c0_2] : memref<256x1xf32, #tpu.memory_space<vmem>>, vector<256x1xf32>
    %c0_3 = arith.constant 0 : index
    %c0_4 = arith.constant 0 : index
    %c0_5 = arith.constant 0 : index
    %2 = vector.load %arg1[%c0_3, %c0_4, %c0_5] : memref<2x128x128xf32, #tpu.memory_space<vmem>>, vector<2x128x128xf32>
    %c0_6 = arith.constant 0 : index
    %c0_7 = arith.constant 0 : index
    %3 = vector.load %arg3[%c0_6, %c0_7] : memref<1x128xf32, #tpu.memory_space<vmem>>, vector<1x128xf32>
    %c0_8 = arith.constant 0 : index
    %c0_9 = arith.constant 0 : index
    %4 = vector.load %arg4[%c0_8, %c0_9] : memref<1x128xf32, #tpu.memory_space<vmem>>, vector<1x128xf32>
    %c0_10 = arith.constant 0 : index
    %c0_11 = arith.constant 0 : index
    %5 = vector.load %arg11[%c0_10, %c0_11] : memref<128x32xf32, #tpu.memory_space<vmem>>, vector<128x32xf32>
    %c0_12 = arith.constant 0 : index
    %c0_13 = arith.constant 0 : index
    %6 = vector.load %arg12[%c0_12, %c0_13] : memref<32x128xf32, #tpu.memory_space<vmem>>, vector<32x128xf32>
    %cst = arith.constant dense<0.000000e+00> : vector<2x128xf32>
    %7 = vector.multi_reduction <add>, %2, %cst [1] : vector<2x128x128xf32> to vector<2x128xf32>
    %cst_14 = arith.constant dense<0.000000e+00> : vector<2x32xf32>
    %8 = tpu.matmul %7, %5, %cst_14 {dimension_numbers = #tpu.dot_dimension_numbers<[1], [0], [0], [1], [0, 0, 1, 1], [], []>} : vector<2x128xf32>, vector<128x32xf32>, vector<2x32xf32> -> vector<2x32xf32>
    %9 = arith.mulf %2, %2 : vector<2x128x128xf32>
    %cst_15 = arith.constant dense<0.000000e+00> : vector<2x128xf32>
    %10 = vector.multi_reduction <add>, %9, %cst_15 [1] : vector<2x128x128xf32> to vector<2x128xf32>
    %cst_16 = arith.constant dense<0.000000e+00> : vector<2x32xf32>
    %11 = tpu.matmul %10, %5, %cst_16 {dimension_numbers = #tpu.dot_dimension_numbers<[1], [0], [0], [1], [0, 0, 1, 1], [], []>} : vector<2x128xf32>, vector<128x32xf32>, vector<2x32xf32> -> vector<2x32xf32>
    %cst_17 = arith.constant 3.906250e-03 : f32
    %12 = vector.broadcast %cst_17 : f32 to vector<2x32xf32>
    %13 = arith.mulf %8, %12 : vector<2x32xf32>
    %cst_18 = arith.constant 3.906250e-03 : f32
    %14 = vector.broadcast %cst_18 : f32 to vector<2x32xf32>
    %15 = arith.mulf %11, %14 : vector<2x32xf32>
    %16 = arith.mulf %13, %13 : vector<2x32xf32>
    %17 = arith.subf %15, %16 : vector<2x32xf32>
    %cst_19 = arith.constant 9.99999974E-6 : f32
    %18 = vector.broadcast %cst_19 : f32 to vector<2x32xf32>
    %19 = arith.addf %17, %18 : vector<2x32xf32>
    %20 = math.rsqrt %19 : vector<2x32xf32>
    %cst_20 = arith.constant dense<0.000000e+00> : vector<2x128xf32>
    %21 = tpu.matmul %13, %6, %cst_20 {dimension_numbers = #tpu.dot_dimension_numbers<[1], [0], [0], [1], [0, 0, 1, 1], [], []>} : vector<2x32xf32>, vector<32x128xf32>, vector<2x128xf32> -> vector<2x128xf32>
    %cst_21 = arith.constant dense<0.000000e+00> : vector<2x128xf32>
    %22 = tpu.matmul %20, %6, %cst_21 {dimension_numbers = #tpu.dot_dimension_numbers<[1], [0], [0], [1], [0, 0, 1, 1], [], []>} : vector<2x32xf32>, vector<32x128xf32>, vector<2x128xf32> -> vector<2x128xf32>
    %23 = vector.broadcast %3 : vector<1x128xf32> to vector<2x128xf32>
    %24 = arith.mulf %22, %23 : vector<2x128xf32>
    %25 = arith.mulf %21, %24 : vector<2x128xf32>
    %26 = vector.broadcast %4 : vector<1x128xf32> to vector<2x128xf32>
    %27 = arith.subf %26, %25 : vector<2x128xf32>
    %28 = vector.shape_cast %24 : vector<2x128xf32> to vector<2x1x128xf32>
    %29 = vector.shape_cast %27 : vector<2x128xf32> to vector<2x1x128xf32>
    %30 = vector.broadcast %28 : vector<2x1x128xf32> to vector<2x128x128xf32>
    %31 = arith.mulf %2, %30 : vector<2x128x128xf32>
    %32 = vector.broadcast %29 : vector<2x1x128xf32> to vector<2x128x128xf32>
    %33 = arith.addf %31, %32 : vector<2x128x128xf32>
    %34 = arith.negf %33 : vector<2x128x128xf32>
    %35 = math.exp %34 : vector<2x128x128xf32>
    %cst_22 = arith.constant 1.000000e+00 : f32
    %36 = vector.broadcast %cst_22 : f32 to vector<2x128x128xf32>
    %37 = arith.addf %36, %35 : vector<2x128x128xf32>
    %38 = arith.divf %36, %37 : vector<2x128x128xf32>
    %39 = arith.mulf %33, %38 : vector<2x128x128xf32>
    %40 = vector.shape_cast %39 : vector<2x128x128xf32> to vector<256x128xf32>
    %cst_23 = arith.constant 0.000000e+00 : f32
    %41 = vector.broadcast %cst_23 : f32 to vector<1x128xf32>
    %42 = vector.extract_strided_slice %40 {offsets = [0, 0], sizes = [255, 128], strides = [1, 1]} : vector<256x128xf32> to vector<255x128xf32>
    %43 = tpu.concatenate %41, %42 in 0 : vector<1x128xf32>, vector<255x128xf32> -> vector<256x128xf32>
    %44 = vector.broadcast %0 : vector<256x1xf32> to vector<256x128xf32>
    %45 = arith.mulf %43, %44 : vector<256x128xf32>
    %46 = vector.extract_strided_slice %40 {offsets = [1, 0], sizes = [255, 128], strides = [1, 1]} : vector<256x128xf32> to vector<255x128xf32>
    %47 = tpu.concatenate %46, %41 in 0 : vector<255x128xf32>, vector<1x128xf32> -> vector<256x128xf32>
    %48 = vector.broadcast %1 : vector<256x1xf32> to vector<256x128xf32>
    %49 = arith.mulf %47, %48 : vector<256x128xf32>
    %50 = tpu.concatenate %45, %40, %49 in 1 : vector<256x128xf32>, vector<256x128xf32>, vector<256x128xf32> -> vector<256x384xf32>
    %51 = arith.truncf %50 : vector<256x384xf32> to vector<256x384xbf16>
    %c0_24 = arith.constant 0 : index
    %c0_25 = arith.constant 0 : index
    %52 = vector.load %arg5[%c0_24, %c0_25] : memref<384x128xbf16, #tpu.memory_space<vmem>>, vector<384x128xbf16>
    %cst_26 = arith.constant dense<0.000000e+00> : vector<256x128xf32>
    %53 = tpu.matmul %51, %52, %cst_26 {dimension_numbers = #tpu.dot_dimension_numbers<[1], [0], [0], [1], [0, 0, 1, 1], [], []>} : vector<256x384xbf16>, vector<384x128xbf16>, vector<256x128xf32> -> vector<256x128xf32>
    %c0_27 = arith.constant 0 : index
    %c0_28 = arith.constant 0 : index
    %54 = vector.load %arg6[%c0_27, %c0_28] : memref<1x128xf32, #tpu.memory_space<vmem>>, vector<1x128xf32>
    %55 = vector.broadcast %54 : vector<1x128xf32> to vector<256x128xf32>
    %56 = arith.addf %53, %55 : vector<256x128xf32>
    %57 = vector.shape_cast %56 : vector<256x128xf32> to vector<2x128x128xf32>
    %c0_29 = arith.constant 0 : index
    %c0_30 = arith.constant 0 : index
    %c0_31 = arith.constant 0 : index
    %58 = vector.load %arg2[%c0_29, %c0_30, %c0_31] : memref<2x1x128xf32, #tpu.memory_space<vmem>>, vector<2x1x128xf32>
    %59 = vector.broadcast %58 : vector<2x1x128xf32> to vector<2x128x128xf32>
    %60 = arith.addf %57, %59 : vector<2x128x128xf32>
    %c0_32 = arith.constant 0 : index
    %c0_33 = arith.constant 0 : index
    %61 = vector.load %arg7[%c0_32, %c0_33] : memref<1x128xf32, #tpu.memory_space<vmem>>, vector<1x128xf32>
    %c0_34 = arith.constant 0 : index
    %c0_35 = arith.constant 0 : index
    %62 = vector.load %arg8[%c0_34, %c0_35] : memref<1x128xf32, #tpu.memory_space<vmem>>, vector<1x128xf32>
    %c0_36 = arith.constant 0 : index
    %c0_37 = arith.constant 0 : index
    %63 = vector.load %arg13[%c0_36, %c0_37] : memref<128x32xf32, #tpu.memory_space<vmem>>, vector<128x32xf32>
    %c0_38 = arith.constant 0 : index
    %c0_39 = arith.constant 0 : index
    %64 = vector.load %arg14[%c0_38, %c0_39] : memref<32x128xf32, #tpu.memory_space<vmem>>, vector<32x128xf32>
    %cst_40 = arith.constant dense<0.000000e+00> : vector<2x128xf32>
    %65 = vector.multi_reduction <add>, %60, %cst_40 [1] : vector<2x128x128xf32> to vector<2x128xf32>
    %cst_41 = arith.constant dense<0.000000e+00> : vector<2x32xf32>
    %66 = tpu.matmul %65, %63, %cst_41 {dimension_numbers = #tpu.dot_dimension_numbers<[1], [0], [0], [1], [0, 0, 1, 1], [], []>} : vector<2x128xf32>, vector<128x32xf32>, vector<2x32xf32> -> vector<2x32xf32>
    %67 = arith.mulf %60, %60 : vector<2x128x128xf32>
    %cst_42 = arith.constant dense<0.000000e+00> : vector<2x128xf32>
    %68 = vector.multi_reduction <add>, %67, %cst_42 [1] : vector<2x128x128xf32> to vector<2x128xf32>
    %cst_43 = arith.constant dense<0.000000e+00> : vector<2x32xf32>
    %69 = tpu.matmul %68, %63, %cst_43 {dimension_numbers = #tpu.dot_dimension_numbers<[1], [0], [0], [1], [0, 0, 1, 1], [], []>} : vector<2x128xf32>, vector<128x32xf32>, vector<2x32xf32> -> vector<2x32xf32>
    %cst_44 = arith.constant 3.906250e-03 : f32
    %70 = vector.broadcast %cst_44 : f32 to vector<2x32xf32>
    %71 = arith.mulf %66, %70 : vector<2x32xf32>
    %cst_45 = arith.constant 3.906250e-03 : f32
    %72 = vector.broadcast %cst_45 : f32 to vector<2x32xf32>
    %73 = arith.mulf %69, %72 : vector<2x32xf32>
    %74 = arith.mulf %71, %71 : vector<2x32xf32>
    %75 = arith.subf %73, %74 : vector<2x32xf32>
    %cst_46 = arith.constant 9.99999974E-6 : f32
    %76 = vector.broadcast %cst_46 : f32 to vector<2x32xf32>
    %77 = arith.addf %75, %76 : vector<2x32xf32>
    %78 = math.rsqrt %77 : vector<2x32xf32>
    %cst_47 = arith.constant dense<0.000000e+00> : vector<2x128xf32>
    %79 = tpu.matmul %71, %64, %cst_47 {dimension_numbers = #tpu.dot_dimension_numbers<[1], [0], [0], [1], [0, 0, 1, 1], [], []>} : vector<2x32xf32>, vector<32x128xf32>, vector<2x128xf32> -> vector<2x128xf32>
    %cst_48 = arith.constant dense<0.000000e+00> : vector<2x128xf32>
    %80 = tpu.matmul %78, %64, %cst_48 {dimension_numbers = #tpu.dot_dimension_numbers<[1], [0], [0], [1], [0, 0, 1, 1], [], []>} : vector<2x32xf32>, vector<32x128xf32>, vector<2x128xf32> -> vector<2x128xf32>
    %81 = vector.broadcast %61 : vector<1x128xf32> to vector<2x128xf32>
    %82 = arith.mulf %80, %81 : vector<2x128xf32>
    %83 = arith.mulf %79, %82 : vector<2x128xf32>
    %84 = vector.broadcast %62 : vector<1x128xf32> to vector<2x128xf32>
    %85 = arith.subf %84, %83 : vector<2x128xf32>
    %86 = vector.shape_cast %82 : vector<2x128xf32> to vector<2x1x128xf32>
    %87 = vector.shape_cast %85 : vector<2x128xf32> to vector<2x1x128xf32>
    %88 = vector.broadcast %86 : vector<2x1x128xf32> to vector<2x128x128xf32>
    %89 = arith.mulf %60, %88 : vector<2x128x128xf32>
    %90 = vector.broadcast %87 : vector<2x1x128xf32> to vector<2x128x128xf32>
    %91 = arith.addf %89, %90 : vector<2x128x128xf32>
    %92 = arith.negf %91 : vector<2x128x128xf32>
    %93 = math.exp %92 : vector<2x128x128xf32>
    %cst_49 = arith.constant 1.000000e+00 : f32
    %94 = vector.broadcast %cst_49 : f32 to vector<2x128x128xf32>
    %95 = arith.addf %94, %93 : vector<2x128x128xf32>
    %96 = arith.divf %94, %95 : vector<2x128x128xf32>
    %97 = arith.mulf %91, %96 : vector<2x128x128xf32>
    %98 = vector.shape_cast %97 : vector<2x128x128xf32> to vector<256x128xf32>
    %cst_50 = arith.constant 0.000000e+00 : f32
    %99 = vector.broadcast %cst_50 : f32 to vector<1x128xf32>
    %100 = vector.extract_strided_slice %98 {offsets = [0, 0], sizes = [255, 128], strides = [1, 1]} : vector<256x128xf32> to vector<255x128xf32>
    %101 = tpu.concatenate %99, %100 in 0 : vector<1x128xf32>, vector<255x128xf32> -> vector<256x128xf32>
    %102 = vector.broadcast %0 : vector<256x1xf32> to vector<256x128xf32>
    %103 = arith.mulf %101, %102 : vector<256x128xf32>
    %104 = vector.extract_strided_slice %98 {offsets = [1, 0], sizes = [255, 128], strides = [1, 1]} : vector<256x128xf32> to vector<255x128xf32>
    %105 = tpu.concatenate %104, %99 in 0 : vector<255x128xf32>, vector<1x128xf32> -> vector<256x128xf32>
    %106 = vector.broadcast %1 : vector<256x1xf32> to vector<256x128xf32>
    %107 = arith.mulf %105, %106 : vector<256x128xf32>
    %108 = tpu.concatenate %103, %98, %107 in 1 : vector<256x128xf32>, vector<256x128xf32>, vector<256x128xf32> -> vector<256x384xf32>
    %109 = arith.truncf %108 : vector<256x384xf32> to vector<256x384xbf16>
    %c0_51 = arith.constant 0 : index
    %c0_52 = arith.constant 0 : index
    %110 = vector.load %arg9[%c0_51, %c0_52] : memref<384x128xbf16, #tpu.memory_space<vmem>>, vector<384x128xbf16>
    %cst_53 = arith.constant dense<0.000000e+00> : vector<256x128xf32>
    %111 = tpu.matmul %109, %110, %cst_53 {dimension_numbers = #tpu.dot_dimension_numbers<[1], [0], [0], [1], [0, 0, 1, 1], [], []>} : vector<256x384xbf16>, vector<384x128xbf16>, vector<256x128xf32> -> vector<256x128xf32>
    %c0_54 = arith.constant 0 : index
    %c0_55 = arith.constant 0 : index
    %112 = vector.load %arg10[%c0_54, %c0_55] : memref<1x128xf32, #tpu.memory_space<vmem>>, vector<1x128xf32>
    %113 = vector.broadcast %112 : vector<1x128xf32> to vector<256x128xf32>
    %114 = arith.addf %111, %113 : vector<256x128xf32>
    %115 = vector.shape_cast %114 : vector<256x128xf32> to vector<2x128x128xf32>
    %116 = arith.addf %2, %115 : vector<2x128x128xf32>
    %c0_56 = arith.constant 0 : index
    %c0_57 = arith.constant 0 : index
    %c0_58 = arith.constant 0 : index
    %117 = vector.load %arg17[%c0_56, %c0_57, %c0_58] : memref<2x128x128xf32, #tpu.memory_space<vmem>>, vector<2x128x128xf32>
    tpu.vector_store %arg17[%c0_56, %c0_57, %c0_58], %116 {strides = array<i32>} : memref<2x128x128xf32, #tpu.memory_space<vmem>>, vector<2x128x128xf32>,
    return
  }
  func.func @transform_0(%arg0: i32) -> (i32, i32, i32) {
    %c0_i32 = arith.constant 0 : i32
    %c0_i32_0 = arith.constant 0 : i32
    %c0_i32_1 = arith.constant 0 : i32
    return %arg0, %c0_i32, %c0_i32_0 : i32, i32, i32
  }
  func.func @transform_1(%arg0: i32) -> (i32, i32, i32) {
    %c0_i32 = arith.constant 0 : i32
    %c0_i32_0 = arith.constant 0 : i32
    %c0_i32_1 = arith.constant 0 : i32
    return %arg0, %c0_i32, %c0_i32_0 : i32, i32, i32
  }
  func.func @transform_2(%arg0: i32) -> (i32, i32) {
    %c0_i32 = arith.constant 0 : i32
    %c0_i32_0 = arith.constant 0 : i32
    %c0_i32_1 = arith.constant 0 : i32
    return %c0_i32, %c0_i32_0 : i32, i32
  }
  func.func @transform_3(%arg0: i32) -> (i32, i32) {
    %c0_i32 = arith.constant 0 : i32
    %c0_i32_0 = arith.constant 0 : i32
    %c0_i32_1 = arith.constant 0 : i32
    return %c0_i32, %c0_i32_0 : i32, i32
  }
  func.func @transform_4(%arg0: i32) -> (i32, i32) {
    %c0_i32 = arith.constant 0 : i32
    %c0_i32_0 = arith.constant 0 : i32
    %c0_i32_1 = arith.constant 0 : i32
    return %c0_i32, %c0_i32_0 : i32, i32
  }
  func.func @transform_5(%arg0: i32) -> (i32, i32) {
    %c0_i32 = arith.constant 0 : i32
    %c0_i32_0 = arith.constant 0 : i32
    %c0_i32_1 = arith.constant 0 : i32
    return %c0_i32, %c0_i32_0 : i32, i32
  }
  func.func @transform_6(%arg0: i32) -> (i32, i32) {
    %c0_i32 = arith.constant 0 : i32
    %c0_i32_0 = arith.constant 0 : i32
    %c0_i32_1 = arith.constant 0 : i32
    return %c0_i32, %c0_i32_0 : i32, i32
  }
  func.func @transform_7(%arg0: i32) -> (i32, i32) {
    %c0_i32 = arith.constant 0 : i32
    %c0_i32_0 = arith.constant 0 : i32
    %c0_i32_1 = arith.constant 0 : i32
    return %c0_i32, %c0_i32_0 : i32, i32
  }
  func.func @transform_8(%arg0: i32) -> (i32, i32) {
    %c0_i32 = arith.constant 0 : i32
    %c0_i32_0 = arith.constant 0 : i32
    %c0_i32_1 = arith.constant 0 : i32
    return %c0_i32, %c0_i32_0 : i32, i32
  }
  func.func @transform_9(%arg0: i32) -> (i32, i32) {
    %c0_i32 = arith.constant 0 : i32
    %c0_i32_0 = arith.constant 0 : i32
    %c0_i32_1 = arith.constant 0 : i32
    return %c0_i32, %c0_i32_0 : i32, i32
  }
  func.func @transform_10(%arg0: i32) -> (i32, i32) {
    %c0_i32 = arith.constant 0 : i32
    %c0_i32_0 = arith.constant 0 : i32
    %c0_i32_1 = arith.constant 0 : i32
    return %c0_i32, %c0_i32_0 : i32, i32
  }
  func.func @transform_11(%arg0: i32) -> (i32, i32) {
    %c0_i32 = arith.constant 0 : i32
    %c0_i32_0 = arith.constant 0 : i32
    %c0_i32_1 = arith.constant 0 : i32
    return %c0_i32, %c0_i32_0 : i32, i32
  }
  func.func @transform_12(%arg0: i32) -> (i32, i32) {
    %c0_i32 = arith.constant 0 : i32
    %c0_i32_0 = arith.constant 0 : i32
    %c0_i32_1 = arith.constant 0 : i32
    return %c0_i32, %c0_i32_0 : i32, i32
  }
  func.func @transform_13(%arg0: i32) -> (i32, i32) {
    %c0_i32 = arith.constant 0 : i32
    %c0_i32_0 = arith.constant 0 : i32
    %c0_i32_1 = arith.constant 0 : i32
    return %c0_i32, %c0_i32_0 : i32, i32
  }
  func.func @transform_14(%arg0: i32) -> (i32, i32) {
    %c0_i32 = arith.constant 0 : i32
    %c0_i32_0 = arith.constant 0 : i32
    %c0_i32_1 = arith.constant 0 : i32
    return %c0_i32, %c0_i32_0 : i32, i32
  }
  func.func @transform_15(%arg0: i32) -> (i32, i32) {
    %c0_i32 = arith.constant 0 : i32
    %c0_i32_0 = arith.constant 0 : i32
    %c0_i32_1 = arith.constant 0 : i32
    return %c0_i32, %c0_i32_0 : i32, i32
  }
  func.func @transform_16(%arg0: i32) -> (i32, i32, i32) {
    %c0_i32 = arith.constant 0 : i32
    %c0_i32_0 = arith.constant 0 : i32
    %c0_i32_1 = arith.constant 0 : i32
    return %arg0, %c0_i32, %c0_i32_0 : i32, i32, i32
  }
}

</mosaic_0001>

<llo_original>
// kernel: tpu_custom_call.1
$region0: #{tpu_custom_call.1}
  #allocation0 [shape = 'u32[]', space=smem, size = 0x4, offset = 0x4, fixed_abs, tag = 'smem constant byte address 0x4 - core index']
  #allocation1 [shape = 'u32[144,128]{1,0:T(1,128)}', space=vmem, size = 0x12000, scoped, tag = 'internal scratch']
  %s0 = inlined_call_operand.vmem [shape: f32[2,128,128], index: 0, kind: input, shape index: {}]
  %s1 = inlined_call_operand.vmem [shape: f32[2,1,128], index: 1, kind: input, shape index: {}]
  %s2 = inlined_call_operand.vmem [shape: f32[1,128], index: 2, kind: input, shape index: {}]
  %s3 = inlined_call_operand.vmem [shape: f32[1,128], index: 3, kind: input, shape index: {}]
  %s4 = inlined_call_operand.vmem [shape: bf16[384,128], index: 4, kind: input, shape index: {}]
  %s5 = inlined_call_operand.vmem [shape: f32[1,128], index: 5, kind: input, shape index: {}]
  %s6 = inlined_call_operand.vmem [shape: f32[1,128], index: 6, kind: input, shape index: {}]
  %s7 = inlined_call_operand.vmem [shape: f32[1,128], index: 7, kind: input, shape index: {}]
  %s8 = inlined_call_operand.vmem [shape: bf16[384,128], index: 8, kind: input, shape index: {}]
  %s9 = inlined_call_operand.vmem [shape: f32[1,128], index: 9, kind: input, shape index: {}]
  %s10 = inlined_call_operand.vmem [shape: f32[128,32], index: 10, kind: input, shape index: {}]
  %s11 = inlined_call_operand.vmem [shape: f32[32,128], index: 11, kind: input, shape index: {}]
  %s12 = inlined_call_operand.vmem [shape: f32[128,32], index: 12, kind: input, shape index: {}]
  %s13 = inlined_call_operand.vmem [shape: f32[32,128], index: 13, kind: input, shape index: {}]
  %s14 = inlined_call_operand.vmem [shape: f32[256,1], index: 14, kind: input, shape index: {}]
  %s15 = inlined_call_operand.vmem [shape: f32[256,1], index: 15, kind: input, shape index: {}]
  %s16 = inlined_call_operand.hbm [shape: f32[2,128,128], index: 16, kind: output, shape index: {}]
  %s17 = sld [smem:[#allocation0]]
  $region74: #{tpu_custom_call.1} parent=0
    _
  %s19 = ssub.s32 1, %s17
  %s20 = scalar_select 0, %s19, %s17
  $region1: #{tpu_custom_call.1} parent=0
    #allocation2 [shape = 'u8[131072]{0}', space=vmem, size = 0x20000, scoped, tag = 'output window, operand 0, single buffered']
    #allocation3 [shape = 's32[1]{0}', space=sflag, size = 0x4, scoped, tag = 'scoped memory for tpu_custom_call.1']
    %21 = vsyncpa [#allocation3], 0
    // Predicated region
    $region2: #{tpu_custom_call.1} parent=1 // pred_check
      _
    $region3: #{tpu_custom_call.1} parent=1 // pred_check_branch
      %23 = sbr.rel (0) target = $region5
    $region4: #{tpu_custom_call.1} parent=1 // pred_region
      _
    $region5: #{tpu_custom_call.1} parent=1 // pred_fallthru
      _
    // Predicated region
    $region6: #{tpu_custom_call.1} parent=1 // pred_check
      _
    $region7: #{tpu_custom_call.1} parent=1 // pred_check_branch
      %25 = sbr.rel (0) target = $region9
    $region8: #{tpu_custom_call.1} parent=1 // pred_region
      _
    $region9: #{tpu_custom_call.1} parent=1 // pred_fallthru
      _
    // Predicated region
    $region10: #{tpu_custom_call.1} parent=1 // pred_check
      _
    $region11: #{tpu_custom_call.1} parent=1 // pred_check_branch
      %27 = sbr.rel (0) target = $region13
    $region12: #{tpu_custom_call.1} parent=1 // pred_region
      _
    $region13: #{tpu_custom_call.1} parent=1 // pred_fallthru
      _
    // Predicated region
    $region14: #{tpu_custom_call.1} parent=1 // pred_check
      _
    $region15: #{tpu_custom_call.1} parent=1 // pred_check_branch
      %29 = sbr.rel (0) target = $region17
    $region16: #{tpu_custom_call.1} parent=1 // pred_region
      _
    $region17: #{tpu_custom_call.1} parent=1 // pred_fallthru
      _
    // Predicated region
    $region18: #{tpu_custom_call.1} parent=1 // pred_check
      _
    $region19: #{tpu_custom_call.1} parent=1 // pred_check_branch
      %31 = sbr.rel (0) target = $region21
    $region20: #{tpu_custom_call.1} parent=1 // pred_region
      _
    $region21: #{tpu_custom_call.1} parent=1 // pred_fallthru
      _
    // Predicated region
    $region22: #{tpu_custom_call.1} parent=1 // pred_check
      _
    $region23: #{tpu_custom_call.1} parent=1 // pred_check_branch
      %33 = sbr.rel (0) target = $region25
    $region24: #{tpu_custom_call.1} parent=1 // pred_region
      _
    $region25: #{tpu_custom_call.1} parent=1 // pred_fallthru
      _
    // Predicated region
    $region26: #{tpu_custom_call.1} parent=1 // pred_check
      _
    $region27: #{tpu_custom_call.1} parent=1 // pred_check_branch
      %35 = sbr.rel (0) target = $region29
    $region28: #{tpu_custom_call.1} parent=1 // pred_region
      _
    $region29: #{tpu_custom_call.1} parent=1 // pred_fallthru
      _
    // Predicated region
    $region30: #{tpu_custom_call.1} parent=1 // pred_check
      _
    $region31: #{tpu_custom_call.1} parent=1 // pred_check_branch
      %37 = sbr.rel (0) target = $region33
    $region32: #{tpu_custom_call.1} parent=1 // pred_region
      _
    $region33: #{tpu_custom_call.1} parent=1 // pred_fallthru
      _
    // Predicated region
    $region34: #{tpu_custom_call.1} parent=1 // pred_check
      _
    $region35: #{tpu_custom_call.1} parent=1 // pred_check_branch
      %39 = sbr.rel (0) target = $region37
    $region36: #{tpu_custom_call.1} parent=1 // pred_region
      _
    $region37: #{tpu_custom_call.1} parent=1 // pred_fallthru
      _
    // Predicated region
    $region38: #{tpu_custom_call.1} parent=1 // pred_check
      _
    $region39: #{tpu_custom_call.1} parent=1 // pred_check_branch
      %41 = sbr.rel (0) target = $region41
    $region40: #{tpu_custom_call.1} parent=1 // pred_region
      _
    $region41: #{tpu_custom_call.1} parent=1 // pred_fallthru
      _
    // Predicated region
    $region42: #{tpu_custom_call.1} parent=1 // pred_check
      _
    $region43: #{tpu_custom_call.1} parent=1 // pred_check_branch
      %43 = sbr.rel (0) target = $region45
    $region44: #{tpu_custom_call.1} parent=1 // pred_region
      _
    $region45: #{tpu_custom_call.1} parent=1 // pred_fallthru
      _
    // Predicated region
    $region46: #{tpu_custom_call.1} parent=1 // pred_check
      _
    $region47: #{tpu_custom_call.1} parent=1 // pred_check_branch
      %45 = sbr.rel (0) target = $region49
    $region48: #{tpu_custom_call.1} parent=1 // pred_region
      _
    $region49: #{tpu_custom_call.1} parent=1 // pred_fallthru
      _
    // Predicated region
    $region50: #{tpu_custom_call.1} parent=1 // pred_check
      _
    $region51: #{tpu_custom_call.1} parent=1 // pred_check_branch
      %47 = sbr.rel (0) target = $region53
    $region52: #{tpu_custom_call.1} parent=1 // pred_region
      _
    $region53: #{tpu_custom_call.1} parent=1 // pred_fallthru
      _
    // Predicated region
    $region54: #{tpu_custom_call.1} parent=1 // pred_check
      _
    $region55: #{tpu_custom_call.1} parent=1 // pred_check_branch
      %49 = sbr.rel (0) target = $region57
    $region56: #{tpu_custom_call.1} parent=1 // pred_region
      _
    $region57: #{tpu_custom_call.1} parent=1 // pred_fallthru
      _
    // Predicated region
    $region58: #{tpu_custom_call.1} parent=1 // pred_check
      _
    $region59: #{tpu_custom_call.1} parent=1 // pred_check_branch
      %51 = sbr.rel (0) target = $region61
    $region60: #{tpu_custom_call.1} parent=1 // pred_region
      _
    $region61: #{tpu_custom_call.1} parent=1 // pred_fallthru
      _
    // Predicated region
    $region62: #{tpu_custom_call.1} parent=1 // pred_check
      _
    $region63: #{tpu_custom_call.1} parent=1 // pred_check_branch
      %53 = sbr.rel (0) target = $region65
    $region64: #{tpu_custom_call.1} parent=1 // pred_region
      _
    $region65: #{tpu_custom_call.1} parent=1 // pred_fallthru
      _
    %v55 = vld [vmem:[%s14] sm:$0xff]
    %v56 = vld [vmem:[%s14 + $0x8] sm:$0xff]
    %v57 = vld [vmem:[%s14 + $0x10] sm:$0xff]
    %v58 = vld [vmem:[%s14 + $0x18] sm:$0xff]
    %v59 = vld [vmem:[%s14 + $0x20] sm:$0xff]
    %v60 = vld [vmem:[%s14 + $0x28] sm:$0xff]
    %v61 = vld [vmem:[%s14 + $0x30] sm:$0xff]
    %v62 = vld [vmem:[%s14 + $0x38] sm:$0xff]
    %v63 = vld [vmem:[%s14 + $0x40] sm:$0xff]
    %v64 = vld [vmem:[%s14 + $0x48] sm:$0xff]
    %v65 = vld [vmem:[%s14 + $0x50] sm:$0xff]
    %v66 = vld [vmem:[%s14 + $0x58] sm:$0xff]
    %v67 = vld [vmem:[%s14 + $0x60] sm:$0xff]
    %v68 = vld [vmem:[%s14 + $0x68] sm:$0xff]
    %v69 = vld [vmem:[%s14 + $0x70] sm:$0xff]
    %v70 = vld [vmem:[%s14 + $0x78] sm:$0xff]
    %v71 = vld [vmem:[%s14 + $0x80] sm:$0xff]
    %v72 = vld [vmem:[%s14 + $0x88] sm:$0xff]
    %v73 = vld [vmem:[%s14 + $0x90] sm:$0xff]
    %v74 = vld [vmem:[%s14 + $0x98] sm:$0xff]
    %v75 = vld [vmem:[%s14 + $0xa0] sm:$0xff]
    %v76 = vld [vmem:[%s14 + $0xa8] sm:$0xff]
    %v77 = vld [vmem:[%s14 + $0xb0] sm:$0xff]
    %v78 = vld [vmem:[%s14 + $0xb8] sm:$0xff]
    %v79 = vld [vmem:[%s14 + $0xc0] sm:$0xff]
    %v80 = vld [vmem:[%s14 + $0xc8] sm:$0xff]
    %v81 = vld [vmem:[%s14 + $0xd0] sm:$0xff]
    %v82 = vld [vmem:[%s14 + $0xd8] sm:$0xff]
    %v83 = vld [vmem:[%s14 + $0xe0] sm:$0xff]
    %v84 = vld [vmem:[%s14 + $0xe8] sm:$0xff]
    %v85 = vld [vmem:[%s14 + $0xf0] sm:$0xff]
    %v86 = vld [vmem:[%s14 + $0xf8] sm:$0xff]
    %v87 = vld [vmem:[%s15] sm:$0xff]
    %v88 = vld [vmem:[%s15 + $0x8] sm:$0xff]
    %v89 = vld [vmem:[%s15 + $0x10] sm:$0xff]
    %v90 = vld [vmem:[%s15 + $0x18] sm:$0xff]
    %v91 = vld [vmem:[%s15 + $0x20] sm:$0xff]
    %v92 = vld [vmem:[%s15 + $0x28] sm:$0xff]
    %v93 = vld [vmem:[%s15 + $0x30] sm:$0xff]
    %v94 = vld [vmem:[%s15 + $0x38] sm:$0xff]
    %v95 = vld [vmem:[%s15 + $0x40] sm:$0xff]
    %v96 = vld [vmem:[%s15 + $0x48] sm:$0xff]
    %v97 = vld [vmem:[%s15 + $0x50] sm:$0xff]
    %v98 = vld [vmem:[%s15 + $0x58] sm:$0xff]
    %v99 = vld [vmem:[%s15 + $0x60] sm:$0xff]
    %v100 = vld [vmem:[%s15 + $0x68] sm:$0xff]
    %v101 = vld [vmem:[%s15 + $0x70] sm:$0xff]
    %v102 = vld [vmem:[%s15 + $0x78] sm:$0xff]
    %v103 = vld [vmem:[%s15 + $0x80] sm:$0xff]
    %v104 = vld [vmem:[%s15 + $0x88] sm:$0xff]
    %v105 = vld [vmem:[%s15 + $0x90] sm:$0xff]
    %v106 = vld [vmem:[%s15 + $0x98] sm:$0xff]
    %v107 = vld [vmem:[%s15 + $0xa0] sm:$0xff]
    %v108 = vld [vmem:[%s15 + $0xa8] sm:$0xff]
    %v109 = vld [vmem:[%s15 + $0xb0] sm:$0xff]
    %v110 = vld [vmem:[%s15 + $0xb8] sm:$0xff]
    %v111 = vld [vmem:[%s15 + $0xc0] sm:$0xff]
    %v112 = vld [vmem:[%s15 + $0xc8] sm:$0xff]
    %v113 = vld [vmem:[%s15 + $0xd0] sm:$0xff]
    %v114 = vld [vmem:[%s15 + $0xd8] sm:$0xff]
    %v115 = vld [vmem:[%s15 + $0xe0] sm:$0xff]
    %v116 = vld [vmem:[%s15 + $0xe8] sm:$0xff]
    %v117 = vld [vmem:[%s15 + $0xf0] sm:$0xff]
    %v118 = vld [vmem:[%s15 + $0xf8] sm:$0xff]
    %v119 = vld [vmem:[%s0] sm:$0xff]
    %v120 = vld [vmem:[%s0 + $0x8] sm:$0xff]
    %v121 = vld [vmem:[%s0 + $0x10] sm:$0xff]
    %v122 = vld [vmem:[%s0 + $0x18] sm:$0xff]
    %v123 = vld [vmem:[%s0 + $0x20] sm:$0xff]
    %v124 = vld [vmem:[%s0 + $0x28] sm:$0xff]
    %v125 = vld [vmem:[%s0 + $0x30] sm:$0xff]
    %v126 = vld [vmem:[%s0 + $0x38] sm:$0xff]
    %v127 = vld [vmem:[%s0 + $0x40] sm:$0xff]
    %v128 = vld [vmem:[%s0 + $0x48] sm:$0xff]
    %v129 = vld [vmem:[%s0 + $0x50] sm:$0xff]
    %v130 = vld [vmem:[%s0 + $0x58] sm:$0xff]
    %v131 = vld [vmem:[%s0 + $0x60] sm:$0xff]
    %v132 = vld [vmem:[%s0 + $0x68] sm:$0xff]
    %v133 = vld [vmem:[%s0 + $0x70] sm:$0xff]
    %v134 = vld [vmem:[%s0 + $0x78] sm:$0xff]
    %v135 = vld [vmem:[%s0 + $0x80] sm:$0xff]
    %v136 = vld [vmem:[%s0 + $0x88] sm:$0xff]
    %v137 = vld [vmem:[%s0 + $0x90] sm:$0xff]
    %v138 = vld [vmem:[%s0 + $0x98] sm:$0xff]
    %v139 = vld [vmem:[%s0 + $0xa0] sm:$0xff]
    %v140 = vld [vmem:[%s0 + $0xa8] sm:$0xff]
    %v141 = vld [vmem:[%s0 + $0xb0] sm:$0xff]
    %v142 = vld [vmem:[%s0 + $0xb8] sm:$0xff]
    %v143 = vld [vmem:[%s0 + $0xc0] sm:$0xff]
    %v144 = vld [vmem:[%s0 + $0xc8] sm:$0xff]
    %v145 = vld [vmem:[%s0 + $0xd0] sm:$0xff]
    %v146 = vld [vmem:[%s0 + $0xd8] sm:$0xff]
    %v147 = vld [vmem:[%s0 + $0xe0] sm:$0xff]
    %v148 = vld [vmem:[%s0 + $0xe8] sm:$0xff]
    %v149 = vld [vmem:[%s0 + $0xf0] sm:$0xff]
    %v150 = vld [vmem:[%s0 + $0xf8] sm:$0xff]
    %v151 = vld [vmem:[%s2] sm:$0x1]
    %v152 = vld [vmem:[%s3] sm:$0x1]
    %v153 = vld [vmem:[%s10] sm:$0xff]
    %v154 = vld [vmem:[%s10 + $0x8] sm:$0xff]
    %v155 = vld [vmem:[%s10 + $0x10] sm:$0xff]
    %v156 = vld [vmem:[%s10 + $0x18] sm:$0xff]
    %v157 = vld [vmem:[%s10 + $0x20] sm:$0xff]
    %v158 = vld [vmem:[%s10 + $0x28] sm:$0xff]
    %v159 = vld [vmem:[%s10 + $0x30] sm:$0xff]
    %v160 = vld [vmem:[%s10 + $0x38] sm:$0xff]
    %v161 = vld [vmem:[%s10 + $0x40] sm:$0xff]
    %v162 = vld [vmem:[%s10 + $0x48] sm:$0xff]
    %v163 = vld [vmem:[%s10 + $0x50] sm:$0xff]
    %v164 = vld [vmem:[%s10 + $0x58] sm:$0xff]
    %v165 = vld [vmem:[%s10 + $0x60] sm:$0xff]
    %v166 = vld [vmem:[%s10 + $0x68] sm:$0xff]
    %v167 = vld [vmem:[%s10 + $0x70] sm:$0xff]
    %v168 = vld [vmem:[%s10 + $0x78] sm:$0xff]
    %v169 = vld [vmem:[%s11] sm:$0xff]
    %v170 = vld [vmem:[%s11 + $0x8] sm:$0xff]
    %v171 = vld [vmem:[%s11 + $0x10] sm:$0xff]
    %v172 = vld [vmem:[%s11 + $0x18] sm:$0xff]
    %v173 = vadd.f32 %v119, %v120
    %v174 = vadd.f32 %v173, %v121
    %v175 = vadd.f32 %v174, %v122
    %v176 = vadd.f32 %v175, %v123
    %v177 = vadd.f32 %v176, %v124
    %v178 = vadd.f32 %v177, %v125
    %v179 = vadd.f32 %v178, %v126
    %v180 = vadd.f32 %v179, %v127
    %v181 = vadd.f32 %v180, %v128
    %v182 = vadd.f32 %v181, %v129
    %v183 = vadd.f32 %v182, %v130
    %v184 = vadd.f32 %v183, %v131
    %v185 = vadd.f32 %v184, %v132
    %v186 = vadd.f32 %v185, %v133
    %v187 = vadd.f32 %v186, %v134
    %v188 = vrot.slane %v187, 4
    %v189 = vadd.f32 %v187, %v188
    %v190 = vrot.slane %v189, 2
    %v191 = vadd.f32 %v189, %v190
    %v192 = vrot.slane %v191, 1
    %v193 = vadd.f32 %v191, %v192
    %v194 = vadd.f32 %v135, %v136
    %v195 = vadd.f32 %v194, %v137
    %v196 = vadd.f32 %v195, %v138
    %v197 = vadd.f32 %v196, %v139
    %v198 = vadd.f32 %v197, %v140
    %v199 = vadd.f32 %v198, %v141
    %v200 = vadd.f32 %v199, %v142
    %v201 = vadd.f32 %v200, %v143
    %v202 = vadd.f32 %v201, %v144
    %v203 = vadd.f32 %v202, %v145
    %v204 = vadd.f32 %v203, %v146
    %v205 = vadd.f32 %v204, %v147
    %v206 = vadd.f32 %v205, %v148
    %v207 = vadd.f32 %v206, %v149
    %v208 = vadd.f32 %v207, %v150
    %v209 = vrot.slane %v208, 4
    %v210 = vadd.f32 %v208, %v209
    %v211 = vrot.slane %v210, 2
    %v212 = vadd.f32 %v210, %v211
    %v213 = vrot.slane %v212, 1
    %v214 = vadd.f32 %v212, %v213
    %vm217 = vcmask 1041409
    %v218 = vsel %vm217, %v214, %v193
    %220 = vmatprep.subr.mxu0 0.0
    %221 = vmatpush1.msra.mxu0 %v153
    %222 = vmatprep.subr.mxu0 0.0
    %223 = vmatpush1.msra.mxu0 %v154
    %224 = vmatprep.subr.mxu0 0.0
    %225 = vmatpush1.msra.mxu0 %v155
    %226 = vmatprep.subr.mxu0 0.0
    %227 = vmatpush1.msra.mxu0 %v156
    %228 = vmatprep.subr.mxu0 0.0
    %229 = vmatpush1.msra.mxu0 %v157
    %230 = vmatprep.subr.mxu0 0.0
    %231 = vmatpush1.msra.mxu0 %v158
    %232 = vmatprep.subr.mxu0 0.0
    %233 = vmatpush1.msra.mxu0 %v159
    %234 = vmatprep.subr.mxu0 0.0
    %235 = vmatpush1.msra.mxu0 %v160
    %236 = vmatprep.subr.mxu0 0.0
    %237 = vmatpush1.msra.mxu0 %v161
    %238 = vmatprep.subr.mxu0 0.0
    %239 = vmatpush1.msra.mxu0 %v162
    %240 = vmatprep.subr.mxu0 0.0
    %241 = vmatpush1.msra.mxu0 %v163
    %242 = vmatprep.subr.mxu0 0.0
    %243 = vmatpush1.msra.mxu0 %v164
    %244 = vmatprep.subr.mxu0 0.0
    %245 = vmatpush1.msra.mxu0 %v165
    %246 = vmatprep.subr.mxu0 0.0
    %247 = vmatpush1.msra.mxu0 %v166
    %248 = vmatprep.subr.mxu0 0.0
    %249 = vmatpush1.msra.mxu0 %v167
    %250 = vmatprep.subr.mxu0 0.0
    %251 = vmatpush1.msra.mxu0 %v168
    %252 = vmatprep.subr.mxu0 0.0
    %253 = vmatpush1.msra.mxu0 0.0
    %254 = vmatprep.subr.mxu0 0.0
    %255 = vmatpush1.msra.mxu0 0.0
    %256 = vmatprep.subr.mxu0 0.0
    %257 = vmatpush1.msra.mxu0 0.0
    %258 = vmatprep.subr.mxu0 0.0
    %259 = vmatpush1.msra.mxu0 0.0
    %260 = vmatprep.subr.mxu0 0.0
    %261 = vmatpush1.msra.mxu0 0.0
    %262 = vmatprep.subr.mxu0 0.0
    %263 = vmatpush1.msra.mxu0 0.0
    %264 = vmatprep.subr.mxu0 0.0
    %265 = vmatpush1.msra.mxu0 0.0
    %266 = vmatprep.subr.mxu0 0.0
    %267 = vmatpush1.msra.mxu0 0.0
    %268 = vmatprep.subr.mxu0 0.0
    %269 = vmatpush1.msra.mxu0 0.0
    %270 = vmatprep.subr.mxu0 0.0
    %271 = vmatpush1.msra.mxu0 0.0
    %272 = vmatprep.subr.mxu0 0.0
    %273 = vmatpush1.msra.mxu0 0.0
    %274 = vmatprep.subr.mxu0 0.0
    %275 = vmatpush1.msra.mxu0 0.0
    %276 = vmatprep.subr.mxu0 0.0
    %277 = vmatpush1.msra.mxu0 0.0
    %278 = vmatprep.subr.mxu0 0.0
    %279 = vmatpush1.msra.mxu0 0.0
    %280 = vmatprep.subr.mxu0 0.0
    %281 = vmatpush1.msra.mxu0 0.0
    %282 = vmatprep.subr.mxu0 0.0
    %283 = vmatpush1.msra.mxu0 0.0
    %284 = vmatprep.mubr.f32.mxu0 0.0
    %285 = vmatmul.mubr.f32.gmra.mrb[0].mxu0 %v218
    %v286 = vpop.f32.mrb[0].mxu0
    %v287 = vadd.f32 0.0, %v286
    %v288 = vpop.f32.mrb[0].mxu0
    %289 = vdwg.mxu0
    %v290 = vmul.f32 %v119, %v119
    %v291 = vmul.f32 %v120, %v120
    %v292 = vmul.f32 %v121, %v121
    %v293 = vmul.f32 %v122, %v122
    %v294 = vmul.f32 %v123, %v123
    %v295 = vmul.f32 %v124, %v124
    %v296 = vmul.f32 %v125, %v125
    %v297 = vmul.f32 %v126, %v126
    %v298 = vmul.f32 %v127, %v127
    %v299 = vmul.f32 %v128, %v128
    %v300 = vmul.f32 %v129, %v129
    %v301 = vmul.f32 %v130, %v130
    %v302 = vmul.f32 %v131, %v131
    %v303 = vmul.f32 %v132, %v132
    %v304 = vmul.f32 %v133, %v133
    %v305 = vmul.f32 %v134, %v134
    %v306 = vmul.f32 %v135, %v135
    %v307 = vmul.f32 %v136, %v136
    %v308 = vmul.f32 %v137, %v137
    %v309 = vmul.f32 %v138, %v138
    %v310 = vmul.f32 %v139, %v139
    %v311 = vmul.f32 %v140, %v140
    %v312 = vmul.f32 %v141, %v141
    %v313 = vmul.f32 %v142, %v142
    %v314 = vmul.f32 %v143, %v143
    %v315 = vmul.f32 %v144, %v144
    %v316 = vmul.f32 %v145, %v145
    %v317 = vmul.f32 %v146, %v146
    %v318 = vmul.f32 %v147, %v147
    %v319 = vmul.f32 %v148, %v148
    %v320 = vmul.f32 %v149, %v149
    %v321 = vmul.f32 %v150, %v150
    %v322 = vadd.f32 %v290, %v291
    %v323 = vadd.f32 %v322, %v292
    %v324 = vadd.f32 %v323, %v293
    %v325 = vadd.f32 %v324, %v294
    %v326 = vadd.f32 %v325, %v295
    %v327 = vadd.f32 %v326, %v296
    %v328 = vadd.f32 %v327, %v297
    %v329 = vadd.f32 %v328, %v298
    %v330 = vadd.f32 %v329, %v299
    %v331 = vadd.f32 %v330, %v300
    %v332 = vadd.f32 %v331, %v301
    %v333 = vadd.f32 %v332, %v302
    %v334 = vadd.f32 %v333, %v303
    %v335 = vadd.f32 %v334, %v304
    %v336 = vadd.f32 %v335, %v305
    %v337 = vrot.slane %v336, 4
    %v338 = vadd.f32 %v336, %v337
    %v339 = vrot.slane %v338, 2
    %v340 = vadd.f32 %v338, %v339
    %v341 = vrot.slane %v340, 1
    %v342 = vadd.f32 %v340, %v341
    %v343 = vadd.f32 %v306, %v307
    %v344 = vadd.f32 %v343, %v308
    %v345 = vadd.f32 %v344, %v309
    %v346 = vadd.f32 %v345, %v310
    %v347 = vadd.f32 %v346, %v311
    %v348 = vadd.f32 %v347, %v312
    %v349 = vadd.f32 %v348, %v313
    %v350 = vadd.f32 %v349, %v314
    %v351 = vadd.f32 %v350, %v315
    %v352 = vadd.f32 %v351, %v316
    %v353 = vadd.f32 %v352, %v317
    %v354 = vadd.f32 %v353, %v318
    %v355 = vadd.f32 %v354, %v319
    %v356 = vadd.f32 %v355, %v320
    %v357 = vadd.f32 %v356, %v321
    %v358 = vrot.slane %v357, 4
    %v359 = vadd.f32 %v357, %v358
    %v360 = vrot.slane %v359, 2
    %v361 = vadd.f32 %v359, %v360
    %v362 = vrot.slane %v361, 1
    %v363 = vadd.f32 %v361, %v362
    %v366 = vsel %vm217, %v363, %v342
    %368 = vmatprep.subr.mxu0 0.0
    %369 = vmatpush1.msra.mxu0 %v153
    %370 = vmatprep.subr.mxu0 0.0
    %371 = vmatpush1.msra.mxu0 %v154
    %372 = vmatprep.subr.mxu0 0.0
    %373 = vmatpush1.msra.mxu0 %v155
    %374 = vmatprep.subr.mxu0 0.0
    %375 = vmatpush1.msra.mxu0 %v156
    %376 = vmatprep.subr.mxu0 0.0
    %377 = vmatpush1.msra.mxu0 %v157
    %378 = vmatprep.subr.mxu0 0.0
    %379 = vmatpush1.msra.mxu0 %v158
    %380 = vmatprep.subr.mxu0 0.0
    %381 = vmatpush1.msra.mxu0 %v159
    %382 = vmatprep.subr.mxu0 0.0
    %383 = vmatpush1.msra.mxu0 %v160
    %384 = vmatprep.subr.mxu0 0.0
    %385 = vmatpush1.msra.mxu0 %v161
    %386 = vmatprep.subr.mxu0 0.0
    %387 = vmatpush1.msra.mxu0 %v162
    %388 = vmatprep.subr.mxu0 0.0
    %389 = vmatpush1.msra.mxu0 %v163
    %390 = vmatprep.subr.mxu0 0.0
    %391 = vmatpush1.msra.mxu0 %v164
    %392 = vmatprep.subr.mxu0 0.0
    %393 = vmatpush1.msra.mxu0 %v165
    %394 = vmatprep.subr.mxu0 0.0
    %395 = vmatpush1.msra.mxu0 %v166
    %396 = vmatprep.subr.mxu0 0.0
    %397 = vmatpush1.msra.mxu0 %v167
    %398 = vmatprep.subr.mxu0 0.0
    %399 = vmatpush1.msra.mxu0 %v168
    %400 = vmatprep.subr.mxu0 0.0
    %401 = vmatpush1.msra.mxu0 0.0
    %402 = vmatprep.subr.mxu0 0.0
    %403 = vmatpush1.msra.mxu0 0.0
    %404 = vmatprep.subr.mxu0 0.0
    %405 = vmatpush1.msra.mxu0 0.0
    %406 = vmatprep.subr.mxu0 0.0
    %407 = vmatpush1.msra.mxu0 0.0
    %408 = vmatprep.subr.mxu0 0.0
    %409 = vmatpush1.msra.mxu0 0.0
    %410 = vmatprep.subr.mxu0 0.0
    %411 = vmatpush1.msra.mxu0 0.0
    %412 = vmatprep.subr.mxu0 0.0
    %413 = vmatpush1.msra.mxu0 0.0
    %414 = vmatprep.subr.mxu0 0.0
    %415 = vmatpush1.msra.mxu0 0.0
    %416 = vmatprep.subr.mxu0 0.0
    %417 = vmatpush1.msra.mxu0 0.0
    %418 = vmatprep.subr.mxu0 0.0
    %419 = vmatpush1.msra.mxu0 0.0
    %420 = vmatprep.subr.mxu0 0.0
    %421 = vmatpush1.msra.mxu0 0.0
    %422 = vmatprep.subr.mxu0 0.0
    %423 = vmatpush1.msra.mxu0 0.0
    %424 = vmatprep.subr.mxu0 0.0
    %425 = vmatpush1.msra.mxu0 0.0
    %426 = vmatprep.subr.mxu0 0.0
    %427 = vmatpush1.msra.mxu0 0.0
    %428 = vmatprep.subr.mxu0 0.0
    %429 = vmatpush1.msra.mxu0 0.0
    %430 = vmatprep.subr.mxu0 0.0
    %431 = vmatpush1.msra.mxu0 0.0
    %432 = vmatprep.mubr.f32.mxu0 0.0
    %433 = vmatmul.mubr.f32.gmra.mrb[0].mxu0 %v366
    %v434 = vpop.f32.mrb[0].mxu0
    %v435 = vadd.f32 0.0, %v434
    %v436 = vpop.f32.mrb[0].mxu0
    %437 = vdwg.mxu0
    %v438 = vmul.f32 %v287, 0.00390625
    %v439 = vmul.f32 %v435, 0.00390625
    %v440 = vmul.f32 %v438, %v438
    %v441 = vsub.f32 %v439, %v440
    %v442 = vadd.f32 %v441, 1e-05
    %v443 = vrsqrt.pop %v442
    %vm444 = vcmask 261120
    %v446 = vsel %vm444, %v438, 0
    %448 = vmatprep.subr.mxu0 0.0
    %449 = vmatpush1.msra.mxu0 %v169
    %450 = vmatprep.subr.mxu0 0.0
    %451 = vmatpush1.msra.mxu0 %v170
    %452 = vmatprep.subr.mxu0 0.0
    %453 = vmatpush1.msra.mxu0 %v171
    %454 = vmatprep.subr.mxu0 0.0
    %455 = vmatpush1.msra.mxu0 %v172
    %456 = vmatprep.subr.mxu0 0.0
    %457 = vmatpush1.msra.mxu0 0.0
    %458 = vmatprep.subr.mxu0 0.0
    %459 = vmatpush1.msra.mxu0 0.0
    %460 = vmatprep.subr.mxu0 0.0
    %461 = vmatpush1.msra.mxu0 0.0
    %462 = vmatprep.subr.mxu0 0.0
    %463 = vmatpush1.msra.mxu0 0.0
    %464 = vmatprep.subr.mxu0 0.0
    %465 = vmatpush1.msra.mxu0 0.0
    %466 = vmatprep.subr.mxu0 0.0
    %467 = vmatpush1.msra.mxu0 0.0
    %468 = vmatprep.subr.mxu0 0.0
    %469 = vmatpush1.msra.mxu0 0.0
    %470 = vmatprep.subr.mxu0 0.0
    %471 = vmatpush1.msra.mxu0 0.0
    %472 = vmatprep.subr.mxu0 0.0
    %473 = vmatpush1.msra.mxu0 0.0
    %474 = vmatprep.subr.mxu0 0.0
    %475 = vmatpush1.msra.mxu0 0.0
    %476 = vmatprep.subr.mxu0 0.0
    %477 = vmatpush1.msra.mxu0 0.0
    %478 = vmatprep.subr.mxu0 0.0
    %479 = vmatpush1.msra.mxu0 0.0
    %480 = vmatprep.subr.mxu0 0.0
    %481 = vmatpush1.msra.mxu0 0.0
    %482 = vmatprep.subr.mxu0 0.0
    %483 = vmatpush1.msra.mxu0 0.0
    %484 = vmatprep.subr.mxu0 0.0
    %485 = vmatpush1.msra.mxu0 0.0
    %486 = vmatprep.subr.mxu0 0.0
    %487 = vmatpush1.msra.mxu0 0.0
    %488 = vmatprep.subr.mxu0 0.0
    %489 = vmatpush1.msra.mxu0 0.0
    %490 = vmatprep.subr.mxu0 0.0
    %491 = vmatpush1.msra.mxu0 0.0
    %492 = vmatprep.subr.mxu0 0.0
    %493 = vmatpush1.msra.mxu0 0.0
    %494 = vmatprep.subr.mxu0 0.0
    %495 = vmatpush1.msra.mxu0 0.0
    %496 = vmatprep.subr.mxu0 0.0
    %497 = vmatpush1.msra.mxu0 0.0
    %498 = vmatprep.subr.mxu0 0.0
    %499 = vmatpush1.msra.mxu0 0.0
    %500 = vmatprep.subr.mxu0 0.0
    %501 = vmatpush1.msra.mxu0 0.0
    %502 = vmatprep.subr.mxu0 0.0
    %503 = vmatpush1.msra.mxu0 0.0
    %504 = vmatprep.subr.mxu0 0.0
    %505 = vmatpush1.msra.mxu0 0.0
    %506 = vmatprep.subr.mxu0 0.0
    %507 = vmatpush1.msra.mxu0 0.0
    %508 = vmatprep.subr.mxu0 0.0
    %509 = vmatpush1.msra.mxu0 0.0
    %510 = vmatprep.subr.mxu0 0.0
    %511 = vmatpush1.msra.mxu0 0.0
    %512 = vmatprep.mubr.f32.mxu0 0.0
    %513 = vmatmul.mubr.f32.gmra.mrb[0].mxu0 %v446
    %v514 = vpop.f32.mrb[0].mxu0
    %v515 = vadd.f32 0.0, %v514
    %v516 = vpop.f32.mrb[0].mxu0
    %517 = vdwg.mxu0
    %v519 = vsel %vm444, %v443, 0
    %521 = vmatprep.subr.mxu0 0.0
    %522 = vmatpush1.msra.mxu0 %v169
    %523 = vmatprep.subr.mxu0 0.0
    %524 = vmatpush1.msra.mxu0 %v170
    %525 = vmatprep.subr.mxu0 0.0
    %526 = vmatpush1.msra.mxu0 %v171
    %527 = vmatprep.subr.mxu0 0.0
    %528 = vmatpush1.msra.mxu0 %v172
    %529 = vmatprep.subr.mxu0 0.0
    %530 = vmatpush1.msra.mxu0 0.0
    %531 = vmatprep.subr.mxu0 0.0
    %532 = vmatpush1.msra.mxu0 0.0
    %533 = vmatprep.subr.mxu0 0.0
    %534 = vmatpush1.msra.mxu0 0.0
    %535 = vmatprep.subr.mxu0 0.0
    %536 = vmatpush1.msra.mxu0 0.0
    %537 = vmatprep.subr.mxu0 0.0
    %538 = vmatpush1.msra.mxu0 0.0
    %539 = vmatprep.subr.mxu0 0.0
    %540 = vmatpush1.msra.mxu0 0.0
    %541 = vmatprep.subr.mxu0 0.0
    %542 = vmatpush1.msra.mxu0 0.0
    %543 = vmatprep.subr.mxu0 0.0
    %544 = vmatpush1.msra.mxu0 0.0
    %545 = vmatprep.subr.mxu0 0.0
    %546 = vmatpush1.msra.mxu0 0.0
    %547 = vmatprep.subr.mxu0 0.0
    %548 = vmatpush1.msra.mxu0 0.0
    %549 = vmatprep.subr.mxu0 0.0
    %550 = vmatpush1.msra.mxu0 0.0
    %551 = vmatprep.subr.mxu0 0.0
    %552 = vmatpush1.msra.mxu0 0.0
    %553 = vmatprep.subr.mxu0 0.0
    %554 = vmatpush1.msra.mxu0 0.0
    %555 = vmatprep.subr.mxu0 0.0
    %556 = vmatpush1.msra.mxu0 0.0
    %557 = vmatprep.subr.mxu0 0.0
    %558 = vmatpush1.msra.mxu0 0.0
    %559 = vmatprep.subr.mxu0 0.0
    %560 = vmatpush1.msra.mxu0 0.0
    %561 = vmatprep.subr.mxu0 0.0
    %562 = vmatpush1.msra.mxu0 0.0
    %563 = vmatprep.subr.mxu0 0.0
    %564 = vmatpush1.msra.mxu0 0.0
    %565 = vmatprep.subr.mxu0 0.0
    %566 = vmatpush1.msra.mxu0 0.0
    %567 = vmatprep.subr.mxu0 0.0
    %568 = vmatpush1.msra.mxu0 0.0
    %569 = vmatprep.subr.mxu0 0.0
    %570 = vmatpush1.msra.mxu0 0.0
    %571 = vmatprep.subr.mxu0 0.0
    %572 = vmatpush1.msra.mxu0 0.0
    %573 = vmatprep.subr.mxu0 0.0
    %574 = vmatpush1.msra.mxu0 0.0
    %575 = vmatprep.subr.mxu0 0.0
    %576 = vmatpush1.msra.mxu0 0.0
    %577 = vmatprep.subr.mxu0 0.0
    %578 = vmatpush1.msra.mxu0 0.0
    %579 = vmatprep.subr.mxu0 0.0
    %580 = vmatpush1.msra.mxu0 0.0
    %581 = vmatprep.subr.mxu0 0.0
    %582 = vmatpush1.msra.mxu0 0.0
    %583 = vmatprep.subr.mxu0 0.0
    %584 = vmatpush1.msra.mxu0 0.0
    %585 = vmatprep.mubr.f32.mxu0 0.0
    %586 = vmatmul.mubr.f32.gmra.mrb[0].mxu0 %v519
    %v587 = vpop.f32.mrb[0].mxu0
    %v588 = vadd.f32 0.0, %v587
    %v589 = vpop.f32.mrb[0].mxu0
    %590 = vdwg.mxu0
    %v592 = vlaneseq
    %v593 = vshrl.u32 %v592, 7
    %v594 = vsub.s32 0, %v593
    %v595 = vrot.slane %v151, %v594
    %v597 = vmul.f32 %v588, %v595
    %v598 = vmul.f32 %v515, %v597
    %v600 = vlaneseq
    %v601 = vshrl.u32 %v600, 7
    %v602 = vsub.s32 0, %v601
    %v603 = vrot.slane %v152, %v602
    %v605 = vsub.f32 %v603, %v598
    %v608 = vunpack.c.l.s4 1966171168
    %v609 = vunpack.c.0.s8 %v608
    %v610 = vlaneseq
    %v611 = vshrl.u32 %v610, 7
    %v612 = vsub.s32 %v609, %v611
    %v613 = vrot.slane %v597, %v612
    %v614 = vcombine.high %v613, %v613
    %v616 = vunpack.c.l.s4 1966171168
    %v617 = vunpack.c.0.s8 %v616
    %v618 = vlaneseq
    %v619 = vshrl.u32 %v618, 7
    %v620 = vsub.s32 %v617, %v619
    %v621 = vrot.slane %v613, %v620
    %v623 = vunpack.c.l.s4 1966171168
    %v624 = vunpack.c.0.s8 %v623
    %v625 = vlaneseq
    %v626 = vshrl.u32 %v625, 7
    %v627 = vsub.s32 %v624, %v626
    %v628 = vrot.slane %v614, %v627
    %v631 = vunpack.c.l.s4 1966171168
    %v632 = vunpack.c.0.s8 %v631
    %v633 = vlaneseq
    %v634 = vshrl.u32 %v633, 7
    %v635 = vsub.s32 %v632, %v634
    %v636 = vrot.slane %v605, %v635
    %v637 = vcombine.high %v636, %v636
    %v639 = vunpack.c.l.s4 1966171168
    %v640 = vunpack.c.0.s8 %v639
    %v641 = vlaneseq
    %v642 = vshrl.u32 %v641, 7
    %v643 = vsub.s32 %v640, %v642
    %v644 = vrot.slane %v636, %v643
    %v646 = vunpack.c.l.s4 1966171168
    %v647 = vunpack.c.0.s8 %v646
    %v648 = vlaneseq
    %v649 = vshrl.u32 %v648, 7
    %v650 = vsub.s32 %v647, %v649
    %v651 = vrot.slane %v637, %v650
    %v652 = vlaneseq
    %v653 = vshrl.u32 %v652, 7
    %v654 = vsub.s32 0, %v653
    %v655 = vrot.slane %v621, %v654
    %v656 = vlaneseq
    %v657 = vshrl.u32 %v656, 7
    %v658 = vsub.s32 0, %v657
    %v659 = vrot.slane %v628, %v658
    %v662 = vmul.f32 %v119, %v655
    %v663 = vmul.f32 %v120, %v655
    %v664 = vmul.f32 %v121, %v655
    %v665 = vmul.f32 %v122, %v655
    %v666 = vmul.f32 %v123, %v655
    %v667 = vmul.f32 %v124, %v655
    %v668 = vmul.f32 %v125, %v655
    %v669 = vmul.f32 %v126, %v655
    %v670 = vmul.f32 %v127, %v655
    %v671 = vmul.f32 %v128, %v655
    %v672 = vmul.f32 %v129, %v655
    %v673 = vmul.f32 %v130, %v655
    %v674 = vmul.f32 %v131, %v655
    %v675 = vmul.f32 %v132, %v655
    %v676 = vmul.f32 %v133, %v655
    %v677 = vmul.f32 %v134, %v655
    %v678 = vmul.f32 %v135, %v659
    %v679 = vmul.f32 %v136, %v659
    %v680 = vmul.f32 %v137, %v659
    %v681 = vmul.f32 %v138, %v659
    %v682 = vmul.f32 %v139, %v659
    %v683 = vmul.f32 %v140, %v659
    %v684 = vmul.f32 %v141, %v659
    %v685 = vmul.f32 %v142, %v659
    %v686 = vmul.f32 %v143, %v659
    %v687 = vmul.f32 %v144, %v659
    %v688 = vmul.f32 %v145, %v659
    %v689 = vmul.f32 %v146, %v659
    %v690 = vmul.f32 %v147, %v659
    %v691 = vmul.f32 %v148, %v659
    %v692 = vmul.f32 %v149, %v659
    %v693 = vmul.f32 %v150, %v659
    %v694 = vlaneseq
    %v695 = vshrl.u32 %v694, 7
    %v696 = vsub.s32 0, %v695
    %v697 = vrot.slane %v644, %v696
    %v698 = vlaneseq
    %v699 = vshrl.u32 %v698, 7
    %v700 = vsub.s32 0, %v699
    %v701 = vrot.slane %v651, %v700
    %v704 = vadd.f32 %v662, %v697
    %v705 = vadd.f32 %v663, %v697
    %v706 = vadd.f32 %v664, %v697
    %v707 = vadd.f32 %v665, %v697
    %v708 = vadd.f32 %v666, %v697
    %v709 = vadd.f32 %v667, %v697
    %v710 = vadd.f32 %v668, %v697
    %v711 = vadd.f32 %v669, %v697
    %v712 = vadd.f32 %v670, %v697
    %v713 = vadd.f32 %v671, %v697
    %v714 = vadd.f32 %v672, %v697
    %v715 = vadd.f32 %v673, %v697
    %v716 = vadd.f32 %v674, %v697
    %v717 = vadd.f32 %v675, %v697
    %v718 = vadd.f32 %v676, %v697
    %v719 = vadd.f32 %v677, %v697
    %v720 = vadd.f32 %v678, %v701
    %v721 = vadd.f32 %v679, %v701
    %v722 = vadd.f32 %v680, %v701
    %v723 = vadd.f32 %v681, %v701
    %v724 = vadd.f32 %v682, %v701
    %v725 = vadd.f32 %v683, %v701
    %v726 = vadd.f32 %v684, %v701
    %v727 = vadd.f32 %v685, %v701
    %v728 = vadd.f32 %v686, %v701
    %v729 = vadd.f32 %v687, %v701
    %v730 = vadd.f32 %v688, %v701
    %v731 = vadd.f32 %v689, %v701
    %v732 = vadd.f32 %v690, %v701
    %v733 = vadd.f32 %v691, %v701
    %v734 = vadd.f32 %v692, %v701
    %v735 = vadd.f32 %v693, %v701
    %v736 = vxor.u32 %v704, 2147483648
    %v737 = vxor.u32 %v705, 2147483648
    %v738 = vxor.u32 %v706, 2147483648
    %v739 = vxor.u32 %v707, 2147483648
    %v740 = vxor.u32 %v708, 2147483648
    %v741 = vxor.u32 %v709, 2147483648
    %v742 = vxor.u32 %v710, 2147483648
    %v743 = vxor.u32 %v711, 2147483648
    %v744 = vxor.u32 %v712, 2147483648
    %v745 = vxor.u32 %v713, 2147483648
    %v746 = vxor.u32 %v714, 2147483648
    %v747 = vxor.u32 %v715, 2147483648
    %v748 = vxor.u32 %v716, 2147483648
    %v749 = vxor.u32 %v717, 2147483648
    %v750 = vxor.u32 %v718, 2147483648
    %v751 = vxor.u32 %v719, 2147483648
    %v752 = vxor.u32 %v720, 2147483648
    %v753 = vxor.u32 %v721, 2147483648
    %v754 = vxor.u32 %v722, 2147483648
    %v755 = vxor.u32 %v723, 2147483648
    %v756 = vxor.u32 %v724, 2147483648
    %v757 = vxor.u32 %v725, 2147483648
    %v758 = vxor.u32 %v726, 2147483648
    %v759 = vxor.u32 %v727, 2147483648
    %v760 = vxor.u32 %v728, 2147483648
    %v761 = vxor.u32 %v729, 2147483648
    %v762 = vxor.u32 %v730, 2147483648
    %v763 = vxor.u32 %v731, 2147483648
    %v764 = vxor.u32 %v732, 2147483648
    %v765 = vxor.u32 %v733, 2147483648
    %v766 = vxor.u32 %v734, 2147483648
    %v767 = vxor.u32 %v735, 2147483648
    %v768 = vmul.f32 %v736, 1.442695
    %v769 = vpow.pop %v768
    %v770 = vmul.f32 %v737, 1.442695
    %v771 = vpow.pop %v770
    %v772 = vmul.f32 %v738, 1.442695
    %v773 = vpow.pop %v772
    %v774 = vmul.f32 %v739, 1.442695
    %v775 = vpow.pop %v774
    %v776 = vmul.f32 %v740, 1.442695
    %v777 = vpow.pop %v776
    %v778 = vmul.f32 %v741, 1.442695
    %v779 = vpow.pop %v778
    %v780 = vmul.f32 %v742, 1.442695
    %v781 = vpow.pop %v780
    %v782 = vmul.f32 %v743, 1.442695
    %v783 = vpow.pop %v782
    %v784 = vmul.f32 %v744, 1.442695
    %v785 = vpow.pop %v784
    %v786 = vmul.f32 %v745, 1.442695
    %v787 = vpow.pop %v786
    %v788 = vmul.f32 %v746, 1.442695
    %v789 = vpow.pop %v788
    %v790 = vmul.f32 %v747, 1.442695
    %v791 = vpow.pop %v790
    %v792 = vmul.f32 %v748, 1.442695
    %v793 = vpow.pop %v792
    %v794 = vmul.f32 %v749, 1.442695
    %v795 = vpow.pop %v794
    %v796 = vmul.f32 %v750, 1.442695
    %v797 = vpow.pop %v796
    %v798 = vmul.f32 %v751, 1.442695
    %v799 = vpow.pop %v798
    %v800 = vmul.f32 %v752, 1.442695
    %v801 = vpow.pop %v800
    %v802 = vmul.f32 %v753, 1.442695
    %v803 = vpow.pop %v802
    %v804 = vmul.f32 %v754, 1.442695
    %v805 = vpow.pop %v804
    %v806 = vmul.f32 %v755, 1.442695
    %v807 = vpow.pop %v806
    %v808 = vmul.f32 %v756, 1.442695
    %v809 = vpow.pop %v808
    %v810 = vmul.f32 %v757, 1.442695
    %v811 = vpow.pop %v810
    %v812 = vmul.f32 %v758, 1.442695
    %v813 = vpow.pop %v812
    %v814 = vmul.f32 %v759, 1.442695
    %v815 = vpow.pop %v814
    %v816 = vmul.f32 %v760, 1.442695
    %v817 = vpow.pop %v816
    %v818 = vmul.f32 %v761, 1.442695
    %v819 = vpow.pop %v818
    %v820 = vmul.f32 %v762, 1.442695
    %v821 = vpow.pop %v820
    %v822 = vmul.f32 %v763, 1.442695
    %v823 = vpow.pop %v822
    %v824 = vmul.f32 %v764, 1.442695
    %v825 = vpow.pop %v824
    %v826 = vmul.f32 %v765, 1.442695
    %v827 = vpow.pop %v826
    %v828 = vmul.f32 %v766, 1.442695
    %v829 = vpow.pop %v828
    %v830 = vmul.f32 %v767, 1.442695
    %v831 = vpow.pop %v830
    %v832 = vadd.f32 %v769, 1.0
    %v833 = vadd.f32 %v771, 1.0
    %v834 = vadd.f32 %v773, 1.0
    %v835 = vadd.f32 %v775, 1.0
    %v836 = vadd.f32 %v777, 1.0
    %v837 = vadd.f32 %v779, 1.0
    %v838 = vadd.f32 %v781, 1.0
    %v839 = vadd.f32 %v783, 1.0
    %v840 = vadd.f32 %v785, 1.0
    %v841 = vadd.f32 %v787, 1.0
    %v842 = vadd.f32 %v789, 1.0
    %v843 = vadd.f32 %v791, 1.0
    %v844 = vadd.f32 %v793, 1.0
    %v845 = vadd.f32 %v795, 1.0
    %v846 = vadd.f32 %v797, 1.0
    %v847 = vadd.f32 %v799, 1.0
    %v848 = vadd.f32 %v801, 1.0
    %v849 = vadd.f32 %v803, 1.0
    %v850 = vadd.f32 %v805, 1.0
    %v851 = vadd.f32 %v807, 1.0
    %v852 = vadd.f32 %v809, 1.0
    %v853 = vadd.f32 %v811, 1.0
    %v854 = vadd.f32 %v813, 1.0
    %v855 = vadd.f32 %v815, 1.0
    %v856 = vadd.f32 %v817, 1.0
    %v857 = vadd.f32 %v819, 1.0
    %v858 = vadd.f32 %v821, 1.0
    %v859 = vadd.f32 %v823, 1.0
    %v860 = vadd.f32 %v825, 1.0
    %v861 = vadd.f32 %v827, 1.0
    %v862 = vadd.f32 %v829, 1.0
    %v863 = vadd.f32 %v831, 1.0
    %v864 = vrcp.pop %v832
    %v865 = vmul.f32 1.0, %v864
    %v866 = vrcp.pop %v833
    %v867 = vmul.f32 1.0, %v866
    %v868 = vrcp.pop %v834
    %v869 = vmul.f32 1.0, %v868
    %v870 = vrcp.pop %v835
    %v871 = vmul.f32 1.0, %v870
    %v872 = vrcp.pop %v836
    %v873 = vmul.f32 1.0, %v872
    %v874 = vrcp.pop %v837
    %v875 = vmul.f32 1.0, %v874
    %v876 = vrcp.pop %v838
    %v877 = vmul.f32 1.0, %v876
    %v878 = vrcp.pop %v839
    %v879 = vmul.f32 1.0, %v878
    %v880 = vrcp.pop %v840
    %v881 = vmul.f32 1.0, %v880
    %v882 = vrcp.pop %v841
    %v883 = vmul.f32 1.0, %v882
    %v884 = vrcp.pop %v842
    %v885 = vmul.f32 1.0, %v884
    %v886 = vrcp.pop %v843
    %v887 = vmul.f32 1.0, %v886
    %v888 = vrcp.pop %v844
    %v889 = vmul.f32 1.0, %v888
    %v890 = vrcp.pop %v845
    %v891 = vmul.f32 1.0, %v890
    %v892 = vrcp.pop %v846
    %v893 = vmul.f32 1.0, %v892
    %v894 = vrcp.pop %v847
    %v895 = vmul.f32 1.0, %v894
    %v896 = vrcp.pop %v848
    %v897 = vmul.f32 1.0, %v896
    %v898 = vrcp.pop %v849
    %v899 = vmul.f32 1.0, %v898
    %v900 = vrcp.pop %v850
    %v901 = vmul.f32 1.0, %v900
    %v902 = vrcp.pop %v851
    %v903 = vmul.f32 1.0, %v902
    %v904 = vrcp.pop %v852
    %v905 = vmul.f32 1.0, %v904
    %v906 = vrcp.pop %v853
    %v907 = vmul.f32 1.0, %v906
    %v908 = vrcp.pop %v854
    %v909 = vmul.f32 1.0, %v908
    %v910 = vrcp.pop %v855
    %v911 = vmul.f32 1.0, %v910
    %v912 = vrcp.pop %v856
    %v913 = vmul.f32 1.0, %v912
    %v914 = vrcp.pop %v857
    %v915 = vmul.f32 1.0, %v914
    %v916 = vrcp.pop %v858
    %v917 = vmul.f32 1.0, %v916
    %v918 = vrcp.pop %v859
    %v919 = vmul.f32 1.0, %v918
    %v920 = vrcp.pop %v860
    %v921 = vmul.f32 1.0, %v920
    %v922 = vrcp.pop %v861
    %v923 = vmul.f32 1.0, %v922
    %v924 = vrcp.pop %v862
    %v925 = vmul.f32 1.0, %v924
    %v926 = vrcp.pop %v863
    %v927 = vmul.f32 1.0, %v926
    %v928 = vmul.f32 %v704, %v865
    %v929 = vmul.f32 %v705, %v867
    %v930 = vmul.f32 %v706, %v869
    %v931 = vmul.f32 %v707, %v871
    %v932 = vmul.f32 %v708, %v873
    %v933 = vmul.f32 %v709, %v875
    %v934 = vmul.f32 %v710, %v877
    %v935 = vmul.f32 %v711, %v879
    %v936 = vmul.f32 %v712, %v881
    %v937 = vmul.f32 %v713, %v883
    %v938 = vmul.f32 %v714, %v885
    %v939 = vmul.f32 %v715, %v887
    %v940 = vmul.f32 %v716, %v889
    %v941 = vmul.f32 %v717, %v891
    %v942 = vmul.f32 %v718, %v893
    %v943 = vmul.f32 %v719, %v895
    %v944 = vmul.f32 %v720, %v897
    %v945 = vmul.f32 %v721, %v899
    %v946 = vmul.f32 %v722, %v901
    %v947 = vmul.f32 %v723, %v903
    %v948 = vmul.f32 %v724, %v905
    %v949 = vmul.f32 %v725, %v907
    %v950 = vmul.f32 %v726, %v909
    %v951 = vmul.f32 %v727, %v911
    %v952 = vmul.f32 %v728, %v913
    %v953 = vmul.f32 %v729, %v915
    %v954 = vmul.f32 %v730, %v917
    %v955 = vmul.f32 %v731, %v919
    %v956 = vmul.f32 %v732, %v921
    %v957 = vmul.f32 %v733, %v923
    %v958 = vmul.f32 %v734, %v925
    %v959 = vmul.f32 %v735, %v927
    %vm992 = vcmask 1040384
    %v993 = vrot.slane %v928, 7
    %v994 = vrot.slane %v929, 7
    %v995 = vsel %vm992, %v993, %v994
    %v996 = vrot.slane %v930, 7
    %v997 = vsel %vm992, %v994, %v996
    %v998 = vrot.slane %v931, 7
    %v999 = vsel %vm992, %v996, %v998
    %v1000 = vrot.slane %v932, 7
    %v1001 = vsel %vm992, %v998, %v1000
    %v1002 = vrot.slane %v933, 7
    %v1003 = vsel %vm992, %v1000, %v1002
    %v1004 = vrot.slane %v934, 7
    %v1005 = vsel %vm992, %v1002, %v1004
    %v1006 = vrot.slane %v935, 7
    %v1007 = vsel %vm992, %v1004, %v1006
    %v1008 = vrot.slane %v936, 7
    %v1009 = vsel %vm992, %v1006, %v1008
    %v1010 = vrot.slane %v937, 7
    %v1011 = vsel %vm992, %v1008, %v1010
    %v1012 = vrot.slane %v938, 7
    %v1013 = vsel %vm992, %v1010, %v1012
    %v1014 = vrot.slane %v939, 7
    %v1015 = vsel %vm992, %v1012, %v1014
    %v1016 = vrot.slane %v940, 7
    %v1017 = vsel %vm992, %v1014, %v1016
    %v1018 = vrot.slane %v941, 7
    %v1019 = vsel %vm992, %v1016, %v1018
    %v1020 = vrot.slane %v942, 7
    %v1021 = vsel %vm992, %v1018, %v1020
    %v1022 = vrot.slane %v943, 7
    %v1023 = vsel %vm992, %v1020, %v1022
    %v1024 = vrot.slane %v944, 7
    %v1025 = vsel %vm992, %v1022, %v1024
    %v1026 = vrot.slane %v945, 7
    %v1027 = vsel %vm992, %v1024, %v1026
    %v1028 = vrot.slane %v946, 7
    %v1029 = vsel %vm992, %v1026, %v1028
    %v1030 = vrot.slane %v947, 7
    %v1031 = vsel %vm992, %v1028, %v1030
    %v1032 = vrot.slane %v948, 7
    %v1033 = vsel %vm992, %v1030, %v1032
    %v1034 = vrot.slane %v949, 7
    %v1035 = vsel %vm992, %v1032, %v1034
    %v1036 = vrot.slane %v950, 7
    %v1037 = vsel %vm992, %v1034, %v1036
    %v1038 = vrot.slane %v951, 7
    %v1039 = vsel %vm992, %v1036, %v1038
    %v1040 = vrot.slane %v952, 7
    %v1041 = vsel %vm992, %v1038, %v1040
    %v1042 = vrot.slane %v953, 7
    %v1043 = vsel %vm992, %v1040, %v1042
    %v1044 = vrot.slane %v954, 7
    %v1045 = vsel %vm992, %v1042, %v1044
    %v1046 = vrot.slane %v955, 7
    %v1047 = vsel %vm992, %v1044, %v1046
    %v1048 = vrot.slane %v956, 7
    %v1049 = vsel %vm992, %v1046, %v1048
    %v1050 = vrot.slane %v957, 7
    %v1051 = vsel %vm992, %v1048, %v1050
    %v1052 = vrot.slane %v958, 7
    %v1053 = vsel %vm992, %v1050, %v1052
    %v1054 = vrot.slane %v959, 7
    %v1055 = vsel %vm992, %v1052, %v1054
    %v1088 = vsel %vm992, 0.0, %v993
    %1090 = vset.pattern.permute.xlu0 0
    %1091 = vperm.xlu0 %1090, %v55
    %v1092 = vpop.permute.xlu0 %1091
    %1095 = vset.pattern.permute.xlu0 0
    %1096 = vperm.xlu0 %1095, %v56
    %v1097 = vpop.permute.xlu0 %1096
    %1100 = vset.pattern.permute.xlu0 0
    %1101 = vperm.xlu0 %1100, %v57
    %v1102 = vpop.permute.xlu0 %1101
    %1105 = vset.pattern.permute.xlu0 0
    %1106 = vperm.xlu0 %1105, %v58
    %v1107 = vpop.permute.xlu0 %1106
    %1110 = vset.pattern.permute.xlu0 0
    %1111 = vperm.xlu0 %1110, %v59
    %v1112 = vpop.permute.xlu0 %1111
    %1115 = vset.pattern.permute.xlu0 0
    %1116 = vperm.xlu0 %1115, %v60
    %v1117 = vpop.permute.xlu0 %1116
    %1120 = vset.pattern.permute.xlu0 0
    %1121 = vperm.xlu0 %1120, %v61
    %v1122 = vpop.permute.xlu0 %1121
    %1125 = vset.pattern.permute.xlu0 0
    %1126 = vperm.xlu0 %1125, %v62
    %v1127 = vpop.permute.xlu0 %1126
    %1130 = vset.pattern.permute.xlu0 0
    %1131 = vperm.xlu0 %1130, %v63
    %v1132 = vpop.permute.xlu0 %1131
    %1135 = vset.pattern.permute.xlu0 0
    %1136 = vperm.xlu0 %1135, %v64
    %v1137 = vpop.permute.xlu0 %1136
    %1140 = vset.pattern.permute.xlu0 0
    %1141 = vperm.xlu0 %1140, %v65
    %v1142 = vpop.permute.xlu0 %1141
    %1145 = vset.pattern.permute.xlu0 0
    %1146 = vperm.xlu0 %1145, %v66
    %v1147 = vpop.permute.xlu0 %1146
    %1150 = vset.pattern.permute.xlu0 0
    %1151 = vperm.xlu0 %1150, %v67
    %v1152 = vpop.permute.xlu0 %1151
    %1155 = vset.pattern.permute.xlu0 0
    %1156 = vperm.xlu0 %1155, %v68
    %v1157 = vpop.permute.xlu0 %1156
    %1160 = vset.pattern.permute.xlu0 0
    %1161 = vperm.xlu0 %1160, %v69
    %v1162 = vpop.permute.xlu0 %1161
    %1165 = vset.pattern.permute.xlu0 0
    %1166 = vperm.xlu0 %1165, %v70
    %v1167 = vpop.permute.xlu0 %1166
    %1170 = vset.pattern.permute.xlu0 0
    %1171 = vperm.xlu0 %1170, %v71
    %v1172 = vpop.permute.xlu0 %1171
    %1175 = vset.pattern.permute.xlu0 0
    %1176 = vperm.xlu0 %1175, %v72
    %v1177 = vpop.permute.xlu0 %1176
    %1180 = vset.pattern.permute.xlu0 0
    %1181 = vperm.xlu0 %1180, %v73
    %v1182 = vpop.permute.xlu0 %1181
    %1185 = vset.pattern.permute.xlu0 0
    %1186 = vperm.xlu0 %1185, %v74
    %v1187 = vpop.permute.xlu0 %1186
    %1190 = vset.pattern.permute.xlu0 0
    %1191 = vperm.xlu0 %1190, %v75
    %v1192 = vpop.permute.xlu0 %1191
    %1195 = vset.pattern.permute.xlu0 0
    %1196 = vperm.xlu0 %1195, %v76
    %v1197 = vpop.permute.xlu0 %1196
    %1200 = vset.pattern.permute.xlu0 0
    %1201 = vperm.xlu0 %1200, %v77
    %v1202 = vpop.permute.xlu0 %1201
    %1205 = vset.pattern.permute.xlu0 0
    %1206 = vperm.xlu0 %1205, %v78
    %v1207 = vpop.permute.xlu0 %1206
    %1210 = vset.pattern.permute.xlu0 0
    %1211 = vperm.xlu0 %1210, %v79
    %v1212 = vpop.permute.xlu0 %1211
    %1215 = vset.pattern.permute.xlu0 0
    %1216 = vperm.xlu0 %1215, %v80
    %v1217 = vpop.permute.xlu0 %1216
    %1220 = vset.pattern.permute.xlu0 0
    %1221 = vperm.xlu0 %1220, %v81
    %v1222 = vpop.permute.xlu0 %1221
    %1225 = vset.pattern.permute.xlu0 0
    %1226 = vperm.xlu0 %1225, %v82
    %v1227 = vpop.permute.xlu0 %1226
    %1230 = vset.pattern.permute.xlu0 0
    %1231 = vperm.xlu0 %1230, %v83
    %v1232 = vpop.permute.xlu0 %1231
    %1235 = vset.pattern.permute.xlu0 0
    %1236 = vperm.xlu0 %1235, %v84
    %v1237 = vpop.permute.xlu0 %1236
    %1240 = vset.pattern.permute.xlu0 0
    %1241 = vperm.xlu0 %1240, %v85
    %v1242 = vpop.permute.xlu0 %1241
    %1245 = vset.pattern.permute.xlu0 0
    %1246 = vperm.xlu0 %1245, %v86
    %v1247 = vpop.permute.xlu0 %1246
    %v1249 = vmul.f32 %v1088, %v1092
    %v1250 = vmul.f32 %v995, %v1097
    %v1251 = vmul.f32 %v997, %v1102
    %v1252 = vmul.f32 %v999, %v1107
    %v1253 = vmul.f32 %v1001, %v1112
    %v1254 = vmul.f32 %v1003, %v1117
    %v1255 = vmul.f32 %v1005, %v1122
    %v1256 = vmul.f32 %v1007, %v1127
    %v1257 = vmul.f32 %v1009, %v1132
    %v1258 = vmul.f32 %v1011, %v1137
    %v1259 = vmul.f32 %v1013, %v1142
    %v1260 = vmul.f32 %v1015, %v1147
    %v1261 = vmul.f32 %v1017, %v1152
    %v1262 = vmul.f32 %v1019, %v1157
    %v1263 = vmul.f32 %v1021, %v1162
    %v1264 = vmul.f32 %v1023, %v1167
    %v1265 = vmul.f32 %v1025, %v1172
    %v1266 = vmul.f32 %v1027, %v1177
    %v1267 = vmul.f32 %v1029, %v1182
    %v1268 = vmul.f32 %v1031, %v1187
    %v1269 = vmul.f32 %v1033, %v1192
    %v1270 = vmul.f32 %v1035, %v1197
    %v1271 = vmul.f32 %v1037, %v1202
    %v1272 = vmul.f32 %v1039, %v1207
    %v1273 = vmul.f32 %v1041, %v1212
    %v1274 = vmul.f32 %v1043, %v1217
    %v1275 = vmul.f32 %v1045, %v1222
    %v1276 = vmul.f32 %v1047, %v1227
    %v1277 = vmul.f32 %v1049, %v1232
    %v1278 = vmul.f32 %v1051, %v1237
    %v1279 = vmul.f32 %v1053, %v1242
    %v1280 = vmul.f32 %v1055, %v1247
    %vm1281 = vcmask 1046528
    %v1282 = vrot.slane %v928, 1
    %v1283 = vrot.slane %v929, 1
    %v1284 = vsel %vm1281, %v1282, %v1283
    %v1285 = vrot.slane %v930, 1
    %v1286 = vsel %vm1281, %v1283, %v1285
    %v1287 = vrot.slane %v931, 1
    %v1288 = vsel %vm1281, %v1285, %v1287
    %v1289 = vrot.slane %v932, 1
    %v1290 = vsel %vm1281, %v1287, %v1289
    %v1291 = vrot.slane %v933, 1
    %v1292 = vsel %vm1281, %v1289, %v1291
    %v1293 = vrot.slane %v934, 1
    %v1294 = vsel %vm1281, %v1291, %v1293
    %v1295 = vrot.slane %v935, 1
    %v1296 = vsel %vm1281, %v1293, %v1295
    %v1297 = vrot.slane %v936, 1
    %v1298 = vsel %vm1281, %v1295, %v1297
    %v1299 = vrot.slane %v937, 1
    %v1300 = vsel %vm1281, %v1297, %v1299
    %v1301 = vrot.slane %v938, 1
    %v1302 = vsel %vm1281, %v1299, %v1301
    %v1303 = vrot.slane %v939, 1
    %v1304 = vsel %vm1281, %v1301, %v1303
    %v1305 = vrot.slane %v940, 1
    %v1306 = vsel %vm1281, %v1303, %v1305
    %v1307 = vrot.slane %v941, 1
    %v1308 = vsel %vm1281, %v1305, %v1307
    %v1309 = vrot.slane %v942, 1
    %v1310 = vsel %vm1281, %v1307, %v1309
    %v1311 = vrot.slane %v943, 1
    %v1312 = vsel %vm1281, %v1309, %v1311
    %v1313 = vrot.slane %v944, 1
    %v1314 = vsel %vm1281, %v1311, %v1313
    %v1315 = vrot.slane %v945, 1
    %v1316 = vsel %vm1281, %v1313, %v1315
    %v1317 = vrot.slane %v946, 1
    %v1318 = vsel %vm1281, %v1315, %v1317
    %v1319 = vrot.slane %v947, 1
    %v1320 = vsel %vm1281, %v1317, %v1319
    %v1321 = vrot.slane %v948, 1
    %v1322 = vsel %vm1281, %v1319, %v1321
    %v1323 = vrot.slane %v949, 1
    %v1324 = vsel %vm1281, %v1321, %v1323
    %v1325 = vrot.slane %v950, 1
    %v1326 = vsel %vm1281, %v1323, %v1325
    %v1327 = vrot.slane %v951, 1
    %v1328 = vsel %vm1281, %v1325, %v1327
    %v1329 = vrot.slane %v952, 1
    %v1330 = vsel %vm1281, %v1327, %v1329
    %v1331 = vrot.slane %v953, 1
    %v1332 = vsel %vm1281, %v1329, %v1331
    %v1333 = vrot.slane %v954, 1
    %v1334 = vsel %vm1281, %v1331, %v1333
    %v1335 = vrot.slane %v955, 1
    %v1336 = vsel %vm1281, %v1333, %v1335
    %v1337 = vrot.slane %v956, 1
    %v1338 = vsel %vm1281, %v1335, %v1337
    %v1339 = vrot.slane %v957, 1
    %v1340 = vsel %vm1281, %v1337, %v1339
    %v1341 = vrot.slane %v958, 1
    %v1342 = vsel %vm1281, %v1339, %v1341
    %v1343 = vrot.slane %v959, 1
    %v1344 = vsel %vm1281, %v1341, %v1343
    %v1377 = vsel %vm1281, %v1343, 0.0
    %1379 = vset.pattern.permute.xlu0 0
    %1380 = vperm.xlu0 %1379, %v87
    %v1381 = vpop.permute.xlu0 %1380
    %1384 = vset.pattern.permute.xlu0 0
    %1385 = vperm.xlu0 %1384, %v88
    %v1386 = vpop.permute.xlu0 %1385
    %1389 = vset.pattern.permute.xlu0 0
    %1390 = vperm.xlu0 %1389, %v89
    %v1391 = vpop.permute.xlu0 %1390
    %1394 = vset.pattern.permute.xlu0 0
    %1395 = vperm.xlu0 %1394, %v90
    %v1396 = vpop.permute.xlu0 %1395
    %1399 = vset.pattern.permute.xlu0 0
    %1400 = vperm.xlu0 %1399, %v91
    %v1401 = vpop.permute.xlu0 %1400
    %1404 = vset.pattern.permute.xlu0 0
    %1405 = vperm.xlu0 %1404, %v92
    %v1406 = vpop.permute.xlu0 %1405
    %1409 = vset.pattern.permute.xlu0 0
    %1410 = vperm.xlu0 %1409, %v93
    %v1411 = vpop.permute.xlu0 %1410
    %1414 = vset.pattern.permute.xlu0 0
    %1415 = vperm.xlu0 %1414, %v94
    %v1416 = vpop.permute.xlu0 %1415
    %1419 = vset.pattern.permute.xlu0 0
    %1420 = vperm.xlu0 %1419, %v95
    %v1421 = vpop.permute.xlu0 %1420
    %1424 = vset.pattern.permute.xlu0 0
    %1425 = vperm.xlu0 %1424, %v96
    %v1426 = vpop.permute.xlu0 %1425
    %1429 = vset.pattern.permute.xlu0 0
    %1430 = vperm.xlu0 %1429, %v97
    %v1431 = vpop.permute.xlu0 %1430
    %1434 = vset.pattern.permute.xlu0 0
    %1435 = vperm.xlu0 %1434, %v98
    %v1436 = vpop.permute.xlu0 %1435
    %1439 = vset.pattern.permute.xlu0 0
    %1440 = vperm.xlu0 %1439, %v99
    %v1441 = vpop.permute.xlu0 %1440
    %1444 = vset.pattern.permute.xlu0 0
    %1445 = vperm.xlu0 %1444, %v100
    %v1446 = vpop.permute.xlu0 %1445
    %1449 = vset.pattern.permute.xlu0 0
    %1450 = vperm.xlu0 %1449, %v101
    %v1451 = vpop.permute.xlu0 %1450
    %1454 = vset.pattern.permute.xlu0 0
    %1455 = vperm.xlu0 %1454, %v102
    %v1456 = vpop.permute.xlu0 %1455
    %1459 = vset.pattern.permute.xlu0 0
    %1460 = vperm.xlu0 %1459, %v103
    %v1461 = vpop.permute.xlu0 %1460
    %1464 = vset.pattern.permute.xlu0 0
    %1465 = vperm.xlu0 %1464, %v104
    %v1466 = vpop.permute.xlu0 %1465
    %1469 = vset.pattern.permute.xlu0 0
    %1470 = vperm.xlu0 %1469, %v105
    %v1471 = vpop.permute.xlu0 %1470
    %1474 = vset.pattern.permute.xlu0 0
    %1475 = vperm.xlu0 %1474, %v106
    %v1476 = vpop.permute.xlu0 %1475
    %1479 = vset.pattern.permute.xlu0 0
    %1480 = vperm.xlu0 %1479, %v107
    %v1481 = vpop.permute.xlu0 %1480
    %1484 = vset.pattern.permute.xlu0 0
    %1485 = vperm.xlu0 %1484, %v108
    %v1486 = vpop.permute.xlu0 %1485
    %1489 = vset.pattern.permute.xlu0 0
    %1490 = vperm.xlu0 %1489, %v109
    %v1491 = vpop.permute.xlu0 %1490
    %1494 = vset.pattern.permute.xlu0 0
    %1495 = vperm.xlu0 %1494, %v110
    %v1496 = vpop.permute.xlu0 %1495
    %1499 = vset.pattern.permute.xlu0 0
    %1500 = vperm.xlu0 %1499, %v111
    %v1501 = vpop.permute.xlu0 %1500
    %1504 = vset.pattern.permute.xlu0 0
    %1505 = vperm.xlu0 %1504, %v112
    %v1506 = vpop.permute.xlu0 %1505
    %1509 = vset.pattern.permute.xlu0 0
    %1510 = vperm.xlu0 %1509, %v113
    %v1511 = vpop.permute.xlu0 %1510
    %1514 = vset.pattern.permute.xlu0 0
    %1515 = vperm.xlu0 %1514, %v114
    %v1516 = vpop.permute.xlu0 %1515
    %1519 = vset.pattern.permute.xlu0 0
    %1520 = vperm.xlu0 %1519, %v115
    %v1521 = vpop.permute.xlu0 %1520
    %1524 = vset.pattern.permute.xlu0 0
    %1525 = vperm.xlu0 %1524, %v116
    %v1526 = vpop.permute.xlu0 %1525
    %1529 = vset.pattern.permute.xlu0 0
    %1530 = vperm.xlu0 %1529, %v117
    %v1531 = vpop.permute.xlu0 %1530
    %1534 = vset.pattern.permute.xlu0 0
    %1535 = vperm.xlu0 %1534, %v118
    %v1536 = vpop.permute.xlu0 %1535
    %v1538 = vmul.f32 %v1284, %v1381
    %v1539 = vmul.f32 %v1286, %v1386
    %v1540 = vmul.f32 %v1288, %v1391
    %v1541 = vmul.f32 %v1290, %v1396
    %v1542 = vmul.f32 %v1292, %v1401
    %v1543 = vmul.f32 %v1294, %v1406
    %v1544 = vmul.f32 %v1296, %v1411
    %v1545 = vmul.f32 %v1298, %v1416
    %v1546 = vmul.f32 %v1300, %v1421
    %v1547 = vmul.f32 %v1302, %v1426
    %v1548 = vmul.f32 %v1304, %v1431
    %v1549 = vmul.f32 %v1306, %v1436
    %v1550 = vmul.f32 %v1308, %v1441
    %v1551 = vmul.f32 %v1310, %v1446
    %v1552 = vmul.f32 %v1312, %v1451
    %v1553 = vmul.f32 %v1314, %v1456
    %v1554 = vmul.f32 %v1316, %v1461
    %v1555 = vmul.f32 %v1318, %v1466
    %v1556 = vmul.f32 %v1320, %v1471
    %v1557 = vmul.f32 %v1322, %v1476
    %v1558 = vmul.f32 %v1324, %v1481
    %v1559 = vmul.f32 %v1326, %v1486
    %v1560 = vmul.f32 %v1328, %v1491
    %v1561 = vmul.f32 %v1330, %v1496
    %v1562 = vmul.f32 %v1332, %v1501
    %v1563 = vmul.f32 %v1334, %v1506
    %v1564 = vmul.f32 %v1336, %v1511
    %v1565 = vmul.f32 %v1338, %v1516
    %v1566 = vmul.f32 %v1340, %v1521
    %v1567 = vmul.f32 %v1342, %v1526
    %v1568 = vmul.f32 %v1344, %v1531
    %v1569 = vmul.f32 %v1377, %v1536
    %v1570 = vpack.c.bf16 %v1250, %v1249
    %v1571 = vpack.c.bf16 %v929, %v928
    %v1572 = vpack.c.bf16 %v1539, %v1538
    %v1573 = vpack.c.bf16 %v1252, %v1251
    %v1574 = vpack.c.bf16 %v931, %v930
    %v1575 = vpack.c.bf16 %v1541, %v1540
    %v1576 = vpack.c.bf16 %v1254, %v1253
    %v1577 = vpack.c.bf16 %v933, %v932
    %v1578 = vpack.c.bf16 %v1543, %v1542
    %v1579 = vpack.c.bf16 %v1256, %v1255
    %v1580 = vpack.c.bf16 %v935, %v934
    %v1581 = vpack.c.bf16 %v1545, %v1544
    %v1582 = vpack.c.bf16 %v1258, %v1257
    %v1583 = vpack.c.bf16 %v937, %v936
    %v1584 = vpack.c.bf16 %v1547, %v1546
    %v1585 = vpack.c.bf16 %v1260, %v1259
    %v1586 = vpack.c.bf16 %v939, %v938
    %v1587 = vpack.c.bf16 %v1549, %v1548
    %v1588 = vpack.c.bf16 %v1262, %v1261
    %v1589 = vpack.c.bf16 %v941, %v940
    %v1590 = vpack.c.bf16 %v1551, %v1550
    %v1591 = vpack.c.bf16 %v1264, %v1263
    %v1592 = vpack.c.bf16 %v943, %v942
    %v1593 = vpack.c.bf16 %v1553, %v1552
    %v1594 = vpack.c.bf16 %v1266, %v1265
    %v1595 = vpack.c.bf16 %v945, %v944
    %v1596 = vpack.c.bf16 %v1555, %v1554
    %v1597 = vpack.c.bf16 %v1268, %v1267
    %v1598 = vpack.c.bf16 %v947, %v946
    %v1599 = vpack.c.bf16 %v1557, %v1556
    %v1600 = vpack.c.bf16 %v1270, %v1269
    %v1601 = vpack.c.bf16 %v949, %v948
    %v1602 = vpack.c.bf16 %v1559, %v1558
    %v1603 = vpack.c.bf16 %v1272, %v1271
    %v1604 = vpack.c.bf16 %v951, %v950
    %v1605 = vpack.c.bf16 %v1561, %v1560
    %v1606 = vpack.c.bf16 %v1274, %v1273
    %v1607 = vpack.c.bf16 %v953, %v952
    %v1608 = vpack.c.bf16 %v1563, %v1562
    %v1609 = vpack.c.bf16 %v1276, %v1275
    %v1610 = vpack.c.bf16 %v955, %v954
    %v1611 = vpack.c.bf16 %v1565, %v1564
    %v1612 = vpack.c.bf16 %v1278, %v1277
    %v1613 = vpack.c.bf16 %v957, %v956
    %v1614 = vpack.c.bf16 %v1567, %v1566
    %v1615 = vpack.c.bf16 %v1280, %v1279
    %v1616 = vpack.c.bf16 %v959, %v958
    %v1617 = vpack.c.bf16 %v1569, %v1568
    %v1618 = vld [vmem:[%s4] sm:$0xf]
    %v1619 = vld [vmem:[%s4 + $0x4] sm:$0xf]
    %v1620 = vld [vmem:[%s4 + $0x8] sm:$0xf]
    %v1621 = vld [vmem:[%s4 + $0xc] sm:$0xf]
    %v1622 = vld [vmem:[%s4 + $0x10] sm:$0xf]
    %v1623 = vld [vmem:[%s4 + $0x14] sm:$0xf]
    %v1624 = vld [vmem:[%s4 + $0x18] sm:$0xf]
    %v1625 = vld [vmem:[%s4 + $0x1c] sm:$0xf]
    %v1626 = vld [vmem:[%s4 + $0x20] sm:$0xf]
    %v1627 = vld [vmem:[%s4 + $0x24] sm:$0xf]
    %v1628 = vld [vmem:[%s4 + $0x28] sm:$0xf]
    %v1629 = vld [vmem:[%s4 + $0x2c] sm:$0xf]
    %v1630 = vld [vmem:[%s4 + $0x30] sm:$0xf]
    %v1631 = vld [vmem:[%s4 + $0x34] sm:$0xf]
    %v1632 = vld [vmem:[%s4 + $0x38] sm:$0xf]
    %v1633 = vld [vmem:[%s4 + $0x3c] sm:$0xf]
    %v1634 = vld [vmem:[%s4 + $0x40] sm:$0xf]
    %v1635 = vld [vmem:[%s4 + $0x44] sm:$0xf]
    %v1636 = vld [vmem:[%s4 + $0x48] sm:$0xf]
    %v1637 = vld [vmem:[%s4 + $0x4c] sm:$0xf]
    %v1638 = vld [vmem:[%s4 + $0x50] sm:$0xf]
    %v1639 = vld [vmem:[%s4 + $0x54] sm:$0xf]
    %v1640 = vld [vmem:[%s4 + $0x58] sm:$0xf]
    %v1641 = vld [vmem:[%s4 + $0x5c] sm:$0xf]
    %v1642 = vld [vmem:[%s4 + $0x60] sm:$0xf]
    %v1643 = vld [vmem:[%s4 + $0x64] sm:$0xf]
    %v1644 = vld [vmem:[%s4 + $0x68] sm:$0xf]
    %v1645 = vld [vmem:[%s4 + $0x6c] sm:$0xf]
    %v1646 = vld [vmem:[%s4 + $0x70] sm:$0xf]
    %v1647 = vld [vmem:[%s4 + $0x74] sm:$0xf]
    %v1648 = vld [vmem:[%s4 + $0x78] sm:$0xf]
    %v1649 = vld [vmem:[%s4 + $0x7c] sm:$0xf]
    %v1650 = vld [vmem:[%s4 + $0x80] sm:$0xf]
    %v1651 = vld [vmem:[%s4 + $0x84] sm:$0xf]
    %v1652 = vld [vmem:[%s4 + $0x88] sm:$0xf]
    %v1653 = vld [vmem:[%s4 + $0x8c] sm:$0xf]
    %v1654 = vld [vmem:[%s4 + $0x90] sm:$0xf]
    %v1655 = vld [vmem:[%s4 + $0x94] sm:$0xf]
    %v1656 = vld [vmem:[%s4 + $0x98] sm:$0xf]
    %v1657 = vld [vmem:[%s4 + $0x9c] sm:$0xf]
    %v1658 = vld [vmem:[%s4 + $0xa0] sm:$0xf]
    %v1659 = vld [vmem:[%s4 + $0xa4] sm:$0xf]
    %v1660 = vld [vmem:[%s4 + $0xa8] sm:$0xf]
    %v1661 = vld [vmem:[%s4 + $0xac] sm:$0xf]
    %v1662 = vld [vmem:[%s4 + $0xb0] sm:$0xf]
    %v1663 = vld [vmem:[%s4 + $0xb4] sm:$0xf]
    %v1664 = vld [vmem:[%s4 + $0xb8] sm:$0xf]
    %v1665 = vld [vmem:[%s4 + $0xbc] sm:$0xf]
    %v1666 = vld [vmem:[%s5] sm:$0x1]
    %v1668 = vlaneseq
    %v1669 = vshrl.u32 %v1668, 7
    %v1670 = vsub.s32 0, %v1669
    %v1671 = vrot.slane %v1666, %v1670
    %v1721 = vunpack.c.l.b16 %v1618
    %v1722 = vunpack.c.l.b16 %v1619
    %v1723 = vunpack.c.l.b16 %v1620
    %v1724 = vunpack.c.l.b16 %v1621
    %v1725 = vunpack.c.l.b16 %v1622
    %v1726 = vunpack.c.l.b16 %v1623
    %v1727 = vunpack.c.l.b16 %v1624
    %v1728 = vunpack.c.l.b16 %v1625
    %v1729 = vunpack.c.l.b16 %v1626
    %v1730 = vunpack.c.l.b16 %v1627
    %v1731 = vunpack.c.l.b16 %v1628
    %v1732 = vunpack.c.l.b16 %v1629
    %v1733 = vunpack.c.l.b16 %v1630
    %v1734 = vunpack.c.l.b16 %v1631
    %v1735 = vunpack.c.l.b16 %v1632
    %v1736 = vunpack.c.l.b16 %v1633
    %v1737 = vunpack.c.l.b16 %v1634
    %v1738 = vunpack.c.l.b16 %v1635
    %v1739 = vunpack.c.l.b16 %v1636
    %v1740 = vunpack.c.l.b16 %v1637
    %v1741 = vunpack.c.l.b16 %v1638
    %v1742 = vunpack.c.l.b16 %v1639
    %v1743 = vunpack.c.l.b16 %v1640
    %v1744 = vunpack.c.l.b16 %v1641
    %v1745 = vunpack.c.l.b16 %v1642
    %v1746 = vunpack.c.l.b16 %v1643
    %v1747 = vunpack.c.l.b16 %v1644
    %v1748 = vunpack.c.l.b16 %v1645
    %v1749 = vunpack.c.l.b16 %v1646
    %v1750 = vunpack.c.l.b16 %v1647
    %v1751 = vunpack.c.l.b16 %v1648
    %v1752 = vunpack.c.l.b16 %v1649
    %v1753 = vunpack.c.l.b16 %v1650
    %v1754 = vunpack.c.l.b16 %v1651
    %v1755 = vunpack.c.l.b16 %v1652
    %v1756 = vunpack.c.l.b16 %v1653
    %v1757 = vunpack.c.l.b16 %v1654
    %v1758 = vunpack.c.l.b16 %v1655
    %v1759 = vunpack.c.l.b16 %v1656
    %v1760 = vunpack.c.l.b16 %v1657
    %v1761 = vunpack.c.l.b16 %v1658
    %v1762 = vunpack.c.l.b16 %v1659
    %v1763 = vunpack.c.l.b16 %v1660
    %v1764 = vunpack.c.l.b16 %v1661
    %v1765 = vunpack.c.l.b16 %v1662
    %v1766 = vunpack.c.l.b16 %v1663
    %v1767 = vunpack.c.l.b16 %v1664
    %v1768 = vunpack.c.l.b16 %v1665
    %v1769 = vpack.c.b16 %v1722, %v1721
    %v1770 = vpack.c.b16 %v1724, %v1723
    %v1771 = vpack.c.b16 %v1726, %v1725
    %v1772 = vpack.c.b16 %v1728, %v1727
    %v1773 = vpack.c.b16 %v1730, %v1729
    %v1774 = vpack.c.b16 %v1732, %v1731
    %v1775 = vpack.c.b16 %v1734, %v1733
    %v1776 = vpack.c.b16 %v1736, %v1735
    %v1777 = vpack.c.b16 %v1738, %v1737
    %v1778 = vpack.c.b16 %v1740, %v1739
    %v1779 = vpack.c.b16 %v1742, %v1741
    %v1780 = vpack.c.b16 %v1744, %v1743
    %v1781 = vpack.c.b16 %v1746, %v1745
    %v1782 = vpack.c.b16 %v1748, %v1747
    %v1783 = vpack.c.b16 %v1750, %v1749
    %v1784 = vpack.c.b16 %v1752, %v1751
    %v1785 = vpack.c.b16 %v1754, %v1753
    %v1786 = vpack.c.b16 %v1756, %v1755
    %v1787 = vpack.c.b16 %v1758, %v1757
    %v1788 = vpack.c.b16 %v1760, %v1759
    %v1789 = vpack.c.b16 %v1762, %v1761
    %v1790 = vpack.c.b16 %v1764, %v1763
    %v1791 = vpack.c.b16 %v1766, %v1765
    %v1792 = vpack.c.b16 %v1768, %v1767
    %1817 = vmatprep.subr.bf16.mxu0 0
    %1818 = vmatpush1.bf16.msra.mxu0 %v1769
    %1819 = vmatprep.subr.bf16.mxu0 0
    %1820 = vmatpush1.bf16.msra.mxu0 %v1770
    %1821 = vmatprep.subr.bf16.mxu0 0
    %1822 = vmatpush1.bf16.msra.mxu0 %v1771
    %1823 = vmatprep.subr.bf16.mxu0 0
    %1824 = vmatpush1.bf16.msra.mxu0 %v1772
    %1825 = vmatprep.subr.bf16.mxu0 0
    %1826 = vmatpush1.bf16.msra.mxu0 %v1773
    %1827 = vmatprep.subr.bf16.mxu0 0
    %1828 = vmatpush1.bf16.msra.mxu0 %v1774
    %1829 = vmatprep.subr.bf16.mxu0 0
    %1830 = vmatpush1.bf16.msra.mxu0 %v1775
    %1831 = vmatprep.subr.bf16.mxu0 0
    %1832 = vmatpush1.bf16.msra.mxu0 %v1776
    %1833 = vmatprep.subr.bf16.mxu0 0
    %1834 = vmatpush1.bf16.msra.mxu0 %v1777
    %1835 = vmatprep.subr.bf16.mxu0 0
    %1836 = vmatpush1.bf16.msra.mxu0 %v1778
    %1837 = vmatprep.subr.bf16.mxu0 0
    %1838 = vmatpush1.bf16.msra.mxu0 %v1779
    %1839 = vmatprep.subr.bf16.mxu0 0
    %1840 = vmatpush1.bf16.msra.mxu0 %v1780
    %1841 = vmatprep.subr.bf16.mxu0 0
    %1842 = vmatpush1.bf16.msra.mxu0 %v1781
    %1843 = vmatprep.subr.bf16.mxu0 0
    %1844 = vmatpush1.bf16.msra.mxu0 %v1782
    %1845 = vmatprep.subr.bf16.mxu0 0
    %1846 = vmatpush1.bf16.msra.mxu0 %v1783
    %1847 = vmatprep.subr.bf16.mxu0 0
    %1848 = vmatpush1.bf16.msra.mxu0 %v1784
    %1849 = vmatprep.mubr.bf16.mxu0 %v1571
    %1850 = vmatmul.mubr.bf16.gmra.mrb[0].mxu0 %v1570
    %v1851 = vpop.f32.mrb[0].mxu0
    %v1852 = vadd.f32 %v1671, %v1851
    %v1853 = vpop.f32.mrb[0].mxu0
    %v1854 = vpop.f32.mrb[0].mxu0
    %v1855 = vadd.f32 %v1671, %v1854
    %v1856 = vpop.f32.mrb[0].mxu0
    %1857 = vmatprep.mubr.bf16.mxu0 %v1574
    %1858 = vmatmul.mubr.bf16.gmra.mrb[0].mxu0 %v1573
    %v1859 = vpop.f32.mrb[0].mxu0
    %v1860 = vadd.f32 %v1671, %v1859
    %v1861 = vpop.f32.mrb[0].mxu0
    %v1862 = vpop.f32.mrb[0].mxu0
    %v1863 = vadd.f32 %v1671, %v1862
    %v1864 = vpop.f32.mrb[0].mxu0
    %1865 = vmatprep.mubr.bf16.mxu0 %v1577
    %1866 = vmatmul.mubr.bf16.gmra.mrb[0].mxu0 %v1576
    %v1867 = vpop.f32.mrb[0].mxu0
    %v1868 = vadd.f32 %v1671, %v1867
    %v1869 = vpop.f32.mrb[0].mxu0
    %v1870 = vpop.f32.mrb[0].mxu0
    %v1871 = vadd.f32 %v1671, %v1870
    %v1872 = vpop.f32.mrb[0].mxu0
    %1873 = vmatprep.mubr.bf16.mxu0 %v1580
    %1874 = vmatmul.mubr.bf16.gmra.mrb[0].mxu0 %v1579
    %v1875 = vpop.f32.mrb[0].mxu0
    %v1876 = vadd.f32 %v1671, %v1875
    %v1877 = vpop.f32.mrb[0].mxu0
    %v1878 = vpop.f32.mrb[0].mxu0
    %v1879 = vadd.f32 %v1671, %v1878
    %v1880 = vpop.f32.mrb[0].mxu0
    %1881 = vmatprep.mubr.bf16.mxu0 %v1583
    %1882 = vmatmul.mubr.bf16.gmra.mrb[0].mxu0 %v1582
    %v1883 = vpop.f32.mrb[0].mxu0
    %v1884 = vadd.f32 %v1671, %v1883
    %v1885 = vpop.f32.mrb[0].mxu0
    %v1886 = vpop.f32.mrb[0].mxu0
    %v1887 = vadd.f32 %v1671, %v1886
    %v1888 = vpop.f32.mrb[0].mxu0
    %1889 = vmatprep.mubr.bf16.mxu0 %v1586
    %1890 = vmatmul.mubr.bf16.gmra.mrb[0].mxu0 %v1585
    %v1891 = vpop.f32.mrb[0].mxu0
    %v1892 = vadd.f32 %v1671, %v1891
    %v1893 = vpop.f32.mrb[0].mxu0
    %v1894 = vpop.f32.mrb[0].mxu0
    %v1895 = vadd.f32 %v1671, %v1894
    %v1896 = vpop.f32.mrb[0].mxu0
    %1897 = vmatprep.mubr.bf16.mxu0 %v1589
    %1898 = vmatmul.mubr.bf16.gmra.mrb[0].mxu0 %v1588
    %v1899 = vpop.f32.mrb[0].mxu0
    %v1900 = vadd.f32 %v1671, %v1899
    %v1901 = vpop.f32.mrb[0].mxu0
    %v1902 = vpop.f32.mrb[0].mxu0
    %v1903 = vadd.f32 %v1671, %v1902
    %v1904 = vpop.f32.mrb[0].mxu0
    %1905 = vmatprep.mubr.bf16.mxu0 %v1592
    %1906 = vmatmul.mubr.bf16.gmra.mrb[0].mxu0 %v1591
    %v1907 = vpop.f32.mrb[0].mxu0
    %v1908 = vadd.f32 %v1671, %v1907
    %v1909 = vpop.f32.mrb[0].mxu0
    %v1910 = vpop.f32.mrb[0].mxu0
    %v1911 = vadd.f32 %v1671, %v1910
    %v1912 = vpop.f32.mrb[0].mxu0
    %1913 = vmatprep.mubr.bf16.mxu0 %v1595
    %1914 = vmatmul.mubr.bf16.gmra.mrb[0].mxu0 %v1594
    %v1915 = vpop.f32.mrb[0].mxu0
    %v1916 = vadd.f32 %v1671, %v1915
    %v1917 = vpop.f32.mrb[0].mxu0
    %v1918 = vpop.f32.mrb[0].mxu0
    %v1919 = vadd.f32 %v1671, %v1918
    %v1920 = vpop.f32.mrb[0].mxu0
    %1921 = vmatprep.mubr.bf16.mxu0 %v1598
    %1922 = vmatmul.mubr.bf16.gmra.mrb[0].mxu0 %v1597
    %v1923 = vpop.f32.mrb[0].mxu0
    %v1924 = vadd.f32 %v1671, %v1923
    %v1925 = vpop.f32.mrb[0].mxu0
    %v1926 = vpop.f32.mrb[0].mxu0
    %v1927 = vadd.f32 %v1671, %v1926
    %v1928 = vpop.f32.mrb[0].mxu0
    %1929 = vmatprep.mubr.bf16.mxu0 %v1601
    %1930 = vmatmul.mubr.bf16.gmra.mrb[0].mxu0 %v1600
    %v1931 = vpop.f32.mrb[0].mxu0
    %v1932 = vadd.f32 %v1671, %v1931
    %v1933 = vpop.f32.mrb[0].mxu0
    %v1934 = vpop.f32.mrb[0].mxu0
    %v1935 = vadd.f32 %v1671, %v1934
    %v1936 = vpop.f32.mrb[0].mxu0
    %1937 = vmatprep.mubr.bf16.mxu0 %v1604
    %1938 = vmatmul.mubr.bf16.gmra.mrb[0].mxu0 %v1603
    %v1939 = vpop.f32.mrb[0].mxu0
    %v1940 = vadd.f32 %v1671, %v1939
    %v1941 = vpop.f32.mrb[0].mxu0
    %v1942 = vpop.f32.mrb[0].mxu0
    %v1943 = vadd.f32 %v1671, %v1942
    %v1944 = vpop.f32.mrb[0].mxu0
    %1945 = vmatprep.mubr.bf16.mxu0 %v1607
    %1946 = vmatmul.mubr.bf16.gmra.mrb[0].mxu0 %v1606
    %v1947 = vpop.f32.mrb[0].mxu0
    %v1948 = vadd.f32 %v1671, %v1947
    %v1949 = vpop.f32.mrb[0].mxu0
    %v1950 = vpop.f32.mrb[0].mxu0
    %v1951 = vadd.f32 %v1671, %v1950
    %v1952 = vpop.f32.mrb[0].mxu0
    %1953 = vmatprep.mubr.bf16.mxu0 %v1610
    %1954 = vmatmul.mubr.bf16.gmra.mrb[0].mxu0 %v1609
    %v1955 = vpop.f32.mrb[0].mxu0
    %v1956 = vadd.f32 %v1671, %v1955
    %v1957 = vpop.f32.mrb[0].mxu0
    %v1958 = vpop.f32.mrb[0].mxu0
    %v1959 = vadd.f32 %v1671, %v1958
    %v1960 = vpop.f32.mrb[0].mxu0
    %1961 = vmatprep.mubr.bf16.mxu0 %v1613
    %1962 = vmatmul.mubr.bf16.gmra.mrb[0].mxu0 %v1612
    %v1963 = vpop.f32.mrb[0].mxu0
    %v1964 = vadd.f32 %v1671, %v1963
    %v1965 = vpop.f32.mrb[0].mxu0
    %v1966 = vpop.f32.mrb[0].mxu0
    %v1967 = vadd.f32 %v1671, %v1966
    %v1968 = vpop.f32.mrb[0].mxu0
    %1969 = vmatprep.mubr.bf16.mxu0 %v1616
    %1970 = vmatmul.mubr.bf16.gmra.mrb[0].mxu0 %v1615
    %v1971 = vpop.f32.mrb[0].mxu0
    %v1972 = vadd.f32 %v1671, %v1971
    %v1973 = vpop.f32.mrb[0].mxu0
    %v1974 = vpop.f32.mrb[0].mxu0
    %v1975 = vadd.f32 %v1671, %v1974
    %v1976 = vpop.f32.mrb[0].mxu0
    %1977 = vdwg.mxu0
    %1978 = vmatprep.subr.bf16.mxu0 0
    %1979 = vmatpush1.bf16.msra.mxu0 %v1785
    %1980 = vmatprep.subr.bf16.mxu0 0
    %1981 = vmatpush1.bf16.msra.mxu0 %v1786
    %1982 = vmatprep.subr.bf16.mxu0 0
    %1983 = vmatpush1.bf16.msra.mxu0 %v1787
    %1984 = vmatprep.subr.bf16.mxu0 0
    %1985 = vmatpush1.bf16.msra.mxu0 %v1788
    %1986 = vmatprep.subr.bf16.mxu0 0
    %1987 = vmatpush1.bf16.msra.mxu0 %v1789
    %1988 = vmatprep.subr.bf16.mxu0 0
    %1989 = vmatpush1.bf16.msra.mxu0 %v1790
    %1990 = vmatprep.subr.bf16.mxu0 0
    %1991 = vmatpush1.bf16.msra.mxu0 %v1791
    %1992 = vmatprep.subr.bf16.mxu0 0
    %1993 = vmatpush1.bf16.msra.mxu0 %v1792
    %1994 = vmatprep.subr.bf16.mxu0 0
    %1995 = vmatpush1.bf16.msra.mxu0 0
    %1996 = vmatprep.subr.bf16.mxu0 0
    %1997 = vmatpush1.bf16.msra.mxu0 0
    %1998 = vmatprep.subr.bf16.mxu0 0
    %1999 = vmatpush1.bf16.msra.mxu0 0
    %2000 = vmatprep.subr.bf16.mxu0 0
    %2001 = vmatpush1.bf16.msra.mxu0 0
    %2002 = vmatprep.subr.bf16.mxu0 0
    %2003 = vmatpush1.bf16.msra.mxu0 0
    %2004 = vmatprep.subr.bf16.mxu0 0
    %2005 = vmatpush1.bf16.msra.mxu0 0
    %2006 = vmatprep.subr.bf16.mxu0 0
    %2007 = vmatpush1.bf16.msra.mxu0 0
    %2008 = vmatprep.subr.bf16.mxu0 0
    %2009 = vmatpush1.bf16.msra.mxu0 0
    %2010 = vmatprep.mubr.bf16.mxu0 0
    %2011 = vmatmul.mubr.bf16.gmra.mrb[0].mxu0 %v1572
    %v2012 = vpop.f32.mrb[0].mxu0
    %v2013 = vadd.f32 %v1852, %v2012
    %v2014 = vpop.f32.mrb[0].mxu0
    %v2015 = vpop.f32.mrb[0].mxu0
    %v2016 = vadd.f32 %v1855, %v2015
    %v2017 = vpop.f32.mrb[0].mxu0
    %2018 = vmatprep.mubr.bf16.mxu0 0
    %2019 = vmatmul.mubr.bf16.gmra.mrb[0].mxu0 %v1575
    %v2020 = vpop.f32.mrb[0].mxu0
    %v2021 = vadd.f32 %v1860, %v2020
    %v2022 = vpop.f32.mrb[0].mxu0
    %v2023 = vpop.f32.mrb[0].mxu0
    %v2024 = vadd.f32 %v1863, %v2023
    %v2025 = vpop.f32.mrb[0].mxu0
    %2026 = vmatprep.mubr.bf16.mxu0 0
    %2027 = vmatmul.mubr.bf16.gmra.mrb[0].mxu0 %v1578
    %v2028 = vpop.f32.mrb[0].mxu0
    %v2029 = vadd.f32 %v1868, %v2028
    %v2030 = vpop.f32.mrb[0].mxu0
    %v2031 = vpop.f32.mrb[0].mxu0
    %v2032 = vadd.f32 %v1871, %v2031
    %v2033 = vpop.f32.mrb[0].mxu0
    %2034 = vmatprep.mubr.bf16.mxu0 0
    %2035 = vmatmul.mubr.bf16.gmra.mrb[0].mxu0 %v1581
    %v2036 = vpop.f32.mrb[0].mxu0
    %v2037 = vadd.f32 %v1876, %v2036
    %v2038 = vpop.f32.mrb[0].mxu0
    %v2039 = vpop.f32.mrb[0].mxu0
    %v2040 = vadd.f32 %v1879, %v2039
    %v2041 = vpop.f32.mrb[0].mxu0
    %2042 = vmatprep.mubr.bf16.mxu0 0
    %2043 = vmatmul.mubr.bf16.gmra.mrb[0].mxu0 %v1584
    %v2044 = vpop.f32.mrb[0].mxu0
    %v2045 = vadd.f32 %v1884, %v2044
    %v2046 = vpop.f32.mrb[0].mxu0
    %v2047 = vpop.f32.mrb[0].mxu0
    %v2048 = vadd.f32 %v1887, %v2047
    %v2049 = vpop.f32.mrb[0].mxu0
    %2050 = vmatprep.mubr.bf16.mxu0 0
    %2051 = vmatmul.mubr.bf16.gmra.mrb[0].mxu0 %v1587
    %v2052 = vpop.f32.mrb[0].mxu0
    %v2053 = vadd.f32 %v1892, %v2052
    %v2054 = vpop.f32.mrb[0].mxu0
    %v2055 = vpop.f32.mrb[0].mxu0
    %v2056 = vadd.f32 %v1895, %v2055
    %v2057 = vpop.f32.mrb[0].mxu0
    %2058 = vmatprep.mubr.bf16.mxu0 0
    %2059 = vmatmul.mubr.bf16.gmra.mrb[0].mxu0 %v1590
    %v2060 = vpop.f32.mrb[0].mxu0
    %v2061 = vadd.f32 %v1900, %v2060
    %v2062 = vpop.f32.mrb[0].mxu0
    %v2063 = vpop.f32.mrb[0].mxu0
    %v2064 = vadd.f32 %v1903, %v2063
    %v2065 = vpop.f32.mrb[0].mxu0
    %2066 = vmatprep.mubr.bf16.mxu0 0
    %2067 = vmatmul.mubr.bf16.gmra.mrb[0].mxu0 %v1593
    %v2068 = vpop.f32.mrb[0].mxu0
    %v2069 = vadd.f32 %v1908, %v2068
    %v2070 = vpop.f32.mrb[0].mxu0
    %v2071 = vpop.f32.mrb[0].mxu0
    %v2072 = vadd.f32 %v1911, %v2071
    %v2073 = vpop.f32.mrb[0].mxu0
    %2074 = vmatprep.mubr.bf16.mxu0 0
    %2075 = vmatmul.mubr.bf16.gmra.mrb[0].mxu0 %v1596
    %v2076 = vpop.f32.mrb[0].mxu0
    %v2077 = vadd.f32 %v1916, %v2076
    %v2078 = vpop.f32.mrb[0].mxu0
    %v2079 = vpop.f32.mrb[0].mxu0
    %v2080 = vadd.f32 %v1919, %v2079
    %v2081 = vpop.f32.mrb[0].mxu0
    %2082 = vmatprep.mubr.bf16.mxu0 0
    %2083 = vmatmul.mubr.bf16.gmra.mrb[0].mxu0 %v1599
    %v2084 = vpop.f32.mrb[0].mxu0
    %v2085 = vadd.f32 %v1924, %v2084
    %v2086 = vpop.f32.mrb[0].mxu0
    %v2087 = vpop.f32.mrb[0].mxu0
    %v2088 = vadd.f32 %v1927, %v2087
    %v2089 = vpop.f32.mrb[0].mxu0
    %2090 = vmatprep.mubr.bf16.mxu0 0
    %2091 = vmatmul.mubr.bf16.gmra.mrb[0].mxu0 %v1602
    %v2092 = vpop.f32.mrb[0].mxu0
    %v2093 = vadd.f32 %v1932, %v2092
    %v2094 = vpop.f32.mrb[0].mxu0
    %v2095 = vpop.f32.mrb[0].mxu0
    %v2096 = vadd.f32 %v1935, %v2095
    %v2097 = vpop.f32.mrb[0].mxu0
    %2098 = vmatprep.mubr.bf16.mxu0 0
    %2099 = vmatmul.mubr.bf16.gmra.mrb[0].mxu0 %v1605
    %v2100 = vpop.f32.mrb[0].mxu0
    %v2101 = vadd.f32 %v1940, %v2100
    %v2102 = vpop.f32.mrb[0].mxu0
    %v2103 = vpop.f32.mrb[0].mxu0
    %v2104 = vadd.f32 %v1943, %v2103
    %v2105 = vpop.f32.mrb[0].mxu0
    %2106 = vmatprep.mubr.bf16.mxu0 0
    %2107 = vmatmul.mubr.bf16.gmra.mrb[0].mxu0 %v1608
    %v2108 = vpop.f32.mrb[0].mxu0
    %v2109 = vadd.f32 %v1948, %v2108
    %v2110 = vpop.f32.mrb[0].mxu0
    %v2111 = vpop.f32.mrb[0].mxu0
    %v2112 = vadd.f32 %v1951, %v2111
    %v2113 = vpop.f32.mrb[0].mxu0
    %2114 = vmatprep.mubr.bf16.mxu0 0
    %2115 = vmatmul.mubr.bf16.gmra.mrb[0].mxu0 %v1611
    %v2116 = vpop.f32.mrb[0].mxu0
    %v2117 = vadd.f32 %v1956, %v2116
    %v2118 = vpop.f32.mrb[0].mxu0
    %v2119 = vpop.f32.mrb[0].mxu0
    %v2120 = vadd.f32 %v1959, %v2119
    %v2121 = vpop.f32.mrb[0].mxu0
    %2122 = vmatprep.mubr.bf16.mxu0 0
    %2123 = vmatmul.mubr.bf16.gmra.mrb[0].mxu0 %v1614
    %v2124 = vpop.f32.mrb[0].mxu0
    %v2125 = vadd.f32 %v1964, %v2124
    %v2126 = vpop.f32.mrb[0].mxu0
    %v2127 = vpop.f32.mrb[0].mxu0
    %v2128 = vadd.f32 %v1967, %v2127
    %v2129 = vpop.f32.mrb[0].mxu0
    %2130 = vmatprep.mubr.bf16.mxu0 0
    %2131 = vmatmul.mubr.bf16.gmra.mrb[0].mxu0 %v1617
    %v2132 = vpop.f32.mrb[0].mxu0
    %v2133 = vadd.f32 %v1972, %v2132
    %v2134 = vpop.f32.mrb[0].mxu0
    %v2135 = vpop.f32.mrb[0].mxu0
    %v2136 = vadd.f32 %v1975, %v2135
    %v2137 = vpop.f32.mrb[0].mxu0
    %2138 = vdwg.mxu0
    %v2139 = vld [vmem:[%s1] sm:$0x1]
    %v2140 = vld [vmem:[%s1 + $0x1] sm:$0x1]
    %v2143 = vlaneseq
    %v2144 = vshrl.u32 %v2143, 7
    %v2145 = vsub.s32 0, %v2144
    %v2146 = vrot.slane %v2139, %v2145
    %v2147 = vlaneseq
    %v2148 = vshrl.u32 %v2147, 7
    %v2149 = vsub.s32 0, %v2148
    %v2150 = vrot.slane %v2140, %v2149
    %v2153 = vadd.f32 %v2013, %v2146
    %v2154 = vadd.f32 %v2016, %v2146
    %v2155 = vadd.f32 %v2021, %v2146
    %v2156 = vadd.f32 %v2024, %v2146
    %v2157 = vadd.f32 %v2029, %v2146
    %v2158 = vadd.f32 %v2032, %v2146
    %v2159 = vadd.f32 %v2037, %v2146
    %v2160 = vadd.f32 %v2040, %v2146
    %v2161 = vadd.f32 %v2045, %v2146
    %v2162 = vadd.f32 %v2048, %v2146
    %v2163 = vadd.f32 %v2053, %v2146
    %v2164 = vadd.f32 %v2056, %v2146
    %v2165 = vadd.f32 %v2061, %v2146
    %v2166 = vadd.f32 %v2064, %v2146
    %v2167 = vadd.f32 %v2069, %v2146
    %v2168 = vadd.f32 %v2072, %v2146
    %v2169 = vadd.f32 %v2077, %v2150
    %v2170 = vadd.f32 %v2080, %v2150
    %v2171 = vadd.f32 %v2085, %v2150
    %v2172 = vadd.f32 %v2088, %v2150
    %v2173 = vadd.f32 %v2093, %v2150
    %v2174 = vadd.f32 %v2096, %v2150
    %v2175 = vadd.f32 %v2101, %v2150
    %v2176 = vadd.f32 %v2104, %v2150
    %v2177 = vadd.f32 %v2109, %v2150
    %v2178 = vadd.f32 %v2112, %v2150
    %v2179 = vadd.f32 %v2117, %v2150
    %v2180 = vadd.f32 %v2120, %v2150
    %v2181 = vadd.f32 %v2125, %v2150
    %v2182 = vadd.f32 %v2128, %v2150
    %v2183 = vadd.f32 %v2133, %v2150
    %v2184 = vadd.f32 %v2136, %v2150
    %v2185 = vld [vmem:[%s6] sm:$0x1]
    %v2186 = vld [vmem:[%s7] sm:$0x1]
    %v2187 = vld [vmem:[%s12] sm:$0xff]
    %v2188 = vld [vmem:[%s12 + $0x8] sm:$0xff]
    %v2189 = vld [vmem:[%s12 + $0x10] sm:$0xff]
    %v2190 = vld [vmem:[%s12 + $0x18] sm:$0xff]
    %v2191 = vld [vmem:[%s12 + $0x20] sm:$0xff]
    %v2192 = vld [vmem:[%s12 + $0x28] sm:$0xff]
    %v2193 = vld [vmem:[%s12 + $0x30] sm:$0xff]
    %v2194 = vld [vmem:[%s12 + $0x38] sm:$0xff]
    %v2195 = vld [vmem:[%s12 + $0x40] sm:$0xff]
    %v2196 = vld [vmem:[%s12 + $0x48] sm:$0xff]
    %v2197 = vld [vmem:[%s12 + $0x50] sm:$0xff]
    %v2198 = vld [vmem:[%s12 + $0x58] sm:$0xff]
    %v2199 = vld [vmem:[%s12 + $0x60] sm:$0xff]
    %v2200 = vld [vmem:[%s12 + $0x68] sm:$0xff]
    %v2201 = vld [vmem:[%s12 + $0x70] sm:$0xff]
    %v2202 = vld [vmem:[%s12 + $0x78] sm:$0xff]
    %v2203 = vld [vmem:[%s13] sm:$0xff]
    %v2204 = vld [vmem:[%s13 + $0x8] sm:$0xff]
    %v2205 = vld [vmem:[%s13 + $0x10] sm:$0xff]
    %v2206 = vld [vmem:[%s13 + $0x18] sm:$0xff]
    %v2207 = vadd.f32 %v2153, %v2154
    %v2208 = vadd.f32 %v2207, %v2155
    %v2209 = vadd.f32 %v2208, %v2156
    %v2210 = vadd.f32 %v2209, %v2157
    %v2211 = vadd.f32 %v2210, %v2158
    %v2212 = vadd.f32 %v2211, %v2159
    %v2213 = vadd.f32 %v2212, %v2160
    %v2214 = vadd.f32 %v2213, %v2161
    %v2215 = vadd.f32 %v2214, %v2162
    %v2216 = vadd.f32 %v2215, %v2163
    %v2217 = vadd.f32 %v2216, %v2164
    %v2218 = vadd.f32 %v2217, %v2165
    %v2219 = vadd.f32 %v2218, %v2166
    %v2220 = vadd.f32 %v2219, %v2167
    %v2221 = vadd.f32 %v2220, %v2168
    %v2222 = vrot.slane %v2221, 4
    %v2223 = vadd.f32 %v2221, %v2222
    %v2224 = vrot.slane %v2223, 2
    %v2225 = vadd.f32 %v2223, %v2224
    %v2226 = vrot.slane %v2225, 1
    %v2227 = vadd.f32 %v2225, %v2226
    %v2228 = vadd.f32 %v2169, %v2170
    %v2229 = vadd.f32 %v2228, %v2171
    %v2230 = vadd.f32 %v2229, %v2172
    %v2231 = vadd.f32 %v2230, %v2173
    %v2232 = vadd.f32 %v2231, %v2174
    %v2233 = vadd.f32 %v2232, %v2175
    %v2234 = vadd.f32 %v2233, %v2176
    %v2235 = vadd.f32 %v2234, %v2177
    %v2236 = vadd.f32 %v2235, %v2178
    %v2237 = vadd.f32 %v2236, %v2179
    %v2238 = vadd.f32 %v2237, %v2180
    %v2239 = vadd.f32 %v2238, %v2181
    %v2240 = vadd.f32 %v2239, %v2182
    %v2241 = vadd.f32 %v2240, %v2183
    %v2242 = vadd.f32 %v2241, %v2184
    %v2243 = vrot.slane %v2242, 4
    %v2244 = vadd.f32 %v2242, %v2243
    %v2245 = vrot.slane %v2244, 2
    %v2246 = vadd.f32 %v2244, %v2245
    %v2247 = vrot.slane %v2246, 1
    %v2248 = vadd.f32 %v2246, %v2247
    %v2251 = vsel %vm217, %v2248, %v2227
    %2253 = vmatprep.subr.mxu0 0.0
    %2254 = vmatpush1.msra.mxu0 %v2187
    %2255 = vmatprep.subr.mxu0 0.0
    %2256 = vmatpush1.msra.mxu0 %v2188
    %2257 = vmatprep.subr.mxu0 0.0
    %2258 = vmatpush1.msra.mxu0 %v2189
    %2259 = vmatprep.subr.mxu0 0.0
    %2260 = vmatpush1.msra.mxu0 %v2190
    %2261 = vmatprep.subr.mxu0 0.0
    %2262 = vmatpush1.msra.mxu0 %v2191
    %2263 = vmatprep.subr.mxu0 0.0
    %2264 = vmatpush1.msra.mxu0 %v2192
    %2265 = vmatprep.subr.mxu0 0.0
    %2266 = vmatpush1.msra.mxu0 %v2193
    %2267 = vmatprep.subr.mxu0 0.0
    %2268 = vmatpush1.msra.mxu0 %v2194
    %2269 = vmatprep.subr.mxu0 0.0
    %2270 = vmatpush1.msra.mxu0 %v2195
    %2271 = vmatprep.subr.mxu0 0.0
    %2272 = vmatpush1.msra.mxu0 %v2196
    %2273 = vmatprep.subr.mxu0 0.0
    %2274 = vmatpush1.msra.mxu0 %v2197
    %2275 = vmatprep.subr.mxu0 0.0
    %2276 = vmatpush1.msra.mxu0 %v2198
    %2277 = vmatprep.subr.mxu0 0.0
    %2278 = vmatpush1.msra.mxu0 %v2199
    %2279 = vmatprep.subr.mxu0 0.0
    %2280 = vmatpush1.msra.mxu0 %v2200
    %2281 = vmatprep.subr.mxu0 0.0
    %2282 = vmatpush1.msra.mxu0 %v2201
    %2283 = vmatprep.subr.mxu0 0.0
    %2284 = vmatpush1.msra.mxu0 %v2202
    %2285 = vmatprep.subr.mxu0 0.0
    %2286 = vmatpush1.msra.mxu0 0.0
    %2287 = vmatprep.subr.mxu0 0.0
    %2288 = vmatpush1.msra.mxu0 0.0
    %2289 = vmatprep.subr.mxu0 0.0
    %2290 = vmatpush1.msra.mxu0 0.0
    %2291 = vmatprep.subr.mxu0 0.0
    %2292 = vmatpush1.msra.mxu0 0.0
    %2293 = vmatprep.subr.mxu0 0.0
    %2294 = vmatpush1.msra.mxu0 0.0
    %2295 = vmatprep.subr.mxu0 0.0
    %2296 = vmatpush1.msra.mxu0 0.0
    %2297 = vmatprep.subr.mxu0 0.0
    %2298 = vmatpush1.msra.mxu0 0.0
    %2299 = vmatprep.subr.mxu0 0.0
    %2300 = vmatpush1.msra.mxu0 0.0
    %2301 = vmatprep.subr.mxu0 0.0
    %2302 = vmatpush1.msra.mxu0 0.0
    %2303 = vmatprep.subr.mxu0 0.0
    %2304 = vmatpush1.msra.mxu0 0.0
    %2305 = vmatprep.subr.mxu0 0.0
    %2306 = vmatpush1.msra.mxu0 0.0
    %2307 = vmatprep.subr.mxu0 0.0
    %2308 = vmatpush1.msra.mxu0 0.0
    %2309 = vmatprep.subr.mxu0 0.0
    %2310 = vmatpush1.msra.mxu0 0.0
    %2311 = vmatprep.subr.mxu0 0.0
    %2312 = vmatpush1.msra.mxu0 0.0
    %2313 = vmatprep.subr.mxu0 0.0
    %2314 = vmatpush1.msra.mxu0 0.0
    %2315 = vmatprep.subr.mxu0 0.0
    %2316 = vmatpush1.msra.mxu0 0.0
    %2317 = vmatprep.mubr.f32.mxu0 0.0
    %2318 = vmatmul.mubr.f32.gmra.mrb[0].mxu0 %v2251
    %v2319 = vpop.f32.mrb[0].mxu0
    %v2320 = vadd.f32 0.0, %v2319
    %v2321 = vpop.f32.mrb[0].mxu0
    %2322 = vdwg.mxu0
    %v2323 = vmul.f32 %v2153, %v2153
    %v2324 = vmul.f32 %v2154, %v2154
    %v2325 = vmul.f32 %v2155, %v2155
    %v2326 = vmul.f32 %v2156, %v2156
    %v2327 = vmul.f32 %v2157, %v2157
    %v2328 = vmul.f32 %v2158, %v2158
    %v2329 = vmul.f32 %v2159, %v2159
    %v2330 = vmul.f32 %v2160, %v2160
    %v2331 = vmul.f32 %v2161, %v2161
    %v2332 = vmul.f32 %v2162, %v2162
    %v2333 = vmul.f32 %v2163, %v2163
    %v2334 = vmul.f32 %v2164, %v2164
    %v2335 = vmul.f32 %v2165, %v2165
    %v2336 = vmul.f32 %v2166, %v2166
    %v2337 = vmul.f32 %v2167, %v2167
    %v2338 = vmul.f32 %v2168, %v2168
    %v2339 = vmul.f32 %v2169, %v2169
    %v2340 = vmul.f32 %v2170, %v2170
    %v2341 = vmul.f32 %v2171, %v2171
    %v2342 = vmul.f32 %v2172, %v2172
    %v2343 = vmul.f32 %v2173, %v2173
    %v2344 = vmul.f32 %v2174, %v2174
    %v2345 = vmul.f32 %v2175, %v2175
    %v2346 = vmul.f32 %v2176, %v2176
    %v2347 = vmul.f32 %v2177, %v2177
    %v2348 = vmul.f32 %v2178, %v2178
    %v2349 = vmul.f32 %v2179, %v2179
    %v2350 = vmul.f32 %v2180, %v2180
    %v2351 = vmul.f32 %v2181, %v2181
    %v2352 = vmul.f32 %v2182, %v2182
    %v2353 = vmul.f32 %v2183, %v2183
    %v2354 = vmul.f32 %v2184, %v2184
    %v2355 = vadd.f32 %v2323, %v2324
    %v2356 = vadd.f32 %v2355, %v2325
    %v2357 = vadd.f32 %v2356, %v2326
    %v2358 = vadd.f32 %v2357, %v2327
    %v2359 = vadd.f32 %v2358, %v2328
    %v2360 = vadd.f32 %v2359, %v2329
    %v2361 = vadd.f32 %v2360, %v2330
    %v2362 = vadd.f32 %v2361, %v2331
    %v2363 = vadd.f32 %v2362, %v2332
    %v2364 = vadd.f32 %v2363, %v2333
    %v2365 = vadd.f32 %v2364, %v2334
    %v2366 = vadd.f32 %v2365, %v2335
    %v2367 = vadd.f32 %v2366, %v2336
    %v2368 = vadd.f32 %v2367, %v2337
    %v2369 = vadd.f32 %v2368, %v2338
    %v2370 = vrot.slane %v2369, 4
    %v2371 = vadd.f32 %v2369, %v2370
    %v2372 = vrot.slane %v2371, 2
    %v2373 = vadd.f32 %v2371, %v2372
    %v2374 = vrot.slane %v2373, 1
    %v2375 = vadd.f32 %v2373, %v2374
    %v2376 = vadd.f32 %v2339, %v2340
    %v2377 = vadd.f32 %v2376, %v2341
    %v2378 = vadd.f32 %v2377, %v2342
    %v2379 = vadd.f32 %v2378, %v2343
    %v2380 = vadd.f32 %v2379, %v2344
    %v2381 = vadd.f32 %v2380, %v2345
    %v2382 = vadd.f32 %v2381, %v2346
    %v2383 = vadd.f32 %v2382, %v2347
    %v2384 = vadd.f32 %v2383, %v2348
    %v2385 = vadd.f32 %v2384, %v2349
    %v2386 = vadd.f32 %v2385, %v2350
    %v2387 = vadd.f32 %v2386, %v2351
    %v2388 = vadd.f32 %v2387, %v2352
    %v2389 = vadd.f32 %v2388, %v2353
    %v2390 = vadd.f32 %v2389, %v2354
    %v2391 = vrot.slane %v2390, 4
    %v2392 = vadd.f32 %v2390, %v2391
    %v2393 = vrot.slane %v2392, 2
    %v2394 = vadd.f32 %v2392, %v2393
    %v2395 = vrot.slane %v2394, 1
    %v2396 = vadd.f32 %v2394, %v2395
    %v2399 = vsel %vm217, %v2396, %v2375
    %2401 = vmatprep.subr.mxu0 0.0
    %2402 = vmatpush1.msra.mxu0 %v2187
    %2403 = vmatprep.subr.mxu0 0.0
    %2404 = vmatpush1.msra.mxu0 %v2188
    %2405 = vmatprep.subr.mxu0 0.0
    %2406 = vmatpush1.msra.mxu0 %v2189
    %2407 = vmatprep.subr.mxu0 0.0
    %2408 = vmatpush1.msra.mxu0 %v2190
    %2409 = vmatprep.subr.mxu0 0.0
    %2410 = vmatpush1.msra.mxu0 %v2191
    %2411 = vmatprep.subr.mxu0 0.0
    %2412 = vmatpush1.msra.mxu0 %v2192
    %2413 = vmatprep.subr.mxu0 0.0
    %2414 = vmatpush1.msra.mxu0 %v2193
    %2415 = vmatprep.subr.mxu0 0.0
    %2416 = vmatpush1.msra.mxu0 %v2194
    %2417 = vmatprep.subr.mxu0 0.0
    %2418 = vmatpush1.msra.mxu0 %v2195
    %2419 = vmatprep.subr.mxu0 0.0
    %2420 = vmatpush1.msra.mxu0 %v2196
    %2421 = vmatprep.subr.mxu0 0.0
    %2422 = vmatpush1.msra.mxu0 %v2197
    %2423 = vmatprep.subr.mxu0 0.0
    %2424 = vmatpush1.msra.mxu0 %v2198
    %2425 = vmatprep.subr.mxu0 0.0
    %2426 = vmatpush1.msra.mxu0 %v2199
    %2427 = vmatprep.subr.mxu0 0.0
    %2428 = vmatpush1.msra.mxu0 %v2200
    %2429 = vmatprep.subr.mxu0 0.0
    %2430 = vmatpush1.msra.mxu0 %v2201
    %2431 = vmatprep.subr.mxu0 0.0
    %2432 = vmatpush1.msra.mxu0 %v2202
    %2433 = vmatprep.subr.mxu0 0.0
    %2434 = vmatpush1.msra.mxu0 0.0
    %2435 = vmatprep.subr.mxu0 0.0
    %2436 = vmatpush1.msra.mxu0 0.0
    %2437 = vmatprep.subr.mxu0 0.0
    %2438 = vmatpush1.msra.mxu0 0.0
    %2439 = vmatprep.subr.mxu0 0.0
    %2440 = vmatpush1.msra.mxu0 0.0
    %2441 = vmatprep.subr.mxu0 0.0
    %2442 = vmatpush1.msra.mxu0 0.0
    %2443 = vmatprep.subr.mxu0 0.0
    %2444 = vmatpush1.msra.mxu0 0.0
    %2445 = vmatprep.subr.mxu0 0.0
    %2446 = vmatpush1.msra.mxu0 0.0
    %2447 = vmatprep.subr.mxu0 0.0
    %2448 = vmatpush1.msra.mxu0 0.0
    %2449 = vmatprep.subr.mxu0 0.0
    %2450 = vmatpush1.msra.mxu0 0.0
    %2451 = vmatprep.subr.mxu0 0.0
    %2452 = vmatpush1.msra.mxu0 0.0
    %2453 = vmatprep.subr.mxu0 0.0
    %2454 = vmatpush1.msra.mxu0 0.0
    %2455 = vmatprep.subr.mxu0 0.0
    %2456 = vmatpush1.msra.mxu0 0.0
    %2457 = vmatprep.subr.mxu0 0.0
    %2458 = vmatpush1.msra.mxu0 0.0
    %2459 = vmatprep.subr.mxu0 0.0
    %2460 = vmatpush1.msra.mxu0 0.0
    %2461 = vmatprep.subr.mxu0 0.0
    %2462 = vmatpush1.msra.mxu0 0.0
    %2463 = vmatprep.subr.mxu0 0.0
    %2464 = vmatpush1.msra.mxu0 0.0
    %2465 = vmatprep.mubr.f32.mxu0 0.0
    %2466 = vmatmul.mubr.f32.gmra.mrb[0].mxu0 %v2399
    %v2467 = vpop.f32.mrb[0].mxu0
    %v2468 = vadd.f32 0.0, %v2467
    %v2469 = vpop.f32.mrb[0].mxu0
    %2470 = vdwg.mxu0
    %v2471 = vmul.f32 %v2320, 0.00390625
    %v2472 = vmul.f32 %v2468, 0.00390625
    %v2473 = vmul.f32 %v2471, %v2471
    %v2474 = vsub.f32 %v2472, %v2473
    %v2475 = vadd.f32 %v2474, 1e-05
    %v2476 = vrsqrt.pop %v2475
    %v2478 = vsel %vm444, %v2471, 0
    %2480 = vmatprep.subr.mxu0 0.0
    %2481 = vmatpush1.msra.mxu0 %v2203
    %2482 = vmatprep.subr.mxu0 0.0
    %2483 = vmatpush1.msra.mxu0 %v2204
    %2484 = vmatprep.subr.mxu0 0.0
    %2485 = vmatpush1.msra.mxu0 %v2205
    %2486 = vmatprep.subr.mxu0 0.0
    %2487 = vmatpush1.msra.mxu0 %v2206
    %2488 = vmatprep.subr.mxu0 0.0
    %2489 = vmatpush1.msra.mxu0 0.0
    %2490 = vmatprep.subr.mxu0 0.0
    %2491 = vmatpush1.msra.mxu0 0.0
    %2492 = vmatprep.subr.mxu0 0.0
    %2493 = vmatpush1.msra.mxu0 0.0
    %2494 = vmatprep.subr.mxu0 0.0
    %2495 = vmatpush1.msra.mxu0 0.0
    %2496 = vmatprep.subr.mxu0 0.0
    %2497 = vmatpush1.msra.mxu0 0.0
    %2498 = vmatprep.subr.mxu0 0.0
    %2499 = vmatpush1.msra.mxu0 0.0
    %2500 = vmatprep.subr.mxu0 0.0
    %2501 = vmatpush1.msra.mxu0 0.0
    %2502 = vmatprep.subr.mxu0 0.0
    %2503 = vmatpush1.msra.mxu0 0.0
    %2504 = vmatprep.subr.mxu0 0.0
    %2505 = vmatpush1.msra.mxu0 0.0
    %2506 = vmatprep.subr.mxu0 0.0
    %2507 = vmatpush1.msra.mxu0 0.0
    %2508 = vmatprep.subr.mxu0 0.0
    %2509 = vmatpush1.msra.mxu0 0.0
    %2510 = vmatprep.subr.mxu0 0.0
    %2511 = vmatpush1.msra.mxu0 0.0
    %2512 = vmatprep.subr.mxu0 0.0
    %2513 = vmatpush1.msra.mxu0 0.0
    %2514 = vmatprep.subr.mxu0 0.0
    %2515 = vmatpush1.msra.mxu0 0.0
    %2516 = vmatprep.subr.mxu0 0.0
    %2517 = vmatpush1.msra.mxu0 0.0
    %2518 = vmatprep.subr.mxu0 0.0
    %2519 = vmatpush1.msra.mxu0 0.0
    %2520 = vmatprep.subr.mxu0 0.0
    %2521 = vmatpush1.msra.mxu0 0.0
    %2522 = vmatprep.subr.mxu0 0.0
    %2523 = vmatpush1.msra.mxu0 0.0
    %2524 = vmatprep.subr.mxu0 0.0
    %2525 = vmatpush1.msra.mxu0 0.0
    %2526 = vmatprep.subr.mxu0 0.0
    %2527 = vmatpush1.msra.mxu0 0.0
    %2528 = vmatprep.subr.mxu0 0.0
    %2529 = vmatpush1.msra.mxu0 0.0
    %2530 = vmatprep.subr.mxu0 0.0
    %2531 = vmatpush1.msra.mxu0 0.0
    %2532 = vmatprep.subr.mxu0 0.0
    %2533 = vmatpush1.msra.mxu0 0.0
    %2534 = vmatprep.subr.mxu0 0.0
    %2535 = vmatpush1.msra.mxu0 0.0
    %2536 = vmatprep.subr.mxu0 0.0
    %2537 = vmatpush1.msra.mxu0 0.0
    %2538 = vmatprep.subr.mxu0 0.0
    %2539 = vmatpush1.msra.mxu0 0.0
    %2540 = vmatprep.subr.mxu0 0.0
    %2541 = vmatpush1.msra.mxu0 0.0
    %2542 = vmatprep.subr.mxu0 0.0
    %2543 = vmatpush1.msra.mxu0 0.0
    %2544 = vmatprep.mubr.f32.mxu0 0.0
    %2545 = vmatmul.mubr.f32.gmra.mrb[0].mxu0 %v2478
    %v2546 = vpop.f32.mrb[0].mxu0
    %v2547 = vadd.f32 0.0, %v2546
    %v2548 = vpop.f32.mrb[0].mxu0
    %2549 = vdwg.mxu0
    %v2551 = vsel %vm444, %v2476, 0
    %2553 = vmatprep.subr.mxu0 0.0
    %2554 = vmatpush1.msra.mxu0 %v2203
    %2555 = vmatprep.subr.mxu0 0.0
    %2556 = vmatpush1.msra.mxu0 %v2204
    %2557 = vmatprep.subr.mxu0 0.0
    %2558 = vmatpush1.msra.mxu0 %v2205
    %2559 = vmatprep.subr.mxu0 0.0
    %2560 = vmatpush1.msra.mxu0 %v2206
    %2561 = vmatprep.subr.mxu0 0.0
    %2562 = vmatpush1.msra.mxu0 0.0
    %2563 = vmatprep.subr.mxu0 0.0
    %2564 = vmatpush1.msra.mxu0 0.0
    %2565 = vmatprep.subr.mxu0 0.0
    %2566 = vmatpush1.msra.mxu0 0.0
    %2567 = vmatprep.subr.mxu0 0.0
    %2568 = vmatpush1.msra.mxu0 0.0
    %2569 = vmatprep.subr.mxu0 0.0
    %2570 = vmatpush1.msra.mxu0 0.0
    %2571 = vmatprep.subr.mxu0 0.0
    %2572 = vmatpush1.msra.mxu0 0.0
    %2573 = vmatprep.subr.mxu0 0.0
    %2574 = vmatpush1.msra.mxu0 0.0
    %2575 = vmatprep.subr.mxu0 0.0
    %2576 = vmatpush1.msra.mxu0 0.0
    %2577 = vmatprep.subr.mxu0 0.0
    %2578 = vmatpush1.msra.mxu0 0.0
    %2579 = vmatprep.subr.mxu0 0.0
    %2580 = vmatpush1.msra.mxu0 0.0
    %2581 = vmatprep.subr.mxu0 0.0
    %2582 = vmatpush1.msra.mxu0 0.0
    %2583 = vmatprep.subr.mxu0 0.0
    %2584 = vmatpush1.msra.mxu0 0.0
    %2585 = vmatprep.subr.mxu0 0.0
    %2586 = vmatpush1.msra.mxu0 0.0
    %2587 = vmatprep.subr.mxu0 0.0
    %2588 = vmatpush1.msra.mxu0 0.0
    %2589 = vmatprep.subr.mxu0 0.0
    %2590 = vmatpush1.msra.mxu0 0.0
    %2591 = vmatprep.subr.mxu0 0.0
    %2592 = vmatpush1.msra.mxu0 0.0
    %2593 = vmatprep.subr.mxu0 0.0
    %2594 = vmatpush1.msra.mxu0 0.0
    %2595 = vmatprep.subr.mxu0 0.0
    %2596 = vmatpush1.msra.mxu0 0.0
    %2597 = vmatprep.subr.mxu0 0.0
    %2598 = vmatpush1.msra.mxu0 0.0
    %2599 = vmatprep.subr.mxu0 0.0
    %2600 = vmatpush1.msra.mxu0 0.0
    %2601 = vmatprep.subr.mxu0 0.0
    %2602 = vmatpush1.msra.mxu0 0.0
    %2603 = vmatprep.subr.mxu0 0.0
    %2604 = vmatpush1.msra.mxu0 0.0
    %2605 = vmatprep.subr.mxu0 0.0
    %2606 = vmatpush1.msra.mxu0 0.0
    %2607 = vmatprep.subr.mxu0 0.0
    %2608 = vmatpush1.msra.mxu0 0.0
    %2609 = vmatprep.subr.mxu0 0.0
    %2610 = vmatpush1.msra.mxu0 0.0
    %2611 = vmatprep.subr.mxu0 0.0
    %2612 = vmatpush1.msra.mxu0 0.0
    %2613 = vmatprep.subr.mxu0 0.0
    %2614 = vmatpush1.msra.mxu0 0.0
    %2615 = vmatprep.subr.mxu0 0.0
    %2616 = vmatpush1.msra.mxu0 0.0
    %2617 = vmatprep.mubr.f32.mxu0 0.0
    %2618 = vmatmul.mubr.f32.gmra.mrb[0].mxu0 %v2551
    %v2619 = vpop.f32.mrb[0].mxu0
    %v2620 = vadd.f32 0.0, %v2619
    %v2621 = vpop.f32.mrb[0].mxu0
    %2622 = vdwg.mxu0
    %v2624 = vlaneseq
    %v2625 = vshrl.u32 %v2624, 7
    %v2626 = vsub.s32 0, %v2625
    %v2627 = vrot.slane %v2185, %v2626
    %v2629 = vmul.f32 %v2620, %v2627
    %v2630 = vmul.f32 %v2547, %v2629
    %v2632 = vlaneseq
    %v2633 = vshrl.u32 %v2632, 7
    %v2634 = vsub.s32 0, %v2633
    %v2635 = vrot.slane %v2186, %v2634
    %v2637 = vsub.f32 %v2635, %v2630
    %v2640 = vunpack.c.l.s4 1966171168
    %v2641 = vunpack.c.0.s8 %v2640
    %v2642 = vlaneseq
    %v2643 = vshrl.u32 %v2642, 7
    %v2644 = vsub.s32 %v2641, %v2643
    %v2645 = vrot.slane %v2629, %v2644
    %v2646 = vcombine.high %v2645, %v2645
    %v2648 = vunpack.c.l.s4 1966171168
    %v2649 = vunpack.c.0.s8 %v2648
    %v2650 = vlaneseq
    %v2651 = vshrl.u32 %v2650, 7
    %v2652 = vsub.s32 %v2649, %v2651
    %v2653 = vrot.slane %v2645, %v2652
    %v2655 = vunpack.c.l.s4 1966171168
    %v2656 = vunpack.c.0.s8 %v2655
    %v2657 = vlaneseq
    %v2658 = vshrl.u32 %v2657, 7
    %v2659 = vsub.s32 %v2656, %v2658
    %v2660 = vrot.slane %v2646, %v2659
    %v2663 = vunpack.c.l.s4 1966171168
    %v2664 = vunpack.c.0.s8 %v2663
    %v2665 = vlaneseq
    %v2666 = vshrl.u32 %v2665, 7
    %v2667 = vsub.s32 %v2664, %v2666
    %v2668 = vrot.slane %v2637, %v2667
    %v2669 = vcombine.high %v2668, %v2668
    %v2671 = vunpack.c.l.s4 1966171168
    %v2672 = vunpack.c.0.s8 %v2671
    %v2673 = vlaneseq
    %v2674 = vshrl.u32 %v2673, 7
    %v2675 = vsub.s32 %v2672, %v2674
    %v2676 = vrot.slane %v2668, %v2675
    %v2678 = vunpack.c.l.s4 1966171168
    %v2679 = vunpack.c.0.s8 %v2678
    %v2680 = vlaneseq
    %v2681 = vshrl.u32 %v2680, 7
    %v2682 = vsub.s32 %v2679, %v2681
    %v2683 = vrot.slane %v2669, %v2682
    %v2684 = vlaneseq
    %v2685 = vshrl.u32 %v2684, 7
    %v2686 = vsub.s32 0, %v2685
    %v2687 = vrot.slane %v2653, %v2686
    %v2688 = vlaneseq
    %v2689 = vshrl.u32 %v2688, 7
    %v2690 = vsub.s32 0, %v2689
    %v2691 = vrot.slane %v2660, %v2690
    %v2694 = vmul.f32 %v2153, %v2687
    %v2695 = vmul.f32 %v2154, %v2687
    %v2696 = vmul.f32 %v2155, %v2687
    %v2697 = vmul.f32 %v2156, %v2687
    %v2698 = vmul.f32 %v2157, %v2687
    %v2699 = vmul.f32 %v2158, %v2687
    %v2700 = vmul.f32 %v2159, %v2687
    %v2701 = vmul.f32 %v2160, %v2687
    %v2702 = vmul.f32 %v2161, %v2687
    %v2703 = vmul.f32 %v2162, %v2687
    %v2704 = vmul.f32 %v2163, %v2687
    %v2705 = vmul.f32 %v2164, %v2687
    %v2706 = vmul.f32 %v2165, %v2687
    %v2707 = vmul.f32 %v2166, %v2687
    %v2708 = vmul.f32 %v2167, %v2687
    %v2709 = vmul.f32 %v2168, %v2687
    %v2710 = vmul.f32 %v2169, %v2691
    %v2711 = vmul.f32 %v2170, %v2691
    %v2712 = vmul.f32 %v2171, %v2691
    %v2713 = vmul.f32 %v2172, %v2691
    %v2714 = vmul.f32 %v2173, %v2691
    %v2715 = vmul.f32 %v2174, %v2691
    %v2716 = vmul.f32 %v2175, %v2691
    %v2717 = vmul.f32 %v2176, %v2691
    %v2718 = vmul.f32 %v2177, %v2691
    %v2719 = vmul.f32 %v2178, %v2691
    %v2720 = vmul.f32 %v2179, %v2691
    %v2721 = vmul.f32 %v2180, %v2691
    %v2722 = vmul.f32 %v2181, %v2691
    %v2723 = vmul.f32 %v2182, %v2691
    %v2724 = vmul.f32 %v2183, %v2691
    %v2725 = vmul.f32 %v2184, %v2691
    %v2726 = vlaneseq
    %v2727 = vshrl.u32 %v2726, 7
    %v2728 = vsub.s32 0, %v2727
    %v2729 = vrot.slane %v2676, %v2728
    %v2730 = vlaneseq
    %v2731 = vshrl.u32 %v2730, 7
    %v2732 = vsub.s32 0, %v2731
    %v2733 = vrot.slane %v2683, %v2732
    %v2736 = vadd.f32 %v2694, %v2729
    %v2737 = vadd.f32 %v2695, %v2729
    %v2738 = vadd.f32 %v2696, %v2729
    %v2739 = vadd.f32 %v2697, %v2729
    %v2740 = vadd.f32 %v2698, %v2729
    %v2741 = vadd.f32 %v2699, %v2729
    %v2742 = vadd.f32 %v2700, %v2729
    %v2743 = vadd.f32 %v2701, %v2729
    %v2744 = vadd.f32 %v2702, %v2729
    %v2745 = vadd.f32 %v2703, %v2729
    %v2746 = vadd.f32 %v2704, %v2729
    %v2747 = vadd.f32 %v2705, %v2729
    %v2748 = vadd.f32 %v2706, %v2729
    %v2749 = vadd.f32 %v2707, %v2729
    %v2750 = vadd.f32 %v2708, %v2729
    %v2751 = vadd.f32 %v2709, %v2729
    %v2752 = vadd.f32 %v2710, %v2733
    %v2753 = vadd.f32 %v2711, %v2733
    %v2754 = vadd.f32 %v2712, %v2733
    %v2755 = vadd.f32 %v2713, %v2733
    %v2756 = vadd.f32 %v2714, %v2733
    %v2757 = vadd.f32 %v2715, %v2733
    %v2758 = vadd.f32 %v2716, %v2733
    %v2759 = vadd.f32 %v2717, %v2733
    %v2760 = vadd.f32 %v2718, %v2733
    %v2761 = vadd.f32 %v2719, %v2733
    %v2762 = vadd.f32 %v2720, %v2733
    %v2763 = vadd.f32 %v2721, %v2733
    %v2764 = vadd.f32 %v2722, %v2733
    %v2765 = vadd.f32 %v2723, %v2733
    %v2766 = vadd.f32 %v2724, %v2733
    %v2767 = vadd.f32 %v2725, %v2733
    %v2768 = vxor.u32 %v2736, 2147483648
    %v2769 = vxor.u32 %v2737, 2147483648
    %v2770 = vxor.u32 %v2738, 2147483648
    %v2771 = vxor.u32 %v2739, 2147483648
    %v2772 = vxor.u32 %v2740, 2147483648
    %v2773 = vxor.u32 %v2741, 2147483648
    %v2774 = vxor.u32 %v2742, 2147483648
    %v2775 = vxor.u32 %v2743, 2147483648
    %v2776 = vxor.u32 %v2744, 2147483648
    %v2777 = vxor.u32 %v2745, 2147483648
    %v2778 = vxor.u32 %v2746, 2147483648
    %v2779 = vxor.u32 %v2747, 2147483648
    %v2780 = vxor.u32 %v2748, 2147483648
    %v2781 = vxor.u32 %v2749, 2147483648
    %v2782 = vxor.u32 %v2750, 2147483648
    %v2783 = vxor.u32 %v2751, 2147483648
    %v2784 = vxor.u32 %v2752, 2147483648
    %v2785 = vxor.u32 %v2753, 2147483648
    %v2786 = vxor.u32 %v2754, 2147483648
    %v2787 = vxor.u32 %v2755, 2147483648
    %v2788 = vxor.u32 %v2756, 2147483648
    %v2789 = vxor.u32 %v2757, 2147483648
    %v2790 = vxor.u32 %v2758, 2147483648
    %v2791 = vxor.u32 %v2759, 2147483648
    %v2792 = vxor.u32 %v2760, 2147483648
    %v2793 = vxor.u32 %v2761, 2147483648
    %v2794 = vxor.u32 %v2762, 2147483648
    %v2795 = vxor.u32 %v2763, 2147483648
    %v2796 = vxor.u32 %v2764, 2147483648
    %v2797 = vxor.u32 %v2765, 2147483648
    %v2798 = vxor.u32 %v2766, 2147483648
    %v2799 = vxor.u32 %v2767, 2147483648
    %v2800 = vmul.f32 %v2768, 1.442695
    %v2801 = vpow.pop %v2800
    %v2802 = vmul.f32 %v2769, 1.442695
    %v2803 = vpow.pop %v2802
    %v2804 = vmul.f32 %v2770, 1.442695
    %v2805 = vpow.pop %v2804
    %v2806 = vmul.f32 %v2771, 1.442695
    %v2807 = vpow.pop %v2806
    %v2808 = vmul.f32 %v2772, 1.442695
    %v2809 = vpow.pop %v2808
    %v2810 = vmul.f32 %v2773, 1.442695
    %v2811 = vpow.pop %v2810
    %v2812 = vmul.f32 %v2774, 1.442695
    %v2813 = vpow.pop %v2812
    %v2814 = vmul.f32 %v2775, 1.442695
    %v2815 = vpow.pop %v2814
    %v2816 = vmul.f32 %v2776, 1.442695
    %v2817 = vpow.pop %v2816
    %v2818 = vmul.f32 %v2777, 1.442695
    %v2819 = vpow.pop %v2818
    %v2820 = vmul.f32 %v2778, 1.442695
    %v2821 = vpow.pop %v2820
    %v2822 = vmul.f32 %v2779, 1.442695
    %v2823 = vpow.pop %v2822
    %v2824 = vmul.f32 %v2780, 1.442695
    %v2825 = vpow.pop %v2824
    %v2826 = vmul.f32 %v2781, 1.442695
    %v2827 = vpow.pop %v2826
    %v2828 = vmul.f32 %v2782, 1.442695
    %v2829 = vpow.pop %v2828
    %v2830 = vmul.f32 %v2783, 1.442695
    %v2831 = vpow.pop %v2830
    %v2832 = vmul.f32 %v2784, 1.442695
    %v2833 = vpow.pop %v2832
    %v2834 = vmul.f32 %v2785, 1.442695
    %v2835 = vpow.pop %v2834
    %v2836 = vmul.f32 %v2786, 1.442695
    %v2837 = vpow.pop %v2836
    %v2838 = vmul.f32 %v2787, 1.442695
    %v2839 = vpow.pop %v2838
    %v2840 = vmul.f32 %v2788, 1.442695
    %v2841 = vpow.pop %v2840
    %v2842 = vmul.f32 %v2789, 1.442695
    %v2843 = vpow.pop %v2842
    %v2844 = vmul.f32 %v2790, 1.442695
    %v2845 = vpow.pop %v2844
    %v2846 = vmul.f32 %v2791, 1.442695
    %v2847 = vpow.pop %v2846
    %v2848 = vmul.f32 %v2792, 1.442695
    %v2849 = vpow.pop %v2848
    %v2850 = vmul.f32 %v2793, 1.442695
    %v2851 = vpow.pop %v2850
    %v2852 = vmul.f32 %v2794, 1.442695
    %v2853 = vpow.pop %v2852
    %v2854 = vmul.f32 %v2795, 1.442695
    %v2855 = vpow.pop %v2854
    %v2856 = vmul.f32 %v2796, 1.442695
    %v2857 = vpow.pop %v2856
    %v2858 = vmul.f32 %v2797, 1.442695
    %v2859 = vpow.pop %v2858
    %v2860 = vmul.f32 %v2798, 1.442695
    %v2861 = vpow.pop %v2860
    %v2862 = vmul.f32 %v2799, 1.442695
    %v2863 = vpow.pop %v2862
    %v2864 = vadd.f32 %v2801, 1.0
    %v2865 = vadd.f32 %v2803, 1.0
    %v2866 = vadd.f32 %v2805, 1.0
    %v2867 = vadd.f32 %v2807, 1.0
    %v2868 = vadd.f32 %v2809, 1.0
    %v2869 = vadd.f32 %v2811, 1.0
    %v2870 = vadd.f32 %v2813, 1.0
    %v2871 = vadd.f32 %v2815, 1.0
    %v2872 = vadd.f32 %v2817, 1.0
    %v2873 = vadd.f32 %v2819, 1.0
    %v2874 = vadd.f32 %v2821, 1.0
    %v2875 = vadd.f32 %v2823, 1.0
    %v2876 = vadd.f32 %v2825, 1.0
    %v2877 = vadd.f32 %v2827, 1.0
    %v2878 = vadd.f32 %v2829, 1.0
    %v2879 = vadd.f32 %v2831, 1.0
    %v2880 = vadd.f32 %v2833, 1.0
    %v2881 = vadd.f32 %v2835, 1.0
    %v2882 = vadd.f32 %v2837, 1.0
    %v2883 = vadd.f32 %v2839, 1.0
    %v2884 = vadd.f32 %v2841, 1.0
    %v2885 = vadd.f32 %v2843, 1.0
    %v2886 = vadd.f32 %v2845, 1.0
    %v2887 = vadd.f32 %v2847, 1.0
    %v2888 = vadd.f32 %v2849, 1.0
    %v2889 = vadd.f32 %v2851, 1.0
    %v2890 = vadd.f32 %v2853, 1.0
    %v2891 = vadd.f32 %v2855, 1.0
    %v2892 = vadd.f32 %v2857, 1.0
    %v2893 = vadd.f32 %v2859, 1.0
    %v2894 = vadd.f32 %v2861, 1.0
    %v2895 = vadd.f32 %v2863, 1.0
    %v2896 = vrcp.pop %v2864
    %v2897 = vmul.f32 1.0, %v2896
    %v2898 = vrcp.pop %v2865
    %v2899 = vmul.f32 1.0, %v2898
    %v2900 = vrcp.pop %v2866
    %v2901 = vmul.f32 1.0, %v2900
    %v2902 = vrcp.pop %v2867
    %v2903 = vmul.f32 1.0, %v2902
    %v2904 = vrcp.pop %v2868
    %v2905 = vmul.f32 1.0, %v2904
    %v2906 = vrcp.pop %v2869
    %v2907 = vmul.f32 1.0, %v2906
    %v2908 = vrcp.pop %v2870
    %v2909 = vmul.f32 1.0, %v2908
    %v2910 = vrcp.pop %v2871
    %v2911 = vmul.f32 1.0, %v2910
    %v2912 = vrcp.pop %v2872
    %v2913 = vmul.f32 1.0, %v2912
    %v2914 = vrcp.pop %v2873
    %v2915 = vmul.f32 1.0, %v2914
    %v2916 = vrcp.pop %v2874
    %v2917 = vmul.f32 1.0, %v2916
    %v2918 = vrcp.pop %v2875
    %v2919 = vmul.f32 1.0, %v2918
    %v2920 = vrcp.pop %v2876
    %v2921 = vmul.f32 1.0, %v2920
    %v2922 = vrcp.pop %v2877
    %v2923 = vmul.f32 1.0, %v2922
    %v2924 = vrcp.pop %v2878
    %v2925 = vmul.f32 1.0, %v2924
    %v2926 = vrcp.pop %v2879
    %v2927 = vmul.f32 1.0, %v2926
    %v2928 = vrcp.pop %v2880
    %v2929 = vmul.f32 1.0, %v2928
    %v2930 = vrcp.pop %v2881
    %v2931 = vmul.f32 1.0, %v2930
    %v2932 = vrcp.pop %v2882
    %v2933 = vmul.f32 1.0, %v2932
    %v2934 = vrcp.pop %v2883
    %v2935 = vmul.f32 1.0, %v2934
    %v2936 = vrcp.pop %v2884
    %v2937 = vmul.f32 1.0, %v2936
    %v2938 = vrcp.pop %v2885
    %v2939 = vmul.f32 1.0, %v2938
    %v2940 = vrcp.pop %v2886
    %v2941 = vmul.f32 1.0, %v2940
    %v2942 = vrcp.pop %v2887
    %v2943 = vmul.f32 1.0, %v2942
    %v2944 = vrcp.pop %v2888
    %v2945 = vmul.f32 1.0, %v2944
    %v2946 = vrcp.pop %v2889
    %v2947 = vmul.f32 1.0, %v2946
    %v2948 = vrcp.pop %v2890
    %v2949 = vmul.f32 1.0, %v2948
    %v2950 = vrcp.pop %v2891
    %v2951 = vmul.f32 1.0, %v2950
    %v2952 = vrcp.pop %v2892
    %v2953 = vmul.f32 1.0, %v2952
    %v2954 = vrcp.pop %v2893
    %v2955 = vmul.f32 1.0, %v2954
    %v2956 = vrcp.pop %v2894
    %v2957 = vmul.f32 1.0, %v2956
    %v2958 = vrcp.pop %v2895
    %v2959 = vmul.f32 1.0, %v2958
    %v2960 = vmul.f32 %v2736, %v2897
    %v2961 = vmul.f32 %v2737, %v2899
    %v2962 = vmul.f32 %v2738, %v2901
    %v2963 = vmul.f32 %v2739, %v2903
    %v2964 = vmul.f32 %v2740, %v2905
    %v2965 = vmul.f32 %v2741, %v2907
    %v2966 = vmul.f32 %v2742, %v2909
    %v2967 = vmul.f32 %v2743, %v2911
    %v2968 = vmul.f32 %v2744, %v2913
    %v2969 = vmul.f32 %v2745, %v2915
    %v2970 = vmul.f32 %v2746, %v2917
    %v2971 = vmul.f32 %v2747, %v2919
    %v2972 = vmul.f32 %v2748, %v2921
    %v2973 = vmul.f32 %v2749, %v2923
    %v2974 = vmul.f32 %v2750, %v2925
    %v2975 = vmul.f32 %v2751, %v2927
    %v2976 = vmul.f32 %v2752, %v2929
    %v2977 = vmul.f32 %v2753, %v2931
    %v2978 = vmul.f32 %v2754, %v2933
    %v2979 = vmul.f32 %v2755, %v2935
    %v2980 = vmul.f32 %v2756, %v2937
    %v2981 = vmul.f32 %v2757, %v2939
    %v2982 = vmul.f32 %v2758, %v2941
    %v2983 = vmul.f32 %v2759, %v2943
    %v2984 = vmul.f32 %v2760, %v2945
    %v2985 = vmul.f32 %v2761, %v2947
    %v2986 = vmul.f32 %v2762, %v2949
    %v2987 = vmul.f32 %v2763, %v2951
    %v2988 = vmul.f32 %v2764, %v2953
    %v2989 = vmul.f32 %v2765, %v2955
    %v2990 = vmul.f32 %v2766, %v2957
    %v2991 = vmul.f32 %v2767, %v2959
    %v3024 = vrot.slane %v2960, 7
    %v3025 = vrot.slane %v2961, 7
    %v3026 = vsel %vm992, %v3024, %v3025
    %v3027 = vrot.slane %v2962, 7
    %v3028 = vsel %vm992, %v3025, %v3027
    %v3029 = vrot.slane %v2963, 7
    %v3030 = vsel %vm992, %v3027, %v3029
    %v3031 = vrot.slane %v2964, 7
    %v3032 = vsel %vm992, %v3029, %v3031
    %v3033 = vrot.slane %v2965, 7
    %v3034 = vsel %vm992, %v3031, %v3033
    %v3035 = vrot.slane %v2966, 7
    %v3036 = vsel %vm992, %v3033, %v3035
    %v3037 = vrot.slane %v2967, 7
    %v3038 = vsel %vm992, %v3035, %v3037
    %v3039 = vrot.slane %v2968, 7
    %v3040 = vsel %vm992, %v3037, %v3039
    %v3041 = vrot.slane %v2969, 7
    %v3042 = vsel %vm992, %v3039, %v3041
    %v3043 = vrot.slane %v2970, 7
    %v3044 = vsel %vm992, %v3041, %v3043
    %v3045 = vrot.slane %v2971, 7
    %v3046 = vsel %vm992, %v3043, %v3045
    %v3047 = vrot.slane %v2972, 7
    %v3048 = vsel %vm992, %v3045, %v3047
    %v3049 = vrot.slane %v2973, 7
    %v3050 = vsel %vm992, %v3047, %v3049
    %v3051 = vrot.slane %v2974, 7
    %v3052 = vsel %vm992, %v3049, %v3051
    %v3053 = vrot.slane %v2975, 7
    %v3054 = vsel %vm992, %v3051, %v3053
    %v3055 = vrot.slane %v2976, 7
    %v3056 = vsel %vm992, %v3053, %v3055
    %v3057 = vrot.slane %v2977, 7
    %v3058 = vsel %vm992, %v3055, %v3057
    %v3059 = vrot.slane %v2978, 7
    %v3060 = vsel %vm992, %v3057, %v3059
    %v3061 = vrot.slane %v2979, 7
    %v3062 = vsel %vm992, %v3059, %v3061
    %v3063 = vrot.slane %v2980, 7
    %v3064 = vsel %vm992, %v3061, %v3063
    %v3065 = vrot.slane %v2981, 7
    %v3066 = vsel %vm992, %v3063, %v3065
    %v3067 = vrot.slane %v2982, 7
    %v3068 = vsel %vm992, %v3065, %v3067
    %v3069 = vrot.slane %v2983, 7
    %v3070 = vsel %vm992, %v3067, %v3069
    %v3071 = vrot.slane %v2984, 7
    %v3072 = vsel %vm992, %v3069, %v3071
    %v3073 = vrot.slane %v2985, 7
    %v3074 = vsel %vm992, %v3071, %v3073
    %v3075 = vrot.slane %v2986, 7
    %v3076 = vsel %vm992, %v3073, %v3075
    %v3077 = vrot.slane %v2987, 7
    %v3078 = vsel %vm992, %v3075, %v3077
    %v3079 = vrot.slane %v2988, 7
    %v3080 = vsel %vm992, %v3077, %v3079
    %v3081 = vrot.slane %v2989, 7
    %v3082 = vsel %vm992, %v3079, %v3081
    %v3083 = vrot.slane %v2990, 7
    %v3084 = vsel %vm992, %v3081, %v3083
    %v3085 = vrot.slane %v2991, 7
    %v3086 = vsel %vm992, %v3083, %v3085
    %v3119 = vsel %vm992, 0.0, %v3024
    %v3120 = vmul.f32 %v3119, %v1092
    %v3121 = vmul.f32 %v3026, %v1097
    %v3122 = vmul.f32 %v3028, %v1102
    %v3123 = vmul.f32 %v3030, %v1107
    %v3124 = vmul.f32 %v3032, %v1112
    %v3125 = vmul.f32 %v3034, %v1117
    %v3126 = vmul.f32 %v3036, %v1122
    %v3127 = vmul.f32 %v3038, %v1127
    %v3128 = vmul.f32 %v3040, %v1132
    %v3129 = vmul.f32 %v3042, %v1137
    %v3130 = vmul.f32 %v3044, %v1142
    %v3131 = vmul.f32 %v3046, %v1147
    %v3132 = vmul.f32 %v3048, %v1152
    %v3133 = vmul.f32 %v3050, %v1157
    %v3134 = vmul.f32 %v3052, %v1162
    %v3135 = vmul.f32 %v3054, %v1167
    %v3136 = vmul.f32 %v3056, %v1172
    %v3137 = vmul.f32 %v3058, %v1177
    %v3138 = vmul.f32 %v3060, %v1182
    %v3139 = vmul.f32 %v3062, %v1187
    %v3140 = vmul.f32 %v3064, %v1192
    %v3141 = vmul.f32 %v3066, %v1197
    %v3142 = vmul.f32 %v3068, %v1202
    %v3143 = vmul.f32 %v3070, %v1207
    %v3144 = vmul.f32 %v3072, %v1212
    %v3145 = vmul.f32 %v3074, %v1217
    %v3146 = vmul.f32 %v3076, %v1222
    %v3147 = vmul.f32 %v3078, %v1227
    %v3148 = vmul.f32 %v3080, %v1232
    %v3149 = vmul.f32 %v3082, %v1237
    %v3150 = vmul.f32 %v3084, %v1242
    %v3151 = vmul.f32 %v3086, %v1247
    %v3152 = vrot.slane %v2960, 1
    %v3153 = vrot.slane %v2961, 1
    %v3154 = vsel %vm1281, %v3152, %v3153
    %v3155 = vrot.slane %v2962, 1
    %v3156 = vsel %vm1281, %v3153, %v3155
    %v3157 = vrot.slane %v2963, 1
    %v3158 = vsel %vm1281, %v3155, %v3157
    %v3159 = vrot.slane %v2964, 1
    %v3160 = vsel %vm1281, %v3157, %v3159
    %v3161 = vrot.slane %v2965, 1
    %v3162 = vsel %vm1281, %v3159, %v3161
    %v3163 = vrot.slane %v2966, 1
    %v3164 = vsel %vm1281, %v3161, %v3163
    %v3165 = vrot.slane %v2967, 1
    %v3166 = vsel %vm1281, %v3163, %v3165
    %v3167 = vrot.slane %v2968, 1
    %v3168 = vsel %vm1281, %v3165, %v3167
    %v3169 = vrot.slane %v2969, 1
    %v3170 = vsel %vm1281, %v3167, %v3169
    %v3171 = vrot.slane %v2970, 1
    %v3172 = vsel %vm1281, %v3169, %v3171
    %v3173 = vrot.slane %v2971, 1
    %v3174 = vsel %vm1281, %v3171, %v3173
    %v3175 = vrot.slane %v2972, 1
    %v3176 = vsel %vm1281, %v3173, %v3175
    %v3177 = vrot.slane %v2973, 1
    %v3178 = vsel %vm1281, %v3175, %v3177
    %v3179 = vrot.slane %v2974, 1
    %v3180 = vsel %vm1281, %v3177, %v3179
    %v3181 = vrot.slane %v2975, 1
    %v3182 = vsel %vm1281, %v3179, %v3181
    %v3183 = vrot.slane %v2976, 1
    %v3184 = vsel %vm1281, %v3181, %v3183
    %v3185 = vrot.slane %v2977, 1
    %v3186 = vsel %vm1281, %v3183, %v3185
    %v3187 = vrot.slane %v2978, 1
    %v3188 = vsel %vm1281, %v3185, %v3187
    %v3189 = vrot.slane %v2979, 1
    %v3190 = vsel %vm1281, %v3187, %v3189
    %v3191 = vrot.slane %v2980, 1
    %v3192 = vsel %vm1281, %v3189, %v3191
    %v3193 = vrot.slane %v2981, 1
    %v3194 = vsel %vm1281, %v3191, %v3193
    %v3195 = vrot.slane %v2982, 1
    %v3196 = vsel %vm1281, %v3193, %v3195
    %v3197 = vrot.slane %v2983, 1
    %v3198 = vsel %vm1281, %v3195, %v3197
    %v3199 = vrot.slane %v2984, 1
    %v3200 = vsel %vm1281, %v3197, %v3199
    %v3201 = vrot.slane %v2985, 1
    %v3202 = vsel %vm1281, %v3199, %v3201
    %v3203 = vrot.slane %v2986, 1
    %v3204 = vsel %vm1281, %v3201, %v3203
    %v3205 = vrot.slane %v2987, 1
    %v3206 = vsel %vm1281, %v3203, %v3205
    %v3207 = vrot.slane %v2988, 1
    %v3208 = vsel %vm1281, %v3205, %v3207
    %v3209 = vrot.slane %v2989, 1
    %v3210 = vsel %vm1281, %v3207, %v3209
    %v3211 = vrot.slane %v2990, 1
    %v3212 = vsel %vm1281, %v3209, %v3211
    %v3213 = vrot.slane %v2991, 1
    %v3214 = vsel %vm1281, %v3211, %v3213
    %v3247 = vsel %vm1281, %v3213, 0.0
    %v3248 = vmul.f32 %v3154, %v1381
    %v3249 = vmul.f32 %v3156, %v1386
    %v3250 = vmul.f32 %v3158, %v1391
    %v3251 = vmul.f32 %v3160, %v1396
    %v3252 = vmul.f32 %v3162, %v1401
    %v3253 = vmul.f32 %v3164, %v1406
    %v3254 = vmul.f32 %v3166, %v1411
    %v3255 = vmul.f32 %v3168, %v1416
    %v3256 = vmul.f32 %v3170, %v1421
    %v3257 = vmul.f32 %v3172, %v1426
    %v3258 = vmul.f32 %v3174, %v1431
    %v3259 = vmul.f32 %v3176, %v1436
    %v3260 = vmul.f32 %v3178, %v1441
    %v3261 = vmul.f32 %v3180, %v1446
    %v3262 = vmul.f32 %v3182, %v1451
    %v3263 = vmul.f32 %v3184, %v1456
    %v3264 = vmul.f32 %v3186, %v1461
    %v3265 = vmul.f32 %v3188, %v1466
    %v3266 = vmul.f32 %v3190, %v1471
    %v3267 = vmul.f32 %v3192, %v1476
    %v3268 = vmul.f32 %v3194, %v1481
    %v3269 = vmul.f32 %v3196, %v1486
    %v3270 = vmul.f32 %v3198, %v1491
    %v3271 = vmul.f32 %v3200, %v1496
    %v3272 = vmul.f32 %v3202, %v1501
    %v3273 = vmul.f32 %v3204, %v1506
    %v3274 = vmul.f32 %v3206, %v1511
    %v3275 = vmul.f32 %v3208, %v1516
    %v3276 = vmul.f32 %v3210, %v1521
    %v3277 = vmul.f32 %v3212, %v1526
    %v3278 = vmul.f32 %v3214, %v1531
    %v3279 = vmul.f32 %v3247, %v1536
    %v3280 = vpack.c.bf16 %v3121, %v3120
    %v3281 = vpack.c.bf16 %v2961, %v2960
    %v3282 = vpack.c.bf16 %v3249, %v3248
    %v3283 = vpack.c.bf16 %v3123, %v3122
    %v3284 = vpack.c.bf16 %v2963, %v2962
    %v3285 = vpack.c.bf16 %v3251, %v3250
    %v3286 = vpack.c.bf16 %v3125, %v3124
    %v3287 = vpack.c.bf16 %v2965, %v2964
    %v3288 = vpack.c.bf16 %v3253, %v3252
    %v3289 = vpack.c.bf16 %v3127, %v3126
    %v3290 = vpack.c.bf16 %v2967, %v2966
    %v3291 = vpack.c.bf16 %v3255, %v3254
    %v3292 = vpack.c.bf16 %v3129, %v3128
    %v3293 = vpack.c.bf16 %v2969, %v2968
    %v3294 = vpack.c.bf16 %v3257, %v3256
    %v3295 = vpack.c.bf16 %v3131, %v3130
    %v3296 = vpack.c.bf16 %v2971, %v2970
    %v3297 = vpack.c.bf16 %v3259, %v3258
    %v3298 = vpack.c.bf16 %v3133, %v3132
    %v3299 = vpack.c.bf16 %v2973, %v2972
    %v3300 = vpack.c.bf16 %v3261, %v3260
    %v3301 = vpack.c.bf16 %v3135, %v3134
    %v3302 = vpack.c.bf16 %v2975, %v2974
    %v3303 = vpack.c.bf16 %v3263, %v3262
    %v3304 = vpack.c.bf16 %v3137, %v3136
    %v3305 = vpack.c.bf16 %v2977, %v2976
    %v3306 = vpack.c.bf16 %v3265, %v3264
    %v3307 = vpack.c.bf16 %v3139, %v3138
    %v3308 = vpack.c.bf16 %v2979, %v2978
    %v3309 = vpack.c.bf16 %v3267, %v3266
    %v3310 = vpack.c.bf16 %v3141, %v3140
    %v3311 = vpack.c.bf16 %v2981, %v2980
    %v3312 = vpack.c.bf16 %v3269, %v3268
    %v3313 = vpack.c.bf16 %v3143, %v3142
    %v3314 = vpack.c.bf16 %v2983, %v2982
    %v3315 = vpack.c.bf16 %v3271, %v3270
    %v3316 = vpack.c.bf16 %v3145, %v3144
    %v3317 = vpack.c.bf16 %v2985, %v2984
    %v3318 = vpack.c.bf16 %v3273, %v3272
    %v3319 = vpack.c.bf16 %v3147, %v3146
    %v3320 = vpack.c.bf16 %v2987, %v2986
    %v3321 = vpack.c.bf16 %v3275, %v3274
    %v3322 = vpack.c.bf16 %v3149, %v3148
    %v3323 = vpack.c.bf16 %v2989, %v2988
    %v3324 = vpack.c.bf16 %v3277, %v3276
    %v3325 = vpack.c.bf16 %v3151, %v3150
    %v3326 = vpack.c.bf16 %v2991, %v2990
    %v3327 = vpack.c.bf16 %v3279, %v3278
    %v3328 = vld [vmem:[%s8] sm:$0xf]
    %v3329 = vld [vmem:[%s8 + $0x4] sm:$0xf]
    %v3330 = vld [vmem:[%s8 + $0x8] sm:$0xf]
    %v3331 = vld [vmem:[%s8 + $0xc] sm:$0xf]
    %v3332 = vld [vmem:[%s8 + $0x10] sm:$0xf]
    %v3333 = vld [vmem:[%s8 + $0x14] sm:$0xf]
    %v3334 = vld [vmem:[%s8 + $0x18] sm:$0xf]
    %v3335 = vld [vmem:[%s8 + $0x1c] sm:$0xf]
    %v3336 = vld [vmem:[%s8 + $0x20] sm:$0xf]
    %v3337 = vld [vmem:[%s8 + $0x24] sm:$0xf]
    %v3338 = vld [vmem:[%s8 + $0x28] sm:$0xf]
    %v3339 = vld [vmem:[%s8 + $0x2c] sm:$0xf]
    %v3340 = vld [vmem:[%s8 + $0x30] sm:$0xf]
    %v3341 = vld [vmem:[%s8 + $0x34] sm:$0xf]
    %v3342 = vld [vmem:[%s8 + $0x38] sm:$0xf]
    %v3343 = vld [vmem:[%s8 + $0x3c] sm:$0xf]
    %v3344 = vld [vmem:[%s8 + $0x40] sm:$0xf]
    %v3345 = vld [vmem:[%s8 + $0x44] sm:$0xf]
    %v3346 = vld [vmem:[%s8 + $0x48] sm:$0xf]
    %v3347 = vld [vmem:[%s8 + $0x4c] sm:$0xf]
    %v3348 = vld [vmem:[%s8 + $0x50] sm:$0xf]
    %v3349 = vld [vmem:[%s8 + $0x54] sm:$0xf]
    %v3350 = vld [vmem:[%s8 + $0x58] sm:$0xf]
    %v3351 = vld [vmem:[%s8 + $0x5c] sm:$0xf]
    %v3352 = vld [vmem:[%s8 + $0x60] sm:$0xf]
    %v3353 = vld [vmem:[%s8 + $0x64] sm:$0xf]
    %v3354 = vld [vmem:[%s8 + $0x68] sm:$0xf]
    %v3355 = vld [vmem:[%s8 + $0x6c] sm:$0xf]
    %v3356 = vld [vmem:[%s8 + $0x70] sm:$0xf]
    %v3357 = vld [vmem:[%s8 + $0x74] sm:$0xf]
    %v3358 = vld [vmem:[%s8 + $0x78] sm:$0xf]
    %v3359 = vld [vmem:[%s8 + $0x7c] sm:$0xf]
    %v3360 = vld [vmem:[%s8 + $0x80] sm:$0xf]
    %v3361 = vld [vmem:[%s8 + $0x84] sm:$0xf]
    %v3362 = vld [vmem:[%s8 + $0x88] sm:$0xf]
    %v3363 = vld [vmem:[%s8 + $0x8c] sm:$0xf]
    %v3364 = vld [vmem:[%s8 + $0x90] sm:$0xf]
    %v3365 = vld [vmem:[%s8 + $0x94] sm:$0xf]
    %v3366 = vld [vmem:[%s8 + $0x98] sm:$0xf]
    %v3367 = vld [vmem:[%s8 + $0x9c] sm:$0xf]
    %v3368 = vld [vmem:[%s8 + $0xa0] sm:$0xf]
    %v3369 = vld [vmem:[%s8 + $0xa4] sm:$0xf]
    %v3370 = vld [vmem:[%s8 + $0xa8] sm:$0xf]
    %v3371 = vld [vmem:[%s8 + $0xac] sm:$0xf]
    %v3372 = vld [vmem:[%s8 + $0xb0] sm:$0xf]
    %v3373 = vld [vmem:[%s8 + $0xb4] sm:$0xf]
    %v3374 = vld [vmem:[%s8 + $0xb8] sm:$0xf]
    %v3375 = vld [vmem:[%s8 + $0xbc] sm:$0xf]
    %v3376 = vld [vmem:[%s9] sm:$0x1]
    %v3378 = vlaneseq
    %v3379 = vshrl.u32 %v3378, 7
    %v3380 = vsub.s32 0, %v3379
    %v3381 = vrot.slane %v3376, %v3380
    %v3431 = vunpack.c.l.b16 %v3328
    %v3432 = vunpack.c.l.b16 %v3329
    %v3433 = vunpack.c.l.b16 %v3330
    %v3434 = vunpack.c.l.b16 %v3331
    %v3435 = vunpack.c.l.b16 %v3332
    %v3436 = vunpack.c.l.b16 %v3333
    %v3437 = vunpack.c.l.b16 %v3334
    %v3438 = vunpack.c.l.b16 %v3335
    %v3439 = vunpack.c.l.b16 %v3336
    %v3440 = vunpack.c.l.b16 %v3337
    %v3441 = vunpack.c.l.b16 %v3338
    %v3442 = vunpack.c.l.b16 %v3339
    %v3443 = vunpack.c.l.b16 %v3340
    %v3444 = vunpack.c.l.b16 %v3341
    %v3445 = vunpack.c.l.b16 %v3342
    %v3446 = vunpack.c.l.b16 %v3343
    %v3447 = vunpack.c.l.b16 %v3344
    %v3448 = vunpack.c.l.b16 %v3345
    %v3449 = vunpack.c.l.b16 %v3346
    %v3450 = vunpack.c.l.b16 %v3347
    %v3451 = vunpack.c.l.b16 %v3348
    %v3452 = vunpack.c.l.b16 %v3349
    %v3453 = vunpack.c.l.b16 %v3350
    %v3454 = vunpack.c.l.b16 %v3351
    %v3455 = vunpack.c.l.b16 %v3352
    %v3456 = vunpack.c.l.b16 %v3353
    %v3457 = vunpack.c.l.b16 %v3354
    %v3458 = vunpack.c.l.b16 %v3355
    %v3459 = vunpack.c.l.b16 %v3356
    %v3460 = vunpack.c.l.b16 %v3357
    %v3461 = vunpack.c.l.b16 %v3358
    %v3462 = vunpack.c.l.b16 %v3359
    %v3463 = vunpack.c.l.b16 %v3360
    %v3464 = vunpack.c.l.b16 %v3361
    %v3465 = vunpack.c.l.b16 %v3362
    %v3466 = vunpack.c.l.b16 %v3363
    %v3467 = vunpack.c.l.b16 %v3364
    %v3468 = vunpack.c.l.b16 %v3365
    %v3469 = vunpack.c.l.b16 %v3366
    %v3470 = vunpack.c.l.b16 %v3367
    %v3471 = vunpack.c.l.b16 %v3368
    %v3472 = vunpack.c.l.b16 %v3369
    %v3473 = vunpack.c.l.b16 %v3370
    %v3474 = vunpack.c.l.b16 %v3371
    %v3475 = vunpack.c.l.b16 %v3372
    %v3476 = vunpack.c.l.b16 %v3373
    %v3477 = vunpack.c.l.b16 %v3374
    %v3478 = vunpack.c.l.b16 %v3375
    %v3479 = vpack.c.b16 %v3432, %v3431
    %v3480 = vpack.c.b16 %v3434, %v3433
    %v3481 = vpack.c.b16 %v3436, %v3435
    %v3482 = vpack.c.b16 %v3438, %v3437
    %v3483 = vpack.c.b16 %v3440, %v3439
    %v3484 = vpack.c.b16 %v3442, %v3441
    %v3485 = vpack.c.b16 %v3444, %v3443
    %v3486 = vpack.c.b16 %v3446, %v3445
    %v3487 = vpack.c.b16 %v3448, %v3447
    %v3488 = vpack.c.b16 %v3450, %v3449
    %v3489 = vpack.c.b16 %v3452, %v3451
    %v3490 = vpack.c.b16 %v3454, %v3453
    %v3491 = vpack.c.b16 %v3456, %v3455
    %v3492 = vpack.c.b16 %v3458, %v3457
    %v3493 = vpack.c.b16 %v3460, %v3459
    %v3494 = vpack.c.b16 %v3462, %v3461
    %v3495 = vpack.c.b16 %v3464, %v3463
    %v3496 = vpack.c.b16 %v3466, %v3465
    %v3497 = vpack.c.b16 %v3468, %v3467
    %v3498 = vpack.c.b16 %v3470, %v3469
    %v3499 = vpack.c.b16 %v3472, %v3471
    %v3500 = vpack.c.b16 %v3474, %v3473
    %v3501 = vpack.c.b16 %v3476, %v3475
    %v3502 = vpack.c.b16 %v3478, %v3477
    %3527 = vmatprep.subr.bf16.mxu0 0
    %3528 = vmatpush1.bf16.msra.mxu0 %v3479
    %3529 = vmatprep.subr.bf16.mxu0 0
    %3530 = vmatpush1.bf16.msra.mxu0 %v3480
    %3531 = vmatprep.subr.bf16.mxu0 0
    %3532 = vmatpush1.bf16.msra.mxu0 %v3481
    %3533 = vmatprep.subr.bf16.mxu0 0
    %3534 = vmatpush1.bf16.msra.mxu0 %v3482
    %3535 = vmatprep.subr.bf16.mxu0 0
    %3536 = vmatpush1.bf16.msra.mxu0 %v3483
    %3537 = vmatprep.subr.bf16.mxu0 0
    %3538 = vmatpush1.bf16.msra.mxu0 %v3484
    %3539 = vmatprep.subr.bf16.mxu0 0
    %3540 = vmatpush1.bf16.msra.mxu0 %v3485
    %3541 = vmatprep.subr.bf16.mxu0 0
    %3542 = vmatpush1.bf16.msra.mxu0 %v3486
    %3543 = vmatprep.subr.bf16.mxu0 0
    %3544 = vmatpush1.bf16.msra.mxu0 %v3487
    %3545 = vmatprep.subr.bf16.mxu0 0
    %3546 = vmatpush1.bf16.msra.mxu0 %v3488
    %3547 = vmatprep.subr.bf16.mxu0 0
    %3548 = vmatpush1.bf16.msra.mxu0 %v3489
    %3549 = vmatprep.subr.bf16.mxu0 0
    %3550 = vmatpush1.bf16.msra.mxu0 %v3490
    %3551 = vmatprep.subr.bf16.mxu0 0
    %3552 = vmatpush1.bf16.msra.mxu0 %v3491
    %3553 = vmatprep.subr.bf16.mxu0 0
    %3554 = vmatpush1.bf16.msra.mxu0 %v3492
    %3555 = vmatprep.subr.bf16.mxu0 0
    %3556 = vmatpush1.bf16.msra.mxu0 %v3493
    %3557 = vmatprep.subr.bf16.mxu0 0
    %3558 = vmatpush1.bf16.msra.mxu0 %v3494
    %3559 = vmatprep.mubr.bf16.mxu0 %v3281
    %3560 = vmatmul.mubr.bf16.gmra.mrb[0].mxu0 %v3280
    %v3561 = vpop.f32.mrb[0].mxu0
    %v3562 = vadd.f32 %v3381, %v3561
    %v3563 = vpop.f32.mrb[0].mxu0
    %v3564 = vpop.f32.mrb[0].mxu0
    %v3565 = vadd.f32 %v3381, %v3564
    %v3566 = vpop.f32.mrb[0].mxu0
    %3567 = vmatprep.mubr.bf16.mxu0 %v3284
    %3568 = vmatmul.mubr.bf16.gmra.mrb[0].mxu0 %v3283
    %v3569 = vpop.f32.mrb[0].mxu0
    %v3570 = vadd.f32 %v3381, %v3569
    %v3571 = vpop.f32.mrb[0].mxu0
    %v3572 = vpop.f32.mrb[0].mxu0
    %v3573 = vadd.f32 %v3381, %v3572
    %v3574 = vpop.f32.mrb[0].mxu0
    %3575 = vmatprep.mubr.bf16.mxu0 %v3287
    %3576 = vmatmul.mubr.bf16.gmra.mrb[0].mxu0 %v3286
    %v3577 = vpop.f32.mrb[0].mxu0
    %v3578 = vadd.f32 %v3381, %v3577
    %v3579 = vpop.f32.mrb[0].mxu0
    %v3580 = vpop.f32.mrb[0].mxu0
    %v3581 = vadd.f32 %v3381, %v3580
    %v3582 = vpop.f32.mrb[0].mxu0
    %3583 = vmatprep.mubr.bf16.mxu0 %v3290
    %3584 = vmatmul.mubr.bf16.gmra.mrb[0].mxu0 %v3289
    %v3585 = vpop.f32.mrb[0].mxu0
    %v3586 = vadd.f32 %v3381, %v3585
    %v3587 = vpop.f32.mrb[0].mxu0
    %v3588 = vpop.f32.mrb[0].mxu0
    %v3589 = vadd.f32 %v3381, %v3588
    %v3590 = vpop.f32.mrb[0].mxu0
    %3591 = vmatprep.mubr.bf16.mxu0 %v3293
    %3592 = vmatmul.mubr.bf16.gmra.mrb[0].mxu0 %v3292
    %v3593 = vpop.f32.mrb[0].mxu0
    %v3594 = vadd.f32 %v3381, %v3593
    %v3595 = vpop.f32.mrb[0].mxu0
    %v3596 = vpop.f32.mrb[0].mxu0
    %v3597 = vadd.f32 %v3381, %v3596
    %v3598 = vpop.f32.mrb[0].mxu0
    %3599 = vmatprep.mubr.bf16.mxu0 %v3296
    %3600 = vmatmul.mubr.bf16.gmra.mrb[0].mxu0 %v3295
    %v3601 = vpop.f32.mrb[0].mxu0
    %v3602 = vadd.f32 %v3381, %v3601
    %v3603 = vpop.f32.mrb[0].mxu0
    %v3604 = vpop.f32.mrb[0].mxu0
    %v3605 = vadd.f32 %v3381, %v3604
    %v3606 = vpop.f32.mrb[0].mxu0
    %3607 = vmatprep.mubr.bf16.mxu0 %v3299
    %3608 = vmatmul.mubr.bf16.gmra.mrb[0].mxu0 %v3298
    %v3609 = vpop.f32.mrb[0].mxu0
    %v3610 = vadd.f32 %v3381, %v3609
    %v3611 = vpop.f32.mrb[0].mxu0
    %v3612 = vpop.f32.mrb[0].mxu0
    %v3613 = vadd.f32 %v3381, %v3612
    %v3614 = vpop.f32.mrb[0].mxu0
    %3615 = vmatprep.mubr.bf16.mxu0 %v3302
    %3616 = vmatmul.mubr.bf16.gmra.mrb[0].mxu0 %v3301
    %v3617 = vpop.f32.mrb[0].mxu0
    %v3618 = vadd.f32 %v3381, %v3617
    %v3619 = vpop.f32.mrb[0].mxu0
    %v3620 = vpop.f32.mrb[0].mxu0
    %v3621 = vadd.f32 %v3381, %v3620
    %v3622 = vpop.f32.mrb[0].mxu0
    %3623 = vmatprep.mubr.bf16.mxu0 %v3305
    %3624 = vmatmul.mubr.bf16.gmra.mrb[0].mxu0 %v3304
    %v3625 = vpop.f32.mrb[0].mxu0
    %v3626 = vadd.f32 %v3381, %v3625
    %v3627 = vpop.f32.mrb[0].mxu0
    %v3628 = vpop.f32.mrb[0].mxu0
    %v3629 = vadd.f32 %v3381, %v3628
    %v3630 = vpop.f32.mrb[0].mxu0
    %3631 = vmatprep.mubr.bf16.mxu0 %v3308
    %3632 = vmatmul.mubr.bf16.gmra.mrb[0].mxu0 %v3307
    %v3633 = vpop.f32.mrb[0].mxu0
    %v3634 = vadd.f32 %v3381, %v3633
    %v3635 = vpop.f32.mrb[0].mxu0
    %v3636 = vpop.f32.mrb[0].mxu0
    %v3637 = vadd.f32 %v3381, %v3636
    %v3638 = vpop.f32.mrb[0].mxu0
    %3639 = vmatprep.mubr.bf16.mxu0 %v3311
    %3640 = vmatmul.mubr.bf16.gmra.mrb[0].mxu0 %v3310
    %v3641 = vpop.f32.mrb[0].mxu0
    %v3642 = vadd.f32 %v3381, %v3641
    %v3643 = vpop.f32.mrb[0].mxu0
    %v3644 = vpop.f32.mrb[0].mxu0
    %v3645 = vadd.f32 %v3381, %v3644
    %v3646 = vpop.f32.mrb[0].mxu0
    %3647 = vmatprep.mubr.bf16.mxu0 %v3314
    %3648 = vmatmul.mubr.bf16.gmra.mrb[0].mxu0 %v3313
    %v3649 = vpop.f32.mrb[0].mxu0
    %v3650 = vadd.f32 %v3381, %v3649
    %v3651 = vpop.f32.mrb[0].mxu0
    %v3652 = vpop.f32.mrb[0].mxu0
    %v3653 = vadd.f32 %v3381, %v3652
    %v3654 = vpop.f32.mrb[0].mxu0
    %3655 = vmatprep.mubr.bf16.mxu0 %v3317
    %3656 = vmatmul.mubr.bf16.gmra.mrb[0].mxu0 %v3316
    %v3657 = vpop.f32.mrb[0].mxu0
    %v3658 = vadd.f32 %v3381, %v3657
    %v3659 = vpop.f32.mrb[0].mxu0
    %v3660 = vpop.f32.mrb[0].mxu0
    %v3661 = vadd.f32 %v3381, %v3660
    %v3662 = vpop.f32.mrb[0].mxu0
    %3663 = vmatprep.mubr.bf16.mxu0 %v3320
    %3664 = vmatmul.mubr.bf16.gmra.mrb[0].mxu0 %v3319
    %v3665 = vpop.f32.mrb[0].mxu0
    %v3666 = vadd.f32 %v3381, %v3665
    %v3667 = vpop.f32.mrb[0].mxu0
    %v3668 = vpop.f32.mrb[0].mxu0
    %v3669 = vadd.f32 %v3381, %v3668
    %v3670 = vpop.f32.mrb[0].mxu0
    %3671 = vmatprep.mubr.bf16.mxu0 %v3323
    %3672 = vmatmul.mubr.bf16.gmra.mrb[0].mxu0 %v3322
    %v3673 = vpop.f32.mrb[0].mxu0
    %v3674 = vadd.f32 %v3381, %v3673
    %v3675 = vpop.f32.mrb[0].mxu0
    %v3676 = vpop.f32.mrb[0].mxu0
    %v3677 = vadd.f32 %v3381, %v3676
    %v3678 = vpop.f32.mrb[0].mxu0
    %3679 = vmatprep.mubr.bf16.mxu0 %v3326
    %3680 = vmatmul.mubr.bf16.gmra.mrb[0].mxu0 %v3325
    %v3681 = vpop.f32.mrb[0].mxu0
    %v3682 = vadd.f32 %v3381, %v3681
    %v3683 = vpop.f32.mrb[0].mxu0
    %v3684 = vpop.f32.mrb[0].mxu0
    %v3685 = vadd.f32 %v3381, %v3684
    %v3686 = vpop.f32.mrb[0].mxu0
    %3687 = vdwg.mxu0
    %3688 = vmatprep.subr.bf16.mxu0 0
    %3689 = vmatpush1.bf16.msra.mxu0 %v3495
    %3690 = vmatprep.subr.bf16.mxu0 0
    %3691 = vmatpush1.bf16.msra.mxu0 %v3496
    %3692 = vmatprep.subr.bf16.mxu0 0
    %3693 = vmatpush1.bf16.msra.mxu0 %v3497
    %3694 = vmatprep.subr.bf16.mxu0 0
    %3695 = vmatpush1.bf16.msra.mxu0 %v3498
    %3696 = vmatprep.subr.bf16.mxu0 0
    %3697 = vmatpush1.bf16.msra.mxu0 %v3499
    %3698 = vmatprep.subr.bf16.mxu0 0
    %3699 = vmatpush1.bf16.msra.mxu0 %v3500
    %3700 = vmatprep.subr.bf16.mxu0 0
    %3701 = vmatpush1.bf16.msra.mxu0 %v3501
    %3702 = vmatprep.subr.bf16.mxu0 0
    %3703 = vmatpush1.bf16.msra.mxu0 %v3502
    %3704 = vmatprep.subr.bf16.mxu0 0
    %3705 = vmatpush1.bf16.msra.mxu0 0
    %3706 = vmatprep.subr.bf16.mxu0 0
    %3707 = vmatpush1.bf16.msra.mxu0 0
    %3708 = vmatprep.subr.bf16.mxu0 0
    %3709 = vmatpush1.bf16.msra.mxu0 0
    %3710 = vmatprep.subr.bf16.mxu0 0
    %3711 = vmatpush1.bf16.msra.mxu0 0
    %3712 = vmatprep.subr.bf16.mxu0 0
    %3713 = vmatpush1.bf16.msra.mxu0 0
    %3714 = vmatprep.subr.bf16.mxu0 0
    %3715 = vmatpush1.bf16.msra.mxu0 0
    %3716 = vmatprep.subr.bf16.mxu0 0
    %3717 = vmatpush1.bf16.msra.mxu0 0
    %3718 = vmatprep.subr.bf16.mxu0 0
    %3719 = vmatpush1.bf16.msra.mxu0 0
    %3720 = vmatprep.mubr.bf16.mxu0 0
    %3721 = vmatmul.mubr.bf16.gmra.mrb[0].mxu0 %v3282
    %v3722 = vpop.f32.mrb[0].mxu0
    %v3723 = vadd.f32 %v3562, %v3722
    %v3724 = vpop.f32.mrb[0].mxu0
    %v3725 = vpop.f32.mrb[0].mxu0
    %v3726 = vadd.f32 %v3565, %v3725
    %v3727 = vpop.f32.mrb[0].mxu0
    %3728 = vmatprep.mubr.bf16.mxu0 0
    %3729 = vmatmul.mubr.bf16.gmra.mrb[0].mxu0 %v3285
    %v3730 = vpop.f32.mrb[0].mxu0
    %v3731 = vadd.f32 %v3570, %v3730
    %v3732 = vpop.f32.mrb[0].mxu0
    %v3733 = vpop.f32.mrb[0].mxu0
    %v3734 = vadd.f32 %v3573, %v3733
    %v3735 = vpop.f32.mrb[0].mxu0
    %3736 = vmatprep.mubr.bf16.mxu0 0
    %3737 = vmatmul.mubr.bf16.gmra.mrb[0].mxu0 %v3288
    %v3738 = vpop.f32.mrb[0].mxu0
    %v3739 = vadd.f32 %v3578, %v3738
    %v3740 = vpop.f32.mrb[0].mxu0
    %v3741 = vpop.f32.mrb[0].mxu0
    %v3742 = vadd.f32 %v3581, %v3741
    %v3743 = vpop.f32.mrb[0].mxu0
    %3744 = vmatprep.mubr.bf16.mxu0 0
    %3745 = vmatmul.mubr.bf16.gmra.mrb[0].mxu0 %v3291
    %v3746 = vpop.f32.mrb[0].mxu0
    %v3747 = vadd.f32 %v3586, %v3746
    %v3748 = vpop.f32.mrb[0].mxu0
    %v3749 = vpop.f32.mrb[0].mxu0
    %v3750 = vadd.f32 %v3589, %v3749
    %v3751 = vpop.f32.mrb[0].mxu0
    %3752 = vmatprep.mubr.bf16.mxu0 0
    %3753 = vmatmul.mubr.bf16.gmra.mrb[0].mxu0 %v3294
    %v3754 = vpop.f32.mrb[0].mxu0
    %v3755 = vadd.f32 %v3594, %v3754
    %v3756 = vpop.f32.mrb[0].mxu0
    %v3757 = vpop.f32.mrb[0].mxu0
    %v3758 = vadd.f32 %v3597, %v3757
    %v3759 = vpop.f32.mrb[0].mxu0
    %3760 = vmatprep.mubr.bf16.mxu0 0
    %3761 = vmatmul.mubr.bf16.gmra.mrb[0].mxu0 %v3297
    %v3762 = vpop.f32.mrb[0].mxu0
    %v3763 = vadd.f32 %v3602, %v3762
    %v3764 = vpop.f32.mrb[0].mxu0
    %v3765 = vpop.f32.mrb[0].mxu0
    %v3766 = vadd.f32 %v3605, %v3765
    %v3767 = vpop.f32.mrb[0].mxu0
    %3768 = vmatprep.mubr.bf16.mxu0 0
    %3769 = vmatmul.mubr.bf16.gmra.mrb[0].mxu0 %v3300
    %v3770 = vpop.f32.mrb[0].mxu0
    %v3771 = vadd.f32 %v3610, %v3770
    %v3772 = vpop.f32.mrb[0].mxu0
    %v3773 = vpop.f32.mrb[0].mxu0
    %v3774 = vadd.f32 %v3613, %v3773
    %v3775 = vpop.f32.mrb[0].mxu0
    %3776 = vmatprep.mubr.bf16.mxu0 0
    %3777 = vmatmul.mubr.bf16.gmra.mrb[0].mxu0 %v3303
    %v3778 = vpop.f32.mrb[0].mxu0
    %v3779 = vadd.f32 %v3618, %v3778
    %v3780 = vpop.f32.mrb[0].mxu0
    %v3781 = vpop.f32.mrb[0].mxu0
    %v3782 = vadd.f32 %v3621, %v3781
    %v3783 = vpop.f32.mrb[0].mxu0
    %3784 = vmatprep.mubr.bf16.mxu0 0
    %3785 = vmatmul.mubr.bf16.gmra.mrb[0].mxu0 %v3306
    %v3786 = vpop.f32.mrb[0].mxu0
    %v3787 = vadd.f32 %v3626, %v3786
    %v3788 = vpop.f32.mrb[0].mxu0
    %v3789 = vpop.f32.mrb[0].mxu0
    %v3790 = vadd.f32 %v3629, %v3789
    %v3791 = vpop.f32.mrb[0].mxu0
    %3792 = vmatprep.mubr.bf16.mxu0 0
    %3793 = vmatmul.mubr.bf16.gmra.mrb[0].mxu0 %v3309
    %v3794 = vpop.f32.mrb[0].mxu0
    %v3795 = vadd.f32 %v3634, %v3794
    %v3796 = vpop.f32.mrb[0].mxu0
    %v3797 = vpop.f32.mrb[0].mxu0
    %v3798 = vadd.f32 %v3637, %v3797
    %v3799 = vpop.f32.mrb[0].mxu0
    %3800 = vmatprep.mubr.bf16.mxu0 0
    %3801 = vmatmul.mubr.bf16.gmra.mrb[0].mxu0 %v3312
    %v3802 = vpop.f32.mrb[0].mxu0
    %v3803 = vadd.f32 %v3642, %v3802
    %v3804 = vpop.f32.mrb[0].mxu0
    %v3805 = vpop.f32.mrb[0].mxu0
    %v3806 = vadd.f32 %v3645, %v3805
    %v3807 = vpop.f32.mrb[0].mxu0
    %3808 = vmatprep.mubr.bf16.mxu0 0
    %3809 = vmatmul.mubr.bf16.gmra.mrb[0].mxu0 %v3315
    %v3810 = vpop.f32.mrb[0].mxu0
    %v3811 = vadd.f32 %v3650, %v3810
    %v3812 = vpop.f32.mrb[0].mxu0
    %v3813 = vpop.f32.mrb[0].mxu0
    %v3814 = vadd.f32 %v3653, %v3813
    %v3815 = vpop.f32.mrb[0].mxu0
    %3816 = vmatprep.mubr.bf16.mxu0 0
    %3817 = vmatmul.mubr.bf16.gmra.mrb[0].mxu0 %v3318
    %v3818 = vpop.f32.mrb[0].mxu0
    %v3819 = vadd.f32 %v3658, %v3818
    %v3820 = vpop.f32.mrb[0].mxu0
    %v3821 = vpop.f32.mrb[0].mxu0
    %v3822 = vadd.f32 %v3661, %v3821
    %v3823 = vpop.f32.mrb[0].mxu0
    %3824 = vmatprep.mubr.bf16.mxu0 0
    %3825 = vmatmul.mubr.bf16.gmra.mrb[0].mxu0 %v3321
    %v3826 = vpop.f32.mrb[0].mxu0
    %v3827 = vadd.f32 %v3666, %v3826
    %v3828 = vpop.f32.mrb[0].mxu0
    %v3829 = vpop.f32.mrb[0].mxu0
    %v3830 = vadd.f32 %v3669, %v3829
    %v3831 = vpop.f32.mrb[0].mxu0
    %3832 = vmatprep.mubr.bf16.mxu0 0
    %3833 = vmatmul.mubr.bf16.gmra.mrb[0].mxu0 %v3324
    %v3834 = vpop.f32.mrb[0].mxu0
    %v3835 = vadd.f32 %v3674, %v3834
    %v3836 = vpop.f32.mrb[0].mxu0
    %v3837 = vpop.f32.mrb[0].mxu0
    %v3838 = vadd.f32 %v3677, %v3837
    %v3839 = vpop.f32.mrb[0].mxu0
    %3840 = vmatprep.mubr.bf16.mxu0 0
    %3841 = vmatmul.mubr.bf16.gmra.mrb[0].mxu0 %v3327
    %v3842 = vpop.f32.mrb[0].mxu0
    %v3843 = vadd.f32 %v3682, %v3842
    %v3844 = vpop.f32.mrb[0].mxu0
    %v3845 = vpop.f32.mrb[0].mxu0
    %v3846 = vadd.f32 %v3685, %v3845
    %v3847 = vpop.f32.mrb[0].mxu0
    %3848 = vdwg.mxu0
    %v3849 = vadd.f32 %v119, %v3723
    %v3850 = vadd.f32 %v120, %v3726
    %v3851 = vadd.f32 %v121, %v3731
    %v3852 = vadd.f32 %v122, %v3734
    %v3853 = vadd.f32 %v123, %v3739
    %v3854 = vadd.f32 %v124, %v3742
    %v3855 = vadd.f32 %v125, %v3747
    %v3856 = vadd.f32 %v126, %v3750
    %v3857 = vadd.f32 %v127, %v3755
    %v3858 = vadd.f32 %v128, %v3758
    %v3859 = vadd.f32 %v129, %v3763
    %v3860 = vadd.f32 %v130, %v3766
    %v3861 = vadd.f32 %v131, %v3771
    %v3862 = vadd.f32 %v132, %v3774
    %v3863 = vadd.f32 %v133, %v3779
    %v3864 = vadd.f32 %v134, %v3782
    %v3865 = vadd.f32 %v135, %v3787
    %v3866 = vadd.f32 %v136, %v3790
    %v3867 = vadd.f32 %v137, %v3795
    %v3868 = vadd.f32 %v138, %v3798
    %v3869 = vadd.f32 %v139, %v3803
    %v3870 = vadd.f32 %v140, %v3806
    %v3871 = vadd.f32 %v141, %v3811
    %v3872 = vadd.f32 %v142, %v3814
    %v3873 = vadd.f32 %v143, %v3819
    %v3874 = vadd.f32 %v144, %v3822
    %v3875 = vadd.f32 %v145, %v3827
    %v3876 = vadd.f32 %v146, %v3830
    %v3877 = vadd.f32 %v147, %v3835
    %v3878 = vadd.f32 %v148, %v3838
    %v3879 = vadd.f32 %v149, %v3843
    %v3880 = vadd.f32 %v150, %v3846
    %3881 = vst [vmem:[#allocation2] sm:$0xff] %v3849
    %3882 = vst [vmem:[#allocation2 + $0x8] sm:$0xff] %v3850
    %3883 = vst [vmem:[#allocation2 + $0x10] sm:$0xff] %v3851
    %3884 = vst [vmem:[#allocation2 + $0x18] sm:$0xff] %v3852
    %3885 = vst [vmem:[#allocation2 + $0x20] sm:$0xff] %v3853
    %3886 = vst [vmem:[#allocation2 + $0x28] sm:$0xff] %v3854
    %3887 = vst [vmem:[#allocation2 + $0x30] sm:$0xff] %v3855
    %3888 = vst [vmem:[#allocation2 + $0x38] sm:$0xff] %v3856
    %3889 = vst [vmem:[#allocation2 + $0x40] sm:$0xff] %v3857
    %3890 = vst [vmem:[#allocation2 + $0x48] sm:$0xff] %v3858
    %3891 = vst [vmem:[#allocation2 + $0x50] sm:$0xff] %v3859
    %3892 = vst [vmem:[#allocation2 + $0x58] sm:$0xff] %v3860
    %3893 = vst [vmem:[#allocation2 + $0x60] sm:$0xff] %v3861
    %3894 = vst [vmem:[#allocation2 + $0x68] sm:$0xff] %v3862
    %3895 = vst [vmem:[#allocation2 + $0x70] sm:$0xff] %v3863
    %3896 = vst [vmem:[#allocation2 + $0x78] sm:$0xff] %v3864
    %3897 = vst [vmem:[#allocation2 + $0x80] sm:$0xff] %v3865
    %3898 = vst [vmem:[#allocation2 + $0x88] sm:$0xff] %v3866
    %3899 = vst [vmem:[#allocation2 + $0x90] sm:$0xff] %v3867
    %3900 = vst [vmem:[#allocation2 + $0x98] sm:$0xff] %v3868
    %3901 = vst [vmem:[#allocation2 + $0xa0] sm:$0xff] %v3869
    %3902 = vst [vmem:[#allocation2 + $0xa8] sm:$0xff] %v3870
    %3903 = vst [vmem:[#allocation2 + $0xb0] sm:$0xff] %v3871
    %3904 = vst [vmem:[#allocation2 + $0xb8] sm:$0xff] %v3872
    %3905 = vst [vmem:[#allocation2 + $0xc0] sm:$0xff] %v3873
    %3906 = vst [vmem:[#allocation2 + $0xc8] sm:$0xff] %v3874
    %3907 = vst [vmem:[#allocation2 + $0xd0] sm:$0xff] %v3875
    %3908 = vst [vmem:[#allocation2 + $0xd8] sm:$0xff] %v3876
    %3909 = vst [vmem:[#allocation2 + $0xe0] sm:$0xff] %v3877
    %3910 = vst [vmem:[#allocation2 + $0xe8] sm:$0xff] %v3878
    %3911 = vst [vmem:[#allocation2 + $0xf0] sm:$0xff] %v3879
    %3912 = vst [vmem:[#allocation2 + $0xf8] sm:$0xff] %v3880
    // Predicated region
    $region66: #{tpu_custom_call.1} parent=1 // pred_check
      _
    $region67: #{tpu_custom_call.1} parent=1 // pred_check_branch
      %3914 = sbr.rel (0) target = $region69
    $region68: #{tpu_custom_call.1} parent=1 // pred_region
      %s3916 = ssub.s32 4096, 4096
      %3917 = vsyncadd [#allocation3], %s3916
      %s3918 = sshll.u32 [#allocation2], 4
      %s3919 = int_to_ptr.vmem [resolvable:$true] %s3918
      %3924 = dma.vmem_to_hbm [thread:$0]  %s3919, 4096, %s16, [#allocation3], 128, 128, 8
    $region69: #{tpu_custom_call.1} parent=1 // pred_fallthru
      _
    // Predicated region
    $region70: #{tpu_custom_call.1} parent=1 // pred_check
      _
    $region71: #{tpu_custom_call.1} parent=1 // pred_check_branch
      %3926 = sbr.rel (0) target = $region73
    $region72: #{tpu_custom_call.1} parent=1 // pred_region
      %3927 = dma.done [#allocation3], 4096
    $region73: #{tpu_custom_call.1} parent=1 // pred_fallthru
      _
    %3928 = vsyncpa [#allocation3], 1

</llo_original>
